<compile_context>
chip_gen: v6e
topology: v6e:2x2x1
jax: 0.10.0
libtpu: 0.0.40
codegen_flags: <defaults>
</compile_context>

<pallas_src>
import functools
import math

import jax
import jax.numpy as jnp
from jax.experimental import pallas as pl
from jax.experimental.pallas import tpu as pltpu

LANE = 128


def _round_up(x, m):
    return (x + m - 1) // m * m


def _vmem_capacity_bytes():
    try:
        return int(pltpu.get_tpu_info().vmem_capacity_bytes)
    except Exception:
        return 64 * 1024 * 1024


# ----------------------------------------------------------------------------
# Pallas kernel: one fused, tiled SAGEConv layer
# ----------------------------------------------------------------------------
def _sage_layer_kernel(inv_deg_ref, a_ref, hwn_ref, hs_ref, ws_ref, b_ref,
                       o_ref, acc_ref, *, apply_relu, agg_resident, tk):
    k = pl.program_id(1)

    @pl.when(k == 0)
    def _():
        acc_ref[...] = jnp.zeros_like(acc_ref)

    a = a_ref[...]                                     # bf16 0/1 tile -> MXU directly
    if agg_resident:
        start = pl.multiple_of(k * tk, tk)
        hwn = hwn_ref[pl.ds(start, tk), :]             # slice of VMEM-resident HWn
    else:
        hwn = hwn_ref[...]                             # streamed (tk, Fout) block
    acc_ref[...] += jnp.dot(a, hwn, preferred_element_type=jnp.float32)

    @pl.when(k == pl.num_programs(1) - 1)
    def _():
        # Mean aggregation = row scale by 1/deg (factored out of A; commutes with Wn).
        h_neigh = acc_ref[...] * inv_deg_ref[...]
        out = (jnp.dot(hs_ref[...], ws_ref[...],
                       preferred_element_type=jnp.float32)
               + h_neigh + b_ref[...])
        if apply_relu:
            out = jnp.maximum(out, 0.0)
        o_ref[...] = out.astype(o_ref.dtype)


def sage_conv(a_bin, inv_deg, h, w_self, hwn, bias, *, apply_relu, out_dtype,
              tm=512, tk=512, agg_resident=None):
    """One SAGEConv (mean aggregator) layer as a tiled, pipelined Pallas kernel.

    a_bin: [N, N] binary adjacency (bf16), inv_deg: [N, 1] f32, h: [N, Fin] bf16,
    w_self: [Fin, Fout] bf16, hwn = H @ W_neigh: [N, Fout] bf16 (pre-projected in the
    wrapper), bias: [1, Fout] f32.  Feature dims are pre-padded to multiples of 128.
    """
    n, f_in = h.shape
    f_out = w_self.shape[1]
    assert n % tm == 0 and n % tk == 0

    vmem_cap = _vmem_capacity_bytes()
    if agg_resident is None:
        # Keep HWn fully VMEM-resident when it (x2 for buffering) is a small fraction
        # of physical VMEM -> A becomes the only O(N^2) HBM stream.
        agg_resident = 2 * hwn.size * hwn.dtype.itemsize <= vmem_cap // 4

    kernel = functools.partial(_sage_layer_kernel, apply_relu=apply_relu,
                               agg_resident=agg_resident, tk=tk)

    if agg_resident:
        hwn_spec = pl.BlockSpec((n, f_out), lambda i, k: (0, 0))     # fetched once
        hwn_stream_bytes = n * f_out * 2
        hwn_vmem = 2 * n * f_out * 2
    else:
        hwn_spec = pl.BlockSpec((tk, f_out), lambda i, k: (k, 0))    # re-streamed / row tile
        hwn_stream_bytes = (n // tm) * n * f_out * 2
        hwn_vmem = 2 * tk * f_out * 2

    out_itemsize = jnp.dtype(out_dtype).itemsize
    flops = 2 * n * n * f_out + 2 * n * f_in * f_out
    bytes_accessed = (n * n * a_bin.dtype.itemsize          # dominant N^2 A stream
                      + hwn_stream_bytes                     # aggregation-side input
                      + n * f_in * 2                         # H (self path, once)
                      + f_in * f_out * 2 + f_out * 4 + n * 4
                      + n * f_out * out_itemsize)

    vmem_needed = (2 * tm * tk * a_bin.dtype.itemsize        # A tiles (double-buffered)
                   + hwn_vmem
                   + 2 * tm * f_in * 2                       # self-path H tile
                   + 2 * f_in * f_out * 2 + 2 * f_out * 4 + 2 * tm * 4
                   + tm * f_out * 4                          # f32 accumulator scratch
                   + 2 * tm * f_out * out_itemsize)
    vmem_limit = int(min(int(0.85 * vmem_cap),
                         max(32 * 1024 * 1024, vmem_needed + (4 << 20))))

    grid_spec = pltpu.PrefetchScalarGridSpec(
        num_scalar_prefetch=0,
        grid=(n // tm, n // tk),
        in_specs=[
            pl.BlockSpec((tm, 1), lambda i, k: (i, 0)),        # 1/deg row scale
            pl.BlockSpec((tm, tk), lambda i, k: (i, k)),       # adjacency tile (bf16)
            hwn_spec,                                          # H @ W_neigh (resident/stream)
            pl.BlockSpec((tm, f_in), lambda i, k: (i, 0)),     # H rows (self path)
            pl.BlockSpec((f_in, f_out), lambda i, k: (0, 0)),  # W_self (resident, bf16)
            pl.BlockSpec((1, f_out), lambda i, k: (0, 0)),     # bias   (resident, f32)
        ],
        out_specs=pl.BlockSpec((tm, f_out), lambda i, k: (i, 0)),
        scratch_shapes=[pltpu.VMEM((tm, f_out), jnp.float32)],
    )

    return pl.pallas_call(
        kernel,
        out_shape=jax.ShapeDtypeStruct((n, f_out), out_dtype),
        grid_spec=grid_spec,
        compiler_params=pltpu.CompilerParams(
            # row-tile axis across TensorCores (v7x megacore); reduction axis last.
            dimension_semantics=("parallel", "arbitrary"),
            vmem_limit_bytes=vmem_limit,
        ),
        cost_estimate=pl.CostEstimate(flops=int(flops), transcendentals=0,
                                      bytes_accessed=int(bytes_accessed)),
    )(inv_deg, a_bin, hwn, h, w_self, bias)


# ----------------------------------------------------------------------------
# GraphSAGE forward: stack of SAGEConv layers (padded to 128-lane widths)
# ----------------------------------------------------------------------------
def graphsage_forward(a_bin, inv_deg, features, params, *, tm=512, tk=512,
                      agg_resident=None):
    """params: list of (w_self, w_neigh, bias); relu on all layers but the last."""
    n, f_in0 = features.shape

    # Pad node count to a common multiple of both tiles; keep the row-tile count even
    # (>1) so the "parallel" axis splits cleanly across v7x's two TensorCores.
    n_pad = _round_up(n, math.lcm(tm, tk))
    if (n_pad // tm) > 1 and (n_pad // tm) % 2 == 1:
        n_pad = _round_up(n_pad + 1, math.lcm(2 * tm, tk))

    # Zero-pad node and feature dims (exact: padded rows/cols contribute zeros).
    a_p = jnp.pad(a_bin, ((0, n_pad - n), (0, n_pad - n)))
    inv_p = jnp.pad(inv_deg, ((0, n_pad - n), (0, 0)), constant_values=1.0)
    h = jnp.pad(features, ((0, n_pad - n), (0, _round_up(f_in0, LANE) - f_in0)))
    h = h.astype(jnp.bfloat16)                 # carry activations in bf16 between layers

    n_layers = len(params)
    for li, (ws, wn, b) in enumerate(params):
        # TODO(synk): feat_drop (dropout) is identity here (p=0.0 / eval mode).
        fi, fo = ws.shape
        fi_p, fo_p = _round_up(fi, LANE), _round_up(fo, LANE)
        ws_p = jnp.pad(ws, ((0, fi_p - fi), (0, fo_p - fo))).astype(jnp.bfloat16)
        wn_p = jnp.pad(wn, ((0, fi_p - fi), (0, fo_p - fo))).astype(jnp.bfloat16)
        b_p = jnp.pad(b, ((0, 0), (0, fo_p - fo)))

        # Hoisted neighbor projection: compute HWn once per layer (no per-row-tile
        # recompute inside the grid), stream/hold the narrower Fout-wide result.
        hwn = jnp.dot(h, wn_p, preferred_element_type=jnp.float32).astype(jnp.bfloat16)

        last = (li == n_layers - 1)
        h = sage_conv(a_p, inv_p, h, ws_p, hwn, b_p,
                      apply_relu=not last,
                      out_dtype=jnp.float32 if last else jnp.bfloat16,
                      tm=tm, tk=tk, agg_resident=agg_resident)

    f_out = params[-1][0].shape[1]
    return h[:n, :f_out]


def init_params(key, in_feats, n_hidden, n_classes, n_layers):
    """Xavier-uniform-ish init; layer dims mirror the PyTorch module."""
    dims = [(in_feats, n_hidden)]
    for _ in range(n_layers - 1):
        dims.append((n_hidden, n_hidden))
    dims.append((n_hidden, n_classes))
    params = []
    for (fin, fout) in dims:
        key, k1, k2 = jax.random.split(key, 3)
        limit = (6.0 / (fin + fout)) ** 0.5
        w_self = jax.random.uniform(k1, (fin, fout), jnp.float32, -limit, limit)
        w_neigh = jax.random.uniform(k2, (fin, fout), jnp.float32, -limit, limit)
        bias = jnp.zeros((1, fout), jnp.float32)
        params.append((w_self, w_neigh, bias))
    return params


def build_graph(key, n_nodes, p_edge=0.1):
    """Dense random graph: binary adjacency (bf16, exact 0/1) + 1/deg column (f32)."""
    adj = (jax.random.uniform(key, (n_nodes, n_nodes)) < p_edge).astype(jnp.float32)
    adj = adj * (1.0 - jnp.eye(n_nodes, dtype=jnp.float32))   # no self loops
    deg = jnp.maximum(adj.sum(axis=1, keepdims=True), 1.0)    # guard zero-degree
    return adj.astype(jnp.bfloat16), (1.0 / deg).astype(jnp.float32)


def reference_forward(a_bin, inv_deg, features, params):
    """Pure-JAX reference with the SAME precision policy as the kernel path."""
    h = features.astype(jnp.bfloat16)
    for i, (ws, wn, b) in enumerate(params):
        ws_b = ws.astype(jnp.bfloat16)
        wn_b = wn.astype(jnp.bfloat16)
        hwn = jnp.dot(h, wn_b, preferred_element_type=jnp.float32).astype(jnp.bfloat16)
        h_neigh = jnp.dot(a_bin, hwn, preferred_element_type=jnp.float32) * inv_deg
        out = jnp.dot(h, ws_b, preferred_element_type=jnp.float32) + h_neigh + b
        if i < len(params) - 1:
            out = jnp.maximum(out, 0.0)
            h = out.astype(jnp.bfloat16)
        else:
            h = out
    return h


if __name__ == "__main__":
    # Small but tiling-exercising shapes (grid = 2x2 per layer at tm=tk=256).
    N_NODES = 512
    IN_FEATS = 32
    N_HIDDEN = 64
    N_CLASSES = 8
    N_LAYERS = 2   # -> total 3 SAGEConv layers, as in the PyTorch module

    key = jax.random.PRNGKey(0)
    k_graph, k_feat, k_param = jax.random.split(key, 3)

    a_bin, inv_deg = build_graph(k_graph, N_NODES)
    features = jax.random.normal(k_feat, (N_NODES, IN_FEATS), jnp.float32)
    params = init_params(k_param, IN_FEATS, N_HIDDEN, N_CLASSES, N_LAYERS)

    ref = reference_forward(a_bin, inv_deg, features, params)

    # (a) auto path: HWn is VMEM-resident at this size (A is the only N^2 stream).
    fwd = jax.jit(functools.partial(graphsage_forward, tm=256, tk=256))
    out = jax.block_until_ready(fwd(a_bin, inv_deg, features, params))
    assert out.shape == (N_NODES, N_CLASSES)
    assert jnp.allclose(out, ref, atol=1e-2, rtol=1e-2), float(
        jnp.max(jnp.abs(out - ref)))

    # (b) also exercise the streamed-HWn (large-graph) path.
    fwd_s = jax.jit(functools.partial(graphsage_forward, tm=256, tk=256,
                                      agg_resident=False))
    out_s = jax.block_until_ready(fwd_s(a_bin, inv_deg, features, params))
    assert jnp.allclose(out_s, ref, atol=1e-2, rtol=1e-2), float(
        jnp.max(jnp.abs(out_s - ref)))

    print("KERNEL_OK")
</pallas_src>

<mosaic_0001>
module attributes {stable_mosaic.version = 11 : i64} {
  func.func @_sage_layer_kernel(%arg0: i32, %arg1: i32, %arg2: memref<256x1xf32, #tpu.memory_space<vmem>>, %arg3: memref<256x256xbf16, #tpu.memory_space<vmem>>, %arg4: memref<512x128xbf16, #tpu.memory_space<vmem>>, %arg5: memref<256x128xbf16, #tpu.memory_space<vmem>>, %arg6: memref<128x128xbf16, #tpu.memory_space<vmem>>, %arg7: memref<1x128xf32, #tpu.memory_space<vmem>>, %arg8: memref<256x128xbf16, #tpu.memory_space<vmem>>, %arg9: memref<256x128xf32, #tpu.memory_space<vmem>>) attributes {dimension_semantics = [#tpu.dimension_semantics<parallel>, #tpu.dimension_semantics<arbitrary>], iteration_bounds = array<i64: 2, 2>, scalar_prefetch = 0 : i64, scratch_operands = 1 : i64, tpu.core_type = #tpu.core_type<tc>, window_params = [{transform_indices = @transform_0, window_bounds = array<i64: 256, 1>}, {transform_indices = @transform_1, window_bounds = array<i64: 256, 256>}, {pipeline_mode = #tpu.pipeline_mode<synchronous>, transform_indices = @transform_2, window_bounds = array<i64: 512, 128>}, {transform_indices = @transform_3, window_bounds = array<i64: 256, 128>}, {pipeline_mode = #tpu.pipeline_mode<synchronous>, transform_indices = @transform_4, window_bounds = array<i64: 128, 128>}, {pipeline_mode = #tpu.pipeline_mode<synchronous>, transform_indices = @transform_5, window_bounds = array<i64: 1, 128>}, {transform_indices = @transform_6, window_bounds = array<i64: 256, 128>}]} {
    %c0_i32 = arith.constant 0 : i32
    %0 = arith.cmpi eq, %arg1, %c0_i32 : i32
    %1 = arith.extui %0 : i1 to i32
    %c0_i32_0 = arith.constant 0 : i32
    %2 = arith.cmpi ne, %1, %c0_i32_0 : i32
    scf.if %2 {
      %cst_8 = arith.constant 0.000000e+00 : f32
      %15 = vector.broadcast %cst_8 : f32 to vector<256x128xf32>
      %c0_9 = arith.constant 0 : index
      %c0_10 = arith.constant 0 : index
      %16 = vector.load %arg9[%c0_9, %c0_10] : memref<256x128xf32, #tpu.memory_space<vmem>>, vector<256x128xf32>
      tpu.vector_store %arg9[%c0_9, %c0_10], %15 {strides = array<i32>} : memref<256x128xf32, #tpu.memory_space<vmem>>, vector<256x128xf32>,
    } else {
    }
    %c0 = arith.constant 0 : index
    %c0_1 = arith.constant 0 : index
    %3 = vector.load %arg3[%c0, %c0_1] : memref<256x256xbf16, #tpu.memory_space<vmem>>, vector<256x256xbf16>
    %c256_i32 = arith.constant 256 : i32
    %4 = arith.muli %arg1, %c256_i32 : i32
    %5 = tpu.assume_multiple %4, 256 : i32
    %6 = arith.index_cast %5 : i32 to index
    %c0_2 = arith.constant 0 : index
    %7 = vector.load %arg4[%6, %c0_2] : memref<512x128xbf16, #tpu.memory_space<vmem>>, vector<256x128xbf16>
    %c0_3 = arith.constant 0 : index
    %c0_4 = arith.constant 0 : index
    %8 = vector.load %arg9[%c0_3, %c0_4] : memref<256x128xf32, #tpu.memory_space<vmem>>, vector<256x128xf32>
    %cst = arith.constant dense<0.000000e+00> : vector<256x128xf32>
    %9 = tpu.matmul %3, %7, %cst {dimension_numbers = #tpu.dot_dimension_numbers<[1], [0], [0], [1], [0, 0, 1, 1], [], []>} : vector<256x256xbf16>, vector<256x128xbf16>, vector<256x128xf32> -> vector<256x128xf32>
    %10 = arith.addf %8, %9 : vector<256x128xf32>
    %c0_5 = arith.constant 0 : index
    %c0_6 = arith.constant 0 : index
    %11 = vector.load %arg9[%c0_5, %c0_6] : memref<256x128xf32, #tpu.memory_space<vmem>>, vector<256x128xf32>
    tpu.vector_store %arg9[%c0_5, %c0_6], %10 {strides = array<i32>} : memref<256x128xf32, #tpu.memory_space<vmem>>, vector<256x128xf32>,
    %c1_i32 = arith.constant 1 : i32
    %12 = arith.cmpi eq, %arg1, %c1_i32 : i32
    %13 = arith.extui %12 : i1 to i32
    %c0_i32_7 = arith.constant 0 : i32
    %14 = arith.cmpi ne, %13, %c0_i32_7 : i32
    scf.if %14 {
      %c0_8 = arith.constant 0 : index
      %c0_9 = arith.constant 0 : index
      %15 = vector.load %arg9[%c0_8, %c0_9] : memref<256x128xf32, #tpu.memory_space<vmem>>, vector<256x128xf32>
      %c0_10 = arith.constant 0 : index
      %c0_11 = arith.constant 0 : index
      %16 = vector.load %arg2[%c0_10, %c0_11] : memref<256x1xf32, #tpu.memory_space<vmem>>, vector<256x1xf32>
      %17 = vector.broadcast %16 : vector<256x1xf32> to vector<256x128xf32>
      %18 = arith.mulf %15, %17 : vector<256x128xf32>
      %c0_12 = arith.constant 0 : index
      %c0_13 = arith.constant 0 : index
      %19 = vector.load %arg5[%c0_12, %c0_13] : memref<256x128xbf16, #tpu.memory_space<vmem>>, vector<256x128xbf16>
      %c0_14 = arith.constant 0 : index
      %c0_15 = arith.constant 0 : index
      %20 = vector.load %arg6[%c0_14, %c0_15] : memref<128x128xbf16, #tpu.memory_space<vmem>>, vector<128x128xbf16>
      %cst_16 = arith.constant dense<0.000000e+00> : vector<256x128xf32>
      %21 = tpu.matmul %19, %20, %cst_16 {dimension_numbers = #tpu.dot_dimension_numbers<[1], [0], [0], [1], [0, 0, 1, 1], [], []>} : vector<256x128xbf16>, vector<128x128xbf16>, vector<256x128xf32> -> vector<256x128xf32>
      %22 = arith.addf %21, %18 : vector<256x128xf32>
      %c0_17 = arith.constant 0 : index
      %c0_18 = arith.constant 0 : index
      %23 = vector.load %arg7[%c0_17, %c0_18] : memref<1x128xf32, #tpu.memory_space<vmem>>, vector<1x128xf32>
      %24 = vector.broadcast %23 : vector<1x128xf32> to vector<256x128xf32>
      %25 = arith.addf %22, %24 : vector<256x128xf32>
      %cst_19 = arith.constant 0.000000e+00 : f32
      %26 = vector.broadcast %cst_19 : f32 to vector<256x128xf32>
      %27 = arith.maximumf %25, %26 : vector<256x128xf32>
      %28 = arith.truncf %27 : vector<256x128xf32> to vector<256x128xbf16>
      %c0_20 = arith.constant 0 : index
      %c0_21 = arith.constant 0 : index
      %29 = vector.load %arg8[%c0_20, %c0_21] : memref<256x128xbf16, #tpu.memory_space<vmem>>, vector<256x128xbf16>
      tpu.vector_store %arg8[%c0_20, %c0_21], %28 {strides = array<i32>} : memref<256x128xbf16, #tpu.memory_space<vmem>>, vector<256x128xbf16>,
    } else {
    }
    return
  }
  func.func @transform_0(%arg0: i32, %arg1: i32) -> (i32, i32) {
    %c0_i32 = arith.constant 0 : i32
    %c0_i32_0 = arith.constant 0 : i32
    return %arg0, %c0_i32 : i32, i32
  }
  func.func @transform_1(%arg0: i32, %arg1: i32) -> (i32, i32) {
    %c0_i32 = arith.constant 0 : i32
    return %arg0, %arg1 : i32, i32
  }
  func.func @transform_2(%arg0: i32, %arg1: i32) -> (i32, i32) {
    %c0_i32 = arith.constant 0 : i32
    %c0_i32_0 = arith.constant 0 : i32
    %c0_i32_1 = arith.constant 0 : i32
    return %c0_i32, %c0_i32_0 : i32, i32
  }
  func.func @transform_3(%arg0: i32, %arg1: i32) -> (i32, i32) {
    %c0_i32 = arith.constant 0 : i32
    %c0_i32_0 = arith.constant 0 : i32
    return %arg0, %c0_i32 : i32, i32
  }
  func.func @transform_4(%arg0: i32, %arg1: i32) -> (i32, i32) {
    %c0_i32 = arith.constant 0 : i32
    %c0_i32_0 = arith.constant 0 : i32
    %c0_i32_1 = arith.constant 0 : i32
    return %c0_i32, %c0_i32_0 : i32, i32
  }
  func.func @transform_5(%arg0: i32, %arg1: i32) -> (i32, i32) {
    %c0_i32 = arith.constant 0 : i32
    %c0_i32_0 = arith.constant 0 : i32
    %c0_i32_1 = arith.constant 0 : i32
    return %c0_i32, %c0_i32_0 : i32, i32
  }
  func.func @transform_6(%arg0: i32, %arg1: i32) -> (i32, i32) {
    %c0_i32 = arith.constant 0 : i32
    %c0_i32_0 = arith.constant 0 : i32
    return %arg0, %c0_i32 : i32, i32
  }
}

module attributes {stable_mosaic.version = 11 : i64} {
  func.func @_sage_layer_kernel(%arg0: i32, %arg1: i32, %arg2: memref<256x1xf32, #tpu.memory_space<vmem>>, %arg3: memref<256x256xbf16, #tpu.memory_space<vmem>>, %arg4: memref<512x128xbf16, #tpu.memory_space<vmem>>, %arg5: memref<256x128xbf16, #tpu.memory_space<vmem>>, %arg6: memref<128x128xbf16, #tpu.memory_space<vmem>>, %arg7: memref<1x128xf32, #tpu.memory_space<vmem>>, %arg8: memref<256x128xf32, #tpu.memory_space<vmem>>, %arg9: memref<256x128xf32, #tpu.memory_space<vmem>>) attributes {dimension_semantics = [#tpu.dimension_semantics<parallel>, #tpu.dimension_semantics<arbitrary>], iteration_bounds = array<i64: 2, 2>, scalar_prefetch = 0 : i64, scratch_operands = 1 : i64, tpu.core_type = #tpu.core_type<tc>, window_params = [{transform_indices = @transform_0, window_bounds = array<i64: 256, 1>}, {transform_indices = @transform_1, window_bounds = array<i64: 256, 256>}, {pipeline_mode = #tpu.pipeline_mode<synchronous>, transform_indices = @transform_2, window_bounds = array<i64: 512, 128>}, {transform_indices = @transform_3, window_bounds = array<i64: 256, 128>}, {pipeline_mode = #tpu.pipeline_mode<synchronous>, transform_indices = @transform_4, window_bounds = array<i64: 128, 128>}, {pipeline_mode = #tpu.pipeline_mode<synchronous>, transform_indices = @transform_5, window_bounds = array<i64: 1, 128>}, {transform_indices = @transform_6, window_bounds = array<i64: 256, 128>}]} {
    %c0_i32 = arith.constant 0 : i32
    %0 = arith.cmpi eq, %arg1, %c0_i32 : i32
    %1 = arith.extui %0 : i1 to i32
    %c0_i32_0 = arith.constant 0 : i32
    %2 = arith.cmpi ne, %1, %c0_i32_0 : i32
    scf.if %2 {
      %cst_8 = arith.constant 0.000000e+00 : f32
      %15 = vector.broadcast %cst_8 : f32 to vector<256x128xf32>
      %c0_9 = arith.constant 0 : index
      %c0_10 = arith.constant 0 : index
      %16 = vector.load %arg9[%c0_9, %c0_10] : memref<256x128xf32, #tpu.memory_space<vmem>>, vector<256x128xf32>
      tpu.vector_store %arg9[%c0_9, %c0_10], %15 {strides = array<i32>} : memref<256x128xf32, #tpu.memory_space<vmem>>, vector<256x128xf32>,
    } else {
    }
    %c0 = arith.constant 0 : index
    %c0_1 = arith.constant 0 : index
    %3 = vector.load %arg3[%c0, %c0_1] : memref<256x256xbf16, #tpu.memory_space<vmem>>, vector<256x256xbf16>
    %c256_i32 = arith.constant 256 : i32
    %4 = arith.muli %arg1, %c256_i32 : i32
    %5 = tpu.assume_multiple %4, 256 : i32
    %6 = arith.index_cast %5 : i32 to index
    %c0_2 = arith.constant 0 : index
    %7 = vector.load %arg4[%6, %c0_2] : memref<512x128xbf16, #tpu.memory_space<vmem>>, vector<256x128xbf16>
    %c0_3 = arith.constant 0 : index
    %c0_4 = arith.constant 0 : index
    %8 = vector.load %arg9[%c0_3, %c0_4] : memref<256x128xf32, #tpu.memory_space<vmem>>, vector<256x128xf32>
    %cst = arith.constant dense<0.000000e+00> : vector<256x128xf32>
    %9 = tpu.matmul %3, %7, %cst {dimension_numbers = #tpu.dot_dimension_numbers<[1], [0], [0], [1], [0, 0, 1, 1], [], []>} : vector<256x256xbf16>, vector<256x128xbf16>, vector<256x128xf32> -> vector<256x128xf32>
    %10 = arith.addf %8, %9 : vector<256x128xf32>
    %c0_5 = arith.constant 0 : index
    %c0_6 = arith.constant 0 : index
    %11 = vector.load %arg9[%c0_5, %c0_6] : memref<256x128xf32, #tpu.memory_space<vmem>>, vector<256x128xf32>
    tpu.vector_store %arg9[%c0_5, %c0_6], %10 {strides = array<i32>} : memref<256x128xf32, #tpu.memory_space<vmem>>, vector<256x128xf32>,
    %c1_i32 = arith.constant 1 : i32
    %12 = arith.cmpi eq, %arg1, %c1_i32 : i32
    %13 = arith.extui %12 : i1 to i32
    %c0_i32_7 = arith.constant 0 : i32
    %14 = arith.cmpi ne, %13, %c0_i32_7 : i32
    scf.if %14 {
      %c0_8 = arith.constant 0 : index
      %c0_9 = arith.constant 0 : index
      %15 = vector.load %arg9[%c0_8, %c0_9] : memref<256x128xf32, #tpu.memory_space<vmem>>, vector<256x128xf32>
      %c0_10 = arith.constant 0 : index
      %c0_11 = arith.constant 0 : index
      %16 = vector.load %arg2[%c0_10, %c0_11] : memref<256x1xf32, #tpu.memory_space<vmem>>, vector<256x1xf32>
      %17 = vector.broadcast %16 : vector<256x1xf32> to vector<256x128xf32>
      %18 = arith.mulf %15, %17 : vector<256x128xf32>
      %c0_12 = arith.constant 0 : index
      %c0_13 = arith.constant 0 : index
      %19 = vector.load %arg5[%c0_12, %c0_13] : memref<256x128xbf16, #tpu.memory_space<vmem>>, vector<256x128xbf16>
      %c0_14 = arith.constant 0 : index
      %c0_15 = arith.constant 0 : index
      %20 = vector.load %arg6[%c0_14, %c0_15] : memref<128x128xbf16, #tpu.memory_space<vmem>>, vector<128x128xbf16>
      %cst_16 = arith.constant dense<0.000000e+00> : vector<256x128xf32>
      %21 = tpu.matmul %19, %20, %cst_16 {dimension_numbers = #tpu.dot_dimension_numbers<[1], [0], [0], [1], [0, 0, 1, 1], [], []>} : vector<256x128xbf16>, vector<128x128xbf16>, vector<256x128xf32> -> vector<256x128xf32>
      %22 = arith.addf %21, %18 : vector<256x128xf32>
      %c0_17 = arith.constant 0 : index
      %c0_18 = arith.constant 0 : index
      %23 = vector.load %arg7[%c0_17, %c0_18] : memref<1x128xf32, #tpu.memory_space<vmem>>, vector<1x128xf32>
      %24 = vector.broadcast %23 : vector<1x128xf32> to vector<256x128xf32>
      %25 = arith.addf %22, %24 : vector<256x128xf32>
      %c0_19 = arith.constant 0 : index
      %c0_20 = arith.constant 0 : index
      %26 = vector.load %arg8[%c0_19, %c0_20] : memref<256x128xf32, #tpu.memory_space<vmem>>, vector<256x128xf32>
      tpu.vector_store %arg8[%c0_19, %c0_20], %25 {strides = array<i32>} : memref<256x128xf32, #tpu.memory_space<vmem>>, vector<256x128xf32>,
    } else {
    }
    return
  }
  func.func @transform_0(%arg0: i32, %arg1: i32) -> (i32, i32) {
    %c0_i32 = arith.constant 0 : i32
    %c0_i32_0 = arith.constant 0 : i32
    return %arg0, %c0_i32 : i32, i32
  }
  func.func @transform_1(%arg0: i32, %arg1: i32) -> (i32, i32) {
    %c0_i32 = arith.constant 0 : i32
    return %arg0, %arg1 : i32, i32
  }
  func.func @transform_2(%arg0: i32, %arg1: i32) -> (i32, i32) {
    %c0_i32 = arith.constant 0 : i32
    %c0_i32_0 = arith.constant 0 : i32
    %c0_i32_1 = arith.constant 0 : i32
    return %c0_i32, %c0_i32_0 : i32, i32
  }
  func.func @transform_3(%arg0: i32, %arg1: i32) -> (i32, i32) {
    %c0_i32 = arith.constant 0 : i32
    %c0_i32_0 = arith.constant 0 : i32
    return %arg0, %c0_i32 : i32, i32
  }
  func.func @transform_4(%arg0: i32, %arg1: i32) -> (i32, i32) {
    %c0_i32 = arith.constant 0 : i32
    %c0_i32_0 = arith.constant 0 : i32
    %c0_i32_1 = arith.constant 0 : i32
    return %c0_i32, %c0_i32_0 : i32, i32
  }
  func.func @transform_5(%arg0: i32, %arg1: i32) -> (i32, i32) {
    %c0_i32 = arith.constant 0 : i32
    %c0_i32_0 = arith.constant 0 : i32
    %c0_i32_1 = arith.constant 0 : i32
    return %c0_i32, %c0_i32_0 : i32, i32
  }
  func.func @transform_6(%arg0: i32, %arg1: i32) -> (i32, i32) {
    %c0_i32 = arith.constant 0 : i32
    %c0_i32_0 = arith.constant 0 : i32
    return %arg0, %c0_i32 : i32, i32
  }
}

</mosaic_0001>

<llo_original>
// kernel: graphsage_forward.5
$region0: #{graphsage_forward.5}
  #allocation0 [shape = 'u32[]', space=smem, size = 0x4, offset = 0x4, fixed_abs, tag = 'smem constant byte address 0x4 - core index']
  #allocation1 [shape = 'u32[144,128]{1,0:T(1,128)}', space=vmem, size = 0x12000, scoped, tag = 'internal scratch']
  #allocation2 [shape = 'f32[256,128]{1,0:T(8,128)}', space=vmem, size = 0x20000, scoped, tag = 'scratch operand']
  %s0 = inlined_call_operand.vmem [shape: f32[512,1], index: 0, kind: input, shape index: {}]
  %s1 = inlined_call_operand.vmem [shape: bf16[512,512], index: 1, kind: input, shape index: {}]
  %s2 = inlined_call_operand.vmem [shape: bf16[512,128], index: 2, kind: input, shape index: {}]
  %s3 = inlined_call_operand.vmem [shape: bf16[512,128], index: 3, kind: input, shape index: {}]
  %s4 = inlined_call_operand.vmem [shape: bf16[128,128], index: 4, kind: input, shape index: {}]
  %s5 = inlined_call_operand.vmem [shape: f32[1,128], index: 5, kind: input, shape index: {}]
  %s6 = inlined_call_operand.vmem [shape: f32[512,128], index: 6, kind: output, shape index: {}]
  %s7 = sld [smem:[#allocation0]]
  $region103: #{graphsage_forward.5} parent=0
    _
  %s9 = ssub.s32 1, %s7
  %s10 = scalar_select 0, %s9, %s7
  $region1: #{graphsage_forward.5} parent=0
    #allocation3 [shape = 'u8[262144]{0}', space=vmem, size = 0x40000, scoped, tag = 'input window, operand 1']
    loop: start=0, step=1, limit=6
    $region2: #{graphsage_forward.5} parent=1 // loop_pre_header
      _
    $region3: #{graphsage_forward.5} parent=1 // loop_header
      %s12 = sphi 0, %s16
      %p13 = scmp.ge.s32.totalorder %s12, 6
      %s19 = sphi 0, %s31
      %s20 = sphi 0, %s27
      %s21 = sphi 0, %s19
      %s22 = sphi 0, %s20
      %s23 = sphi 0, %s21
      %s24 = sphi 0, %s22
      %s34 = sphi 0, %s36
      %s37 = sphi 0, %s34
      %s38 = sphi 0, %s37
      %s54 = sphi 0, %s38
      %s62 = sphi 0, %s64
      %s65 = sphi 0, %s62
      %s66 = sphi 0, %s65
      %s82 = sphi 0, %s66
      %s86 = sphi 0, %s86
      %s88 = sphi 0, %s86
      %s89 = sphi 0, %s88
      %s103 = sphi 0, %s89
      %s109 = sphi 0, %s111
      %s112 = sphi 0, %s109
      %s113 = sphi 0, %s112
      %s129 = sphi 0, %s113
      %s133 = sphi 0, %s133
      %s135 = sphi 0, %s133
      %s136 = sphi 0, %s135
      %s150 = sphi 0, %s136
      %s154 = sphi 0, %s154
      %s156 = sphi 0, %s154
      %s157 = sphi 0, %s156
      %s171 = sphi 0, %s157
      %s177 = sphi 0, %s179
      %s180 = sphi 0, %s177
      %s181 = sphi 0, %s180
      %s197 = sphi 0, %s181
    $region4: #{graphsage_forward.5} parent=1 // loop_header_branch
      %15 = sbr.rel (%p13) target = $region8
    $region5: #{graphsage_forward.5} parent=1 // loop_body
      %s17 = ssub.s32 %s12, 1
      %s18 = ssub.s32 %s12, 2
      %s25 = sadd.s32 1, %s20
      %p26 = scmp.ge.s32.totalorder %s25, 2
      %s27 = scalar_select %p26, 0, %s25
      %s28 = sadd.s32 1, %s19
      %s29 = scalar_select %p26, %s28, %s19
      %p30 = scmp.ge.s32.totalorder %s29, 2
      %s31 = scalar_select %p30, 0, %s29
      %s32 = ssub.s32 %s19, %s31
      %p33 = scmp.eq.s32.totalorder %s32, 0
      %s35 = sadd.s32 %s34, 1
      %s36 = scalar_select %p33, %s34, %s35
      %p39 = pneg %p33
      %p40 = scmp.eq.s32.totalorder %s12, 3
      %p41 = por %p39, %p40
      %p42 = scmp.ne.s32.totalorder %s34, %s37
      %p43 = scmp.eq.s32.totalorder %s12, 0
      %p44 = por %p42, %p43
      %p45 = scmp.ne.s32.totalorder %s34, %s37
      %p46 = scmp.eq.s32.totalorder %s17, 3
      %p47 = por %p45, %p46
      %p48 = scmp.ne.s32.totalorder %s37, %s38
      %p49 = scmp.eq.s32.totalorder %s17, 0
      %p50 = por %p48, %p49
      %p51 = scmp.ne.s32.totalorder %s37, %s38
      %p52 = scmp.eq.s32.totalorder %s18, 3
      %p53 = por %p51, %p52
      %p55 = scmp.ne.s32.totalorder %s38, %s54
      %p56 = scmp.eq.s32.totalorder %s18, 0
      %p57 = por %p55, %p56
      %s58 = ssub.s32 %s19, %s31
      %s59 = ssub.s32 %s20, %s27
      %s60 = sor.u32 %s58, %s59
      %p61 = scmp.eq.s32.totalorder %s60, 0
      %s63 = sadd.s32 %s62, 1
      %s64 = scalar_select %p61, %s62, %s63
      %p67 = pneg %p61
      %p68 = scmp.eq.s32.totalorder %s12, 3
      %p69 = por %p67, %p68
      %p70 = scmp.ne.s32.totalorder %s62, %s65
      %p71 = scmp.eq.s32.totalorder %s12, 0
      %p72 = por %p70, %p71
      %p73 = scmp.ne.s32.totalorder %s62, %s65
      %p74 = scmp.eq.s32.totalorder %s17, 3
      %p75 = por %p73, %p74
      %p76 = scmp.ne.s32.totalorder %s65, %s66
      %p77 = scmp.eq.s32.totalorder %s17, 0
      %p78 = por %p76, %p77
      %p79 = scmp.ne.s32.totalorder %s65, %s66
      %p80 = scmp.eq.s32.totalorder %s18, 3
      %p81 = por %p79, %p80
      %p83 = scmp.ne.s32.totalorder %s66, %s82
      %p84 = scmp.eq.s32.totalorder %s18, 0
      %p85 = por %p83, %p84
      %s87 = sadd.s32 %s86, 1
      %p90 = scmp.eq.s32.totalorder %s12, 3
      %p91 = scmp.ne.s32.totalorder %s86, %s88
      %p92 = scmp.eq.s32.totalorder %s12, 0
      %p93 = por %p91, %p92
      %p94 = scmp.ne.s32.totalorder %s86, %s88
      %p95 = scmp.eq.s32.totalorder %s17, 3
      %p96 = por %p94, %p95
      %p97 = scmp.ne.s32.totalorder %s88, %s89
      %p98 = scmp.eq.s32.totalorder %s17, 0
      %p99 = por %p97, %p98
      %p100 = scmp.ne.s32.totalorder %s88, %s89
      %p101 = scmp.eq.s32.totalorder %s18, 3
      %p102 = por %p100, %p101
      %p104 = scmp.ne.s32.totalorder %s89, %s103
      %p105 = scmp.eq.s32.totalorder %s18, 0
      %p106 = por %p104, %p105
      %s107 = ssub.s32 %s19, %s31
      %p108 = scmp.eq.s32.totalorder %s107, 0
      %s110 = sadd.s32 %s109, 1
      %s111 = scalar_select %p108, %s109, %s110
      %p114 = pneg %p108
      %p115 = scmp.eq.s32.totalorder %s12, 3
      %p116 = por %p114, %p115
      %p117 = scmp.ne.s32.totalorder %s109, %s112
      %p118 = scmp.eq.s32.totalorder %s12, 0
      %p119 = por %p117, %p118
      %p120 = scmp.ne.s32.totalorder %s109, %s112
      %p121 = scmp.eq.s32.totalorder %s17, 3
      %p122 = por %p120, %p121
      %p123 = scmp.ne.s32.totalorder %s112, %s113
      %p124 = scmp.eq.s32.totalorder %s17, 0
      %p125 = por %p123, %p124
      %p126 = scmp.ne.s32.totalorder %s112, %s113
      %p127 = scmp.eq.s32.totalorder %s18, 3
      %p128 = por %p126, %p127
      %p130 = scmp.ne.s32.totalorder %s113, %s129
      %p131 = scmp.eq.s32.totalorder %s18, 0
      %p132 = por %p130, %p131
      %s134 = sadd.s32 %s133, 1
      %p137 = scmp.eq.s32.totalorder %s12, 3
      %p138 = scmp.ne.s32.totalorder %s133, %s135
      %p139 = scmp.eq.s32.totalorder %s12, 0
      %p140 = por %p138, %p139
      %p141 = scmp.ne.s32.totalorder %s133, %s135
      %p142 = scmp.eq.s32.totalorder %s17, 3
      %p143 = por %p141, %p142
      %p144 = scmp.ne.s32.totalorder %s135, %s136
      %p145 = scmp.eq.s32.totalorder %s17, 0
      %p146 = por %p144, %p145
      %p147 = scmp.ne.s32.totalorder %s135, %s136
      %p148 = scmp.eq.s32.totalorder %s18, 3
      %p149 = por %p147, %p148
      %p151 = scmp.ne.s32.totalorder %s136, %s150
      %p152 = scmp.eq.s32.totalorder %s18, 0
      %p153 = por %p151, %p152
      %s155 = sadd.s32 %s154, 1
      %p158 = scmp.eq.s32.totalorder %s12, 3
      %p159 = scmp.ne.s32.totalorder %s154, %s156
      %p160 = scmp.eq.s32.totalorder %s12, 0
      %p161 = por %p159, %p160
      %p162 = scmp.ne.s32.totalorder %s154, %s156
      %p163 = scmp.eq.s32.totalorder %s17, 3
      %p164 = por %p162, %p163
      %p165 = scmp.ne.s32.totalorder %s156, %s157
      %p166 = scmp.eq.s32.totalorder %s17, 0
      %p167 = por %p165, %p166
      %p168 = scmp.ne.s32.totalorder %s156, %s157
      %p169 = scmp.eq.s32.totalorder %s18, 3
      %p170 = por %p168, %p169
      %p172 = scmp.ne.s32.totalorder %s157, %s171
      %p173 = scmp.eq.s32.totalorder %s18, 0
      %p174 = por %p172, %p173
      %s175 = ssub.s32 %s19, %s31
      %p176 = scmp.eq.s32.totalorder %s175, 0
      %s178 = sadd.s32 %s177, 1
      %s179 = scalar_select %p176, %s177, %s178
      %p182 = pneg %p176
      %p183 = scmp.eq.s32.totalorder %s12, 3
      %p184 = por %p182, %p183
      %p185 = scmp.ne.s32.totalorder %s177, %s180
      %p186 = scmp.eq.s32.totalorder %s12, 0
      %p187 = por %p185, %p186
      %p188 = scmp.ne.s32.totalorder %s177, %s180
      %p189 = scmp.eq.s32.totalorder %s17, 3
      %p190 = por %p188, %p189
      %p191 = scmp.ne.s32.totalorder %s180, %s181
      %p192 = scmp.eq.s32.totalorder %s17, 0
      %p193 = por %p191, %p192
      %p194 = scmp.ne.s32.totalorder %s180, %s181
      %p195 = scmp.eq.s32.totalorder %s18, 3
      %p196 = por %p194, %p195
      %p198 = scmp.ne.s32.totalorder %s181, %s197
      %p199 = scmp.eq.s32.totalorder %s18, 0
      %p200 = por %p198, %p199
      %p201 = scmp.le.s32.totalorder 1, %s12
      %p202 = scmp.lt.s32.totalorder %s12, 5
      %p203 = pnand %p201, %p202
      %p204 = pneg %p203
      // Predicated region
      $region9: #{graphsage_forward.5} parent=5 // pred_check
        _
      $region10: #{graphsage_forward.5} parent=5 // pred_check_branch
        %206 = sbr.rel (%p203) target = $region12
      $region11: #{graphsage_forward.5} parent=5 // pred_region
        %s207 = ssub.s32 %s12, 1
        // Predicated region
        $region13: #{graphsage_forward.5} parent=11 // pred_check
          %p208 = pneg %p99
        $region14: #{graphsage_forward.5} parent=11 // pred_check_branch
          %210 = sbr.rel (%p208) target = $region16
        $region15: #{graphsage_forward.5} parent=11 // pred_region
          _
        $region16: #{graphsage_forward.5} parent=11 // pred_fallthru
          _
        // Predicated region
        $region17: #{graphsage_forward.5} parent=11 // pred_check
          %p211 = pneg %p146
        $region18: #{graphsage_forward.5} parent=11 // pred_check_branch
          %213 = sbr.rel (%p211) target = $region20
        $region19: #{graphsage_forward.5} parent=11 // pred_region
          _
        $region20: #{graphsage_forward.5} parent=11 // pred_fallthru
          _
        // Predicated region
        $region21: #{graphsage_forward.5} parent=11 // pred_check
          %p214 = pneg %p167
        $region22: #{graphsage_forward.5} parent=11 // pred_check_branch
          %216 = sbr.rel (%p214) target = $region24
        $region23: #{graphsage_forward.5} parent=11 // pred_region
          _
        $region24: #{graphsage_forward.5} parent=11 // pred_fallthru
          _
      $region12: #{graphsage_forward.5} parent=5 // pred_fallthru
        _
      %p217 = scmp.lt.s32.totalorder %s12, 4
      // Predicated region
      $region25: #{graphsage_forward.5} parent=5 // pred_check
        %p218 = pneg %p217
      $region26: #{graphsage_forward.5} parent=5 // pred_check_branch
        %220 = sbr.rel (%p218) target = $region28
      $region27: #{graphsage_forward.5} parent=5 // pred_region
        // Predicated region
        $region29: #{graphsage_forward.5} parent=27 // pred_check
          %p221 = pneg %p44
        $region30: #{graphsage_forward.5} parent=27 // pred_check_branch
          %223 = sbr.rel (%p221) target = $region32
        $region31: #{graphsage_forward.5} parent=27 // pred_region
          %s224 = smul.u32 32, %s19
          %p225 = scmp.lt.s32.totalorder %s224, 63
          %s226 = scalar_select %p225, %s224, 63
          %s227 = smul.addr %s226, 8
          %s228 = scalar_lea.vmem %s0, %s227
          %s229 = smul.u32 32, %s19
        $region32: #{graphsage_forward.5} parent=27 // pred_fallthru
          _
        // Predicated region
        $region33: #{graphsage_forward.5} parent=27 // pred_check
          %p230 = pneg %p72
        $region34: #{graphsage_forward.5} parent=27 // pred_check_branch
          %232 = sbr.rel (%p230) target = $region36
        $region35: #{graphsage_forward.5} parent=27 // pred_region
          %s233 = sand.u32 %s62, 1
          %s234 = sand.u32 %s62, 1
          %s235 = smul.addr %s234, 256
          %s236 = scalar_lea.vmem [#allocation3], %s235
          %s237 = smul.u32 32, %s19
          %s238 = smul.u32 2, %s20
          %s239 = smul.addr %s237, 4
          %s240 = sadd.s32 %s238, %s239
          %s241 = smul.addr %s240, 4
          %s242 = scalar_lea.vmem %s1, %s241
          // Predicated region
          $region37: #{graphsage_forward.5} parent=35 // pred_check
            _
          $region38: #{graphsage_forward.5} parent=35 // pred_check_branch
            %244 = sbr.rel (0) target = $region40
          $region39: #{graphsage_forward.5} parent=35 // pred_region
            // Predicated region
            $region41: #{graphsage_forward.5} parent=39 // pred_check
              _
            $region42: #{graphsage_forward.5} parent=39 // pred_check_branch
              %246 = sbr.rel (0) target = $region44
            $region43: #{graphsage_forward.5} parent=39 // pred_region
              // Predicated region
              $region56: #{graphsage_forward.5} parent=43 // pred_check
                _
              $region57: #{graphsage_forward.5} parent=43 // pred_check_branch
                %324 = sbr.rel (0) target = $region59
              $region58: #{graphsage_forward.5} parent=43 // pred_region
                loop: start=0, step=1, limit=1
                $region60: #{graphsage_forward.5} parent=58 // loop_pre_header
                  _
                $region61: #{graphsage_forward.5} parent=58 // loop_header
                  %s326 = sphi 0, %s330
                  %p327 = scmp.ge.s32.totalorder %s326, 1
                  %s331 = sphi %s242, %s242
                  %s332 = sphi %s236, %s236
                $region62: #{graphsage_forward.5} parent=58 // loop_header_branch
                  %329 = sbr.rel (%p327) target = $region66
                $region63: #{graphsage_forward.5} parent=58 // loop_body
                  %v333 = vld [vmem:[%s331] sm:$0xff]
                  %334 = vst [vmem:[%s332] sm:$0xff] %v333
                  %v335 = vld [vmem:[%s331 + $0x10] sm:$0xff]
                  %336 = vst [vmem:[%s332 + $0x8] sm:$0xff] %v335
                  %v337 = vld [vmem:[%s331 + $0x20] sm:$0xff]
                  %338 = vst [vmem:[%s332 + $0x10] sm:$0xff] %v337
                  %v339 = vld [vmem:[%s331 + $0x30] sm:$0xff]
                  %340 = vst [vmem:[%s332 + $0x18] sm:$0xff] %v339
                  %v341 = vld [vmem:[%s331 + $0x40] sm:$0xff]
                  %342 = vst [vmem:[%s332 + $0x20] sm:$0xff] %v341
                  %v343 = vld [vmem:[%s331 + $0x50] sm:$0xff]
                  %344 = vst [vmem:[%s332 + $0x28] sm:$0xff] %v343
                  %v345 = vld [vmem:[%s331 + $0x60] sm:$0xff]
                  %346 = vst [vmem:[%s332 + $0x30] sm:$0xff] %v345
                  %v347 = vld [vmem:[%s331 + $0x70] sm:$0xff]
                  %348 = vst [vmem:[%s332 + $0x38] sm:$0xff] %v347
                  %v349 = vld [vmem:[%s331 + $0x80] sm:$0xff]
                  %350 = vst [vmem:[%s332 + $0x40] sm:$0xff] %v349
                  %v351 = vld [vmem:[%s331 + $0x90] sm:$0xff]
                  %352 = vst [vmem:[%s332 + $0x48] sm:$0xff] %v351
                  %v353 = vld [vmem:[%s331 + $0xa0] sm:$0xff]
                  %354 = vst [vmem:[%s332 + $0x50] sm:$0xff] %v353
                  %v355 = vld [vmem:[%s331 + $0xb0] sm:$0xff]
                  %356 = vst [vmem:[%s332 + $0x58] sm:$0xff] %v355
                  %v357 = vld [vmem:[%s331 + $0xc0] sm:$0xff]
                  %358 = vst [vmem:[%s332 + $0x60] sm:$0xff] %v357
                  %v359 = vld [vmem:[%s331 + $0xd0] sm:$0xff]
                  %360 = vst [vmem:[%s332 + $0x68] sm:$0xff] %v359
                  %v361 = vld [vmem:[%s331 + $0xe0] sm:$0xff]
                  %362 = vst [vmem:[%s332 + $0x70] sm:$0xff] %v361
                  %v363 = vld [vmem:[%s331 + $0xf0] sm:$0xff]
                  %364 = vst [vmem:[%s332 + $0x78] sm:$0xff] %v363
                  %v365 = vld [vmem:[%s331 + $0x100] sm:$0xff]
                  %366 = vst [vmem:[%s332 + $0x80] sm:$0xff] %v365
                  %v367 = vld [vmem:[%s331 + $0x110] sm:$0xff]
                  %368 = vst [vmem:[%s332 + $0x88] sm:$0xff] %v367
                  %v369 = vld [vmem:[%s331 + $0x120] sm:$0xff]
                  %370 = vst [vmem:[%s332 + $0x90] sm:$0xff] %v369
                  %v371 = vld [vmem:[%s331 + $0x130] sm:$0xff]
                  %372 = vst [vmem:[%s332 + $0x98] sm:$0xff] %v371
                  %v373 = vld [vmem:[%s331 + $0x140] sm:$0xff]
                  %374 = vst [vmem:[%s332 + $0xa0] sm:$0xff] %v373
                  %v375 = vld [vmem:[%s331 + $0x150] sm:$0xff]
                  %376 = vst [vmem:[%s332 + $0xa8] sm:$0xff] %v375
                  %v377 = vld [vmem:[%s331 + $0x160] sm:$0xff]
                  %378 = vst [vmem:[%s332 + $0xb0] sm:$0xff] %v377
                  %v379 = vld [vmem:[%s331 + $0x170] sm:$0xff]
                  %380 = vst [vmem:[%s332 + $0xb8] sm:$0xff] %v379
                  %v381 = vld [vmem:[%s331 + $0x180] sm:$0xff]
                  %382 = vst [vmem:[%s332 + $0xc0] sm:$0xff] %v381
                  %v383 = vld [vmem:[%s331 + $0x190] sm:$0xff]
                  %384 = vst [vmem:[%s332 + $0xc8] sm:$0xff] %v383
                  %v385 = vld [vmem:[%s331 + $0x1a0] sm:$0xff]
                  %386 = vst [vmem:[%s332 + $0xd0] sm:$0xff] %v385
                  %v387 = vld [vmem:[%s331 + $0x1b0] sm:$0xff]
                  %388 = vst [vmem:[%s332 + $0xd8] sm:$0xff] %v387
                  %v389 = vld [vmem:[%s331 + $0x1c0] sm:$0xff]
                  %390 = vst [vmem:[%s332 + $0xe0] sm:$0xff] %v389
                  %v391 = vld [vmem:[%s331 + $0x1d0] sm:$0xff]
                  %392 = vst [vmem:[%s332 + $0xe8] sm:$0xff] %v391
                  %v393 = vld [vmem:[%s331 + $0x1e0] sm:$0xff]
                  %394 = vst [vmem:[%s332 + $0xf0] sm:$0xff] %v393
                  %v395 = vld [vmem:[%s331 + $0x1f0] sm:$0xff]
                  %396 = vst [vmem:[%s332 + $0xf8] sm:$0xff] %v395
                $region64: #{graphsage_forward.5} parent=58 // loop_footer
                  %s330 = sadd.s32 1, %s326
                $region65: #{graphsage_forward.5} parent=58 // loop_footer_branch
                  %325 = sbr.rel target = $region61
                $region66: #{graphsage_forward.5} parent=58 // loop_exit
                  _
              $region59: #{graphsage_forward.5} parent=43 // pred_fallthru
                _
              // Predicated region
              $region67: #{graphsage_forward.5} parent=43 // pred_check
                _
              $region68: #{graphsage_forward.5} parent=43 // pred_check_branch
                %398 = sbr.rel target = $region70
              $region69: #{graphsage_forward.5} parent=43 // pred_region
                _
              $region70: #{graphsage_forward.5} parent=43 // pred_fallthru
                _
            $region44: #{graphsage_forward.5} parent=39 // pred_fallthru
              _
            // Predicated region
            $region45: #{graphsage_forward.5} parent=39 // pred_check
              _
            $region46: #{graphsage_forward.5} parent=39 // pred_check_branch
              %248 = sbr.rel target = $region48
            $region47: #{graphsage_forward.5} parent=39 // pred_region
              %s250 = ssub.s32 256, 1
              loop: start=0, step=1, limit=1
              $region49: #{graphsage_forward.5} parent=47 // loop_pre_header
                _
              $region50: #{graphsage_forward.5} parent=47 // loop_header
                %s252 = sphi 0, %s256
                %p253 = scmp.ge.s32.totalorder %s252, 1
                %s257 = sphi %s242, %s242
                %s258 = sphi %s236, %s236
              $region51: #{graphsage_forward.5} parent=47 // loop_header_branch
                %255 = sbr.rel (%p253) target = $region55
              $region52: #{graphsage_forward.5} parent=47 // loop_body
                %v259 = vld [vmem:[%s257] sm:%s250]
                %260 = vst [vmem:[%s258] sm:%s250] %v259
                %v261 = vld [vmem:[%s257 + $0x10] sm:%s250]
                %262 = vst [vmem:[%s258 + $0x8] sm:%s250] %v261
                %v263 = vld [vmem:[%s257 + $0x20] sm:%s250]
                %264 = vst [vmem:[%s258 + $0x10] sm:%s250] %v263
                %v265 = vld [vmem:[%s257 + $0x30] sm:%s250]
                %266 = vst [vmem:[%s258 + $0x18] sm:%s250] %v265
                %v267 = vld [vmem:[%s257 + $0x40] sm:%s250]
                %268 = vst [vmem:[%s258 + $0x20] sm:%s250] %v267
                %v269 = vld [vmem:[%s257 + $0x50] sm:%s250]
                %270 = vst [vmem:[%s258 + $0x28] sm:%s250] %v269
                %v271 = vld [vmem:[%s257 + $0x60] sm:%s250]
                %272 = vst [vmem:[%s258 + $0x30] sm:%s250] %v271
                %v273 = vld [vmem:[%s257 + $0x70] sm:%s250]
                %274 = vst [vmem:[%s258 + $0x38] sm:%s250] %v273
                %v275 = vld [vmem:[%s257 + $0x80] sm:%s250]
                %276 = vst [vmem:[%s258 + $0x40] sm:%s250] %v275
                %v277 = vld [vmem:[%s257 + $0x90] sm:%s250]
                %278 = vst [vmem:[%s258 + $0x48] sm:%s250] %v277
                %v279 = vld [vmem:[%s257 + $0xa0] sm:%s250]
                %280 = vst [vmem:[%s258 + $0x50] sm:%s250] %v279
                %v281 = vld [vmem:[%s257 + $0xb0] sm:%s250]
                %282 = vst [vmem:[%s258 + $0x58] sm:%s250] %v281
                %v283 = vld [vmem:[%s257 + $0xc0] sm:%s250]
                %284 = vst [vmem:[%s258 + $0x60] sm:%s250] %v283
                %v285 = vld [vmem:[%s257 + $0xd0] sm:%s250]
                %286 = vst [vmem:[%s258 + $0x68] sm:%s250] %v285
                %v287 = vld [vmem:[%s257 + $0xe0] sm:%s250]
                %288 = vst [vmem:[%s258 + $0x70] sm:%s250] %v287
                %v289 = vld [vmem:[%s257 + $0xf0] sm:%s250]
                %290 = vst [vmem:[%s258 + $0x78] sm:%s250] %v289
                %v291 = vld [vmem:[%s257 + $0x100] sm:%s250]
                %292 = vst [vmem:[%s258 + $0x80] sm:%s250] %v291
                %v293 = vld [vmem:[%s257 + $0x110] sm:%s250]
                %294 = vst [vmem:[%s258 + $0x88] sm:%s250] %v293
                %v295 = vld [vmem:[%s257 + $0x120] sm:%s250]
                %296 = vst [vmem:[%s258 + $0x90] sm:%s250] %v295
                %v297 = vld [vmem:[%s257 + $0x130] sm:%s250]
                %298 = vst [vmem:[%s258 + $0x98] sm:%s250] %v297
                %v299 = vld [vmem:[%s257 + $0x140] sm:%s250]
                %300 = vst [vmem:[%s258 + $0xa0] sm:%s250] %v299
                %v301 = vld [vmem:[%s257 + $0x150] sm:%s250]
                %302 = vst [vmem:[%s258 + $0xa8] sm:%s250] %v301
                %v303 = vld [vmem:[%s257 + $0x160] sm:%s250]
                %304 = vst [vmem:[%s258 + $0xb0] sm:%s250] %v303
                %v305 = vld [vmem:[%s257 + $0x170] sm:%s250]
                %306 = vst [vmem:[%s258 + $0xb8] sm:%s250] %v305
                %v307 = vld [vmem:[%s257 + $0x180] sm:%s250]
                %308 = vst [vmem:[%s258 + $0xc0] sm:%s250] %v307
                %v309 = vld [vmem:[%s257 + $0x190] sm:%s250]
                %310 = vst [vmem:[%s258 + $0xc8] sm:%s250] %v309
                %v311 = vld [vmem:[%s257 + $0x1a0] sm:%s250]
                %312 = vst [vmem:[%s258 + $0xd0] sm:%s250] %v311
                %v313 = vld [vmem:[%s257 + $0x1b0] sm:%s250]
                %314 = vst [vmem:[%s258 + $0xd8] sm:%s250] %v313
                %v315 = vld [vmem:[%s257 + $0x1c0] sm:%s250]
                %316 = vst [vmem:[%s258 + $0xe0] sm:%s250] %v315
                %v317 = vld [vmem:[%s257 + $0x1d0] sm:%s250]
                %318 = vst [vmem:[%s258 + $0xe8] sm:%s250] %v317
                %v319 = vld [vmem:[%s257 + $0x1e0] sm:%s250]
                %320 = vst [vmem:[%s258 + $0xf0] sm:%s250] %v319
                %v321 = vld [vmem:[%s257 + $0x1f0] sm:%s250]
                %322 = vst [vmem:[%s258 + $0xf8] sm:%s250] %v321
              $region53: #{graphsage_forward.5} parent=47 // loop_footer
                %s256 = sadd.s32 1, %s252
              $region54: #{graphsage_forward.5} parent=47 // loop_footer_branch
                %251 = sbr.rel target = $region50
              $region55: #{graphsage_forward.5} parent=47 // loop_exit
                _
            $region48: #{graphsage_forward.5} parent=39 // pred_fallthru
              _
          $region40: #{graphsage_forward.5} parent=35 // pred_fallthru
            _
          %399 = vnop
        $region36: #{graphsage_forward.5} parent=27 // pred_fallthru
          _
        // Predicated region
        $region71: #{graphsage_forward.5} parent=27 // pred_check
          %p400 = pneg %p119
        $region72: #{graphsage_forward.5} parent=27 // pred_check_branch
          %402 = sbr.rel (%p400) target = $region74
        $region73: #{graphsage_forward.5} parent=27 // pred_region
          %s403 = smul.u32 32, %s19
          %p404 = scmp.lt.s32.totalorder %s403, 63
          %s405 = scalar_select %p404, %s403, 63
          %s406 = smul.addr %s405, 4
          %s407 = scalar_lea.vmem %s3, %s406
          %s408 = smul.u32 32, %s19
        $region74: #{graphsage_forward.5} parent=27 // pred_fallthru
          _
      $region28: #{graphsage_forward.5} parent=5 // pred_fallthru
        _
      %p409 = scmp.le.s32.totalorder 1, %s12
      %p410 = scmp.lt.s32.totalorder %s12, 5
      %p411 = pnand %p409, %p410
      %p412 = pneg %p411
      // Predicated region
      $region75: #{graphsage_forward.5} parent=5 // pred_check
        _
      $region76: #{graphsage_forward.5} parent=5 // pred_check_branch
        %414 = sbr.rel (%p411) target = $region78
      $region77: #{graphsage_forward.5} parent=5 // pred_region
        %s415 = ssub.s32 %s12, 1
        %s416 = sand.u32 %s65, 1
        %s417 = sand.u32 %s65, 1
        %s418 = smul.addr %s417, 256
        %s419 = scalar_lea.vmem [#allocation3], %s418
        // Predicated region
        $region79: #{graphsage_forward.5} parent=77 // pred_check
          %p420 = pneg %p78
        $region80: #{graphsage_forward.5} parent=77 // pred_check_branch
          %422 = sbr.rel (%p420) target = $region82
        $region81: #{graphsage_forward.5} parent=77 // pred_region
          _
        $region82: #{graphsage_forward.5} parent=77 // pred_fallthru
          _
        %s423 = smul.u32 32, %s21
        %p424 = scmp.lt.s32.totalorder %s423, 63
        %s425 = scalar_select %p424, %s423, 63
        %s426 = smul.addr %s425, 8
        %s427 = scalar_lea.vmem %s0, %s426
        %p428 = pneg %p50
        %p429 = pneg %p47
        %s430 = sand.u32 %s65, 1
        %s431 = sand.u32 %s65, 1
        %s432 = smul.addr %s431, 256
        %s433 = scalar_lea.vmem [#allocation3], %s432
        %p434 = pneg %p78
        %p435 = pneg %p75
        %p436 = pneg %p99
        %p437 = pneg %p96
        %s438 = smul.u32 32, %s21
        %p439 = scmp.lt.s32.totalorder %s438, 63
        %s440 = scalar_select %p439, %s438, 63
        %s441 = smul.addr %s440, 4
        %s442 = scalar_lea.vmem %s3, %s441
        %p443 = pneg %p125
        %p444 = pneg %p122
        %p445 = pneg %p146
        %p446 = pneg %p143
        %p447 = pneg %p167
        %p448 = pneg %p164
        %p449 = pneg %p193
        %p450 = pneg %p190
        %s451 = smul.u32 32, %s21
        %p452 = scmp.lt.s32.totalorder %s451, 63
        %s453 = scalar_select %p452, %s451, 63
        %s454 = smul.addr %s453, 8
        %s455 = scalar_lea.vmem %s6, %s454
        %s456 = smul.u32 32, %s21
        %p457 = scmp.lt.s32.totalorder %s456, 63
        %s458 = scalar_select %p457, %s456, 63
        %s459 = smul.addr %s458, 8
        %s460 = scalar_lea.vmem %s0, %s459
        %s461 = smul.u32 32, %s21
        %s462 = smul.u32 32, %s21
        %s463 = smul.u32 2, %s22
        %s464 = smul.u32 32, %s21
        %p465 = scmp.lt.s32.totalorder %s464, 63
        %s466 = scalar_select %p465, %s464, 63
        %s467 = smul.addr %s466, 4
        %s468 = scalar_lea.vmem %s3, %s467
        %s469 = smul.u32 32, %s21
        %s470 = smul.u32 32, %s21
        %p471 = scmp.lt.s32.totalorder %s470, 63
        %s472 = scalar_select %p471, %s470, 63
        %s473 = smul.addr %s472, 8
        %s474 = scalar_lea.vmem %s6, %s473
        %s475 = smul.u32 32, %s21
        %p477 = scmp.eq.s32.totalorder %s22, 0
        // Predicated region
        $region83: #{graphsage_forward.5} parent=77 // pred_check
          %p478 = pneg %p477
        $region84: #{graphsage_forward.5} parent=77 // pred_check_branch
          %480 = sbr.rel (%p478) target = $region86
        $region85: #{graphsage_forward.5} parent=77 // pred_region
          %481 = vst [vmem:[#allocation2] sm:$0xff] 0.0
          %482 = vst [vmem:[#allocation2 + $0x8] sm:$0xff] 0.0
          %483 = vst [vmem:[#allocation2 + $0x10] sm:$0xff] 0.0
          %484 = vst [vmem:[#allocation2 + $0x18] sm:$0xff] 0.0
          %485 = vst [vmem:[#allocation2 + $0x20] sm:$0xff] 0.0
          %486 = vst [vmem:[#allocation2 + $0x28] sm:$0xff] 0.0
          %487 = vst [vmem:[#allocation2 + $0x30] sm:$0xff] 0.0
          %488 = vst [vmem:[#allocation2 + $0x38] sm:$0xff] 0.0
          %489 = vst [vmem:[#allocation2 + $0x40] sm:$0xff] 0.0
          %490 = vst [vmem:[#allocation2 + $0x48] sm:$0xff] 0.0
          %491 = vst [vmem:[#allocation2 + $0x50] sm:$0xff] 0.0
          %492 = vst [vmem:[#allocation2 + $0x58] sm:$0xff] 0.0
          %493 = vst [vmem:[#allocation2 + $0x60] sm:$0xff] 0.0
          %494 = vst [vmem:[#allocation2 + $0x68] sm:$0xff] 0.0
          %495 = vst [vmem:[#allocation2 + $0x70] sm:$0xff] 0.0
          %496 = vst [vmem:[#allocation2 + $0x78] sm:$0xff] 0.0
          %497 = vst [vmem:[#allocation2 + $0x80] sm:$0xff] 0.0
          %498 = vst [vmem:[#allocation2 + $0x88] sm:$0xff] 0.0
          %499 = vst [vmem:[#allocation2 + $0x90] sm:$0xff] 0.0
          %500 = vst [vmem:[#allocation2 + $0x98] sm:$0xff] 0.0
          %501 = vst [vmem:[#allocation2 + $0xa0] sm:$0xff] 0.0
          %502 = vst [vmem:[#allocation2 + $0xa8] sm:$0xff] 0.0
          %503 = vst [vmem:[#allocation2 + $0xb0] sm:$0xff] 0.0
          %504 = vst [vmem:[#allocation2 + $0xb8] sm:$0xff] 0.0
          %505 = vst [vmem:[#allocation2 + $0xc0] sm:$0xff] 0.0
          %506 = vst [vmem:[#allocation2 + $0xc8] sm:$0xff] 0.0
          %507 = vst [vmem:[#allocation2 + $0xd0] sm:$0xff] 0.0
          %508 = vst [vmem:[#allocation2 + $0xd8] sm:$0xff] 0.0
          %509 = vst [vmem:[#allocation2 + $0xe0] sm:$0xff] 0.0
          %510 = vst [vmem:[#allocation2 + $0xe8] sm:$0xff] 0.0
          %511 = vst [vmem:[#allocation2 + $0xf0] sm:$0xff] 0.0
          %512 = vst [vmem:[#allocation2 + $0xf8] sm:$0xff] 0.0
        $region86: #{graphsage_forward.5} parent=77 // pred_fallthru
          _
        %v513 = vld [vmem:[%s419] sm:$0xff]
        %v514 = vld [vmem:[%s419 + $0x8] sm:$0xff]
        %v515 = vld [vmem:[%s419 + $0x10] sm:$0xff]
        %v516 = vld [vmem:[%s419 + $0x18] sm:$0xff]
        %v517 = vld [vmem:[%s419 + $0x20] sm:$0xff]
        %v518 = vld [vmem:[%s419 + $0x28] sm:$0xff]
        %v519 = vld [vmem:[%s419 + $0x30] sm:$0xff]
        %v520 = vld [vmem:[%s419 + $0x38] sm:$0xff]
        %v521 = vld [vmem:[%s419 + $0x40] sm:$0xff]
        %v522 = vld [vmem:[%s419 + $0x48] sm:$0xff]
        %v523 = vld [vmem:[%s419 + $0x50] sm:$0xff]
        %v524 = vld [vmem:[%s419 + $0x58] sm:$0xff]
        %v525 = vld [vmem:[%s419 + $0x60] sm:$0xff]
        %v526 = vld [vmem:[%s419 + $0x68] sm:$0xff]
        %v527 = vld [vmem:[%s419 + $0x70] sm:$0xff]
        %v528 = vld [vmem:[%s419 + $0x78] sm:$0xff]
        %v529 = vld [vmem:[%s419 + $0x80] sm:$0xff]
        %v530 = vld [vmem:[%s419 + $0x88] sm:$0xff]
        %v531 = vld [vmem:[%s419 + $0x90] sm:$0xff]
        %v532 = vld [vmem:[%s419 + $0x98] sm:$0xff]
        %v533 = vld [vmem:[%s419 + $0xa0] sm:$0xff]
        %v534 = vld [vmem:[%s419 + $0xa8] sm:$0xff]
        %v535 = vld [vmem:[%s419 + $0xb0] sm:$0xff]
        %v536 = vld [vmem:[%s419 + $0xb8] sm:$0xff]
        %v537 = vld [vmem:[%s419 + $0xc0] sm:$0xff]
        %v538 = vld [vmem:[%s419 + $0xc8] sm:$0xff]
        %v539 = vld [vmem:[%s419 + $0xd0] sm:$0xff]
        %v540 = vld [vmem:[%s419 + $0xd8] sm:$0xff]
        %v541 = vld [vmem:[%s419 + $0xe0] sm:$0xff]
        %v542 = vld [vmem:[%s419 + $0xe8] sm:$0xff]
        %v543 = vld [vmem:[%s419 + $0xf0] sm:$0xff]
        %v544 = vld [vmem:[%s419 + $0xf8] sm:$0xff]
        %s545 = smul.u32 %s22, 256
        %s546 = sshra.s32 %s545, 3
        %s547 = sand.u32 %s545, 7
        %s548 = smul.addr %s546, 4
        %s549 = scalar_lea.vmem %s2, %s548
        %v550 = vld [vmem:[%s549] sm:$0xf]
        %v551 = vld [vmem:[%s549 + $0x4] sm:$0xf]
        %v552 = vld [vmem:[%s549 + $0x8] sm:$0xf]
        %v553 = vld [vmem:[%s549 + $0xc] sm:$0xf]
        %v554 = vld [vmem:[%s549 + $0x10] sm:$0xf]
        %v555 = vld [vmem:[%s549 + $0x14] sm:$0xf]
        %v556 = vld [vmem:[%s549 + $0x18] sm:$0xf]
        %v557 = vld [vmem:[%s549 + $0x1c] sm:$0xf]
        %v558 = vld [vmem:[%s549 + $0x20] sm:$0xf]
        %v559 = vld [vmem:[%s549 + $0x24] sm:$0xf]
        %v560 = vld [vmem:[%s549 + $0x28] sm:$0xf]
        %v561 = vld [vmem:[%s549 + $0x2c] sm:$0xf]
        %v562 = vld [vmem:[%s549 + $0x30] sm:$0xf]
        %v563 = vld [vmem:[%s549 + $0x34] sm:$0xf]
        %v564 = vld [vmem:[%s549 + $0x38] sm:$0xf]
        %v565 = vld [vmem:[%s549 + $0x3c] sm:$0xf]
        %v566 = vld [vmem:[%s549 + $0x40] sm:$0xf]
        %v567 = vld [vmem:[%s549 + $0x44] sm:$0xf]
        %v568 = vld [vmem:[%s549 + $0x48] sm:$0xf]
        %v569 = vld [vmem:[%s549 + $0x4c] sm:$0xf]
        %v570 = vld [vmem:[%s549 + $0x50] sm:$0xf]
        %v571 = vld [vmem:[%s549 + $0x54] sm:$0xf]
        %v572 = vld [vmem:[%s549 + $0x58] sm:$0xf]
        %v573 = vld [vmem:[%s549 + $0x5c] sm:$0xf]
        %v574 = vld [vmem:[%s549 + $0x60] sm:$0xf]
        %v575 = vld [vmem:[%s549 + $0x64] sm:$0xf]
        %v576 = vld [vmem:[%s549 + $0x68] sm:$0xf]
        %v577 = vld [vmem:[%s549 + $0x6c] sm:$0xf]
        %v578 = vld [vmem:[%s549 + $0x70] sm:$0xf]
        %v579 = vld [vmem:[%s549 + $0x74] sm:$0xf]
        %v580 = vld [vmem:[%s549 + $0x78] sm:$0xf]
        %v581 = vld [vmem:[%s549 + $0x7c] sm:$0xf]
        %v582 = vld [vmem:[#allocation2] sm:$0xff]
        %v583 = vld [vmem:[#allocation2 + $0x8] sm:$0xff]
        %v584 = vld [vmem:[#allocation2 + $0x10] sm:$0xff]
        %v585 = vld [vmem:[#allocation2 + $0x18] sm:$0xff]
        %v586 = vld [vmem:[#allocation2 + $0x20] sm:$0xff]
        %v587 = vld [vmem:[#allocation2 + $0x28] sm:$0xff]
        %v588 = vld [vmem:[#allocation2 + $0x30] sm:$0xff]
        %v589 = vld [vmem:[#allocation2 + $0x38] sm:$0xff]
        %v590 = vld [vmem:[#allocation2 + $0x40] sm:$0xff]
        %v591 = vld [vmem:[#allocation2 + $0x48] sm:$0xff]
        %v592 = vld [vmem:[#allocation2 + $0x50] sm:$0xff]
        %v593 = vld [vmem:[#allocation2 + $0x58] sm:$0xff]
        %v594 = vld [vmem:[#allocation2 + $0x60] sm:$0xff]
        %v595 = vld [vmem:[#allocation2 + $0x68] sm:$0xff]
        %v596 = vld [vmem:[#allocation2 + $0x70] sm:$0xff]
        %v597 = vld [vmem:[#allocation2 + $0x78] sm:$0xff]
        %v598 = vld [vmem:[#allocation2 + $0x80] sm:$0xff]
        %v599 = vld [vmem:[#allocation2 + $0x88] sm:$0xff]
        %v600 = vld [vmem:[#allocation2 + $0x90] sm:$0xff]
        %v601 = vld [vmem:[#allocation2 + $0x98] sm:$0xff]
        %v602 = vld [vmem:[#allocation2 + $0xa0] sm:$0xff]
        %v603 = vld [vmem:[#allocation2 + $0xa8] sm:$0xff]
        %v604 = vld [vmem:[#allocation2 + $0xb0] sm:$0xff]
        %v605 = vld [vmem:[#allocation2 + $0xb8] sm:$0xff]
        %v606 = vld [vmem:[#allocation2 + $0xc0] sm:$0xff]
        %v607 = vld [vmem:[#allocation2 + $0xc8] sm:$0xff]
        %v608 = vld [vmem:[#allocation2 + $0xd0] sm:$0xff]
        %v609 = vld [vmem:[#allocation2 + $0xd8] sm:$0xff]
        %v610 = vld [vmem:[#allocation2 + $0xe0] sm:$0xff]
        %v611 = vld [vmem:[#allocation2 + $0xe8] sm:$0xff]
        %v612 = vld [vmem:[#allocation2 + $0xf0] sm:$0xff]
        %v613 = vld [vmem:[#allocation2 + $0xf8] sm:$0xff]
        %v646 = vunpack.c.l.b16 %v513
        %v647 = vunpack.c.h.b16 %v513
        %v648 = vunpack.c.l.b16 %v514
        %v649 = vunpack.c.h.b16 %v514
        %v650 = vunpack.c.l.b16 %v515
        %v651 = vunpack.c.h.b16 %v515
        %v652 = vunpack.c.l.b16 %v516
        %v653 = vunpack.c.h.b16 %v516
        %v654 = vunpack.c.l.b16 %v517
        %v655 = vunpack.c.h.b16 %v517
        %v656 = vunpack.c.l.b16 %v518
        %v657 = vunpack.c.h.b16 %v518
        %v658 = vunpack.c.l.b16 %v519
        %v659 = vunpack.c.h.b16 %v519
        %v660 = vunpack.c.l.b16 %v520
        %v661 = vunpack.c.h.b16 %v520
        %v662 = vunpack.c.l.b16 %v521
        %v663 = vunpack.c.h.b16 %v521
        %v664 = vunpack.c.l.b16 %v522
        %v665 = vunpack.c.h.b16 %v522
        %v666 = vunpack.c.l.b16 %v523
        %v667 = vunpack.c.h.b16 %v523
        %v668 = vunpack.c.l.b16 %v524
        %v669 = vunpack.c.h.b16 %v524
        %v670 = vunpack.c.l.b16 %v525
        %v671 = vunpack.c.h.b16 %v525
        %v672 = vunpack.c.l.b16 %v526
        %v673 = vunpack.c.h.b16 %v526
        %v674 = vunpack.c.l.b16 %v527
        %v675 = vunpack.c.h.b16 %v527
        %v676 = vunpack.c.l.b16 %v528
        %v677 = vunpack.c.h.b16 %v528
        %v678 = vunpack.c.l.b16 %v529
        %v679 = vunpack.c.h.b16 %v529
        %v680 = vunpack.c.l.b16 %v530
        %v681 = vunpack.c.h.b16 %v530
        %v682 = vunpack.c.l.b16 %v531
        %v683 = vunpack.c.h.b16 %v531
        %v684 = vunpack.c.l.b16 %v532
        %v685 = vunpack.c.h.b16 %v532
        %v686 = vunpack.c.l.b16 %v533
        %v687 = vunpack.c.h.b16 %v533
        %v688 = vunpack.c.l.b16 %v534
        %v689 = vunpack.c.h.b16 %v534
        %v690 = vunpack.c.l.b16 %v535
        %v691 = vunpack.c.h.b16 %v535
        %v692 = vunpack.c.l.b16 %v536
        %v693 = vunpack.c.h.b16 %v536
        %v694 = vunpack.c.l.b16 %v537
        %v695 = vunpack.c.h.b16 %v537
        %v696 = vunpack.c.l.b16 %v538
        %v697 = vunpack.c.h.b16 %v538
        %v698 = vunpack.c.l.b16 %v539
        %v699 = vunpack.c.h.b16 %v539
        %v700 = vunpack.c.l.b16 %v540
        %v701 = vunpack.c.h.b16 %v540
        %v702 = vunpack.c.l.b16 %v541
        %v703 = vunpack.c.h.b16 %v541
        %v704 = vunpack.c.l.b16 %v542
        %v705 = vunpack.c.h.b16 %v542
        %v706 = vunpack.c.l.b16 %v543
        %v707 = vunpack.c.h.b16 %v543
        %v708 = vunpack.c.l.b16 %v544
        %v709 = vunpack.c.h.b16 %v544
        %v710 = vpack.c.b16 %v648, %v646
        %v711 = vpack.c.b16 %v649, %v647
        %v712 = vpack.c.b16 %v652, %v650
        %v713 = vpack.c.b16 %v653, %v651
        %v714 = vpack.c.b16 %v656, %v654
        %v715 = vpack.c.b16 %v657, %v655
        %v716 = vpack.c.b16 %v660, %v658
        %v717 = vpack.c.b16 %v661, %v659
        %v718 = vpack.c.b16 %v664, %v662
        %v719 = vpack.c.b16 %v665, %v663
        %v720 = vpack.c.b16 %v668, %v666
        %v721 = vpack.c.b16 %v669, %v667
        %v722 = vpack.c.b16 %v672, %v670
        %v723 = vpack.c.b16 %v673, %v671
        %v724 = vpack.c.b16 %v676, %v674
        %v725 = vpack.c.b16 %v677, %v675
        %v726 = vpack.c.b16 %v680, %v678
        %v727 = vpack.c.b16 %v681, %v679
        %v728 = vpack.c.b16 %v684, %v682
        %v729 = vpack.c.b16 %v685, %v683
        %v730 = vpack.c.b16 %v688, %v686
        %v731 = vpack.c.b16 %v689, %v687
        %v732 = vpack.c.b16 %v692, %v690
        %v733 = vpack.c.b16 %v693, %v691
        %v734 = vpack.c.b16 %v696, %v694
        %v735 = vpack.c.b16 %v697, %v695
        %v736 = vpack.c.b16 %v700, %v698
        %v737 = vpack.c.b16 %v701, %v699
        %v738 = vpack.c.b16 %v704, %v702
        %v739 = vpack.c.b16 %v705, %v703
        %v740 = vpack.c.b16 %v708, %v706
        %v741 = vpack.c.b16 %v709, %v707
        %v806 = vunpack.c.l.b16 %v550
        %v807 = vunpack.c.l.b16 %v551
        %v808 = vunpack.c.l.b16 %v552
        %v809 = vunpack.c.l.b16 %v553
        %v810 = vunpack.c.l.b16 %v554
        %v811 = vunpack.c.l.b16 %v555
        %v812 = vunpack.c.l.b16 %v556
        %v813 = vunpack.c.l.b16 %v557
        %v814 = vunpack.c.l.b16 %v558
        %v815 = vunpack.c.l.b16 %v559
        %v816 = vunpack.c.l.b16 %v560
        %v817 = vunpack.c.l.b16 %v561
        %v818 = vunpack.c.l.b16 %v562
        %v819 = vunpack.c.l.b16 %v563
        %v820 = vunpack.c.l.b16 %v564
        %v821 = vunpack.c.l.b16 %v565
        %v822 = vunpack.c.l.b16 %v566
        %v823 = vunpack.c.l.b16 %v567
        %v824 = vunpack.c.l.b16 %v568
        %v825 = vunpack.c.l.b16 %v569
        %v826 = vunpack.c.l.b16 %v570
        %v827 = vunpack.c.l.b16 %v571
        %v828 = vunpack.c.l.b16 %v572
        %v829 = vunpack.c.l.b16 %v573
        %v830 = vunpack.c.l.b16 %v574
        %v831 = vunpack.c.l.b16 %v575
        %v832 = vunpack.c.l.b16 %v576
        %v833 = vunpack.c.l.b16 %v577
        %v834 = vunpack.c.l.b16 %v578
        %v835 = vunpack.c.l.b16 %v579
        %v836 = vunpack.c.l.b16 %v580
        %v837 = vunpack.c.l.b16 %v581
        %v838 = vpack.c.b16 %v807, %v806
        %v839 = vpack.c.b16 %v809, %v808
        %v840 = vpack.c.b16 %v811, %v810
        %v841 = vpack.c.b16 %v813, %v812
        %v842 = vpack.c.b16 %v815, %v814
        %v843 = vpack.c.b16 %v817, %v816
        %v844 = vpack.c.b16 %v819, %v818
        %v845 = vpack.c.b16 %v821, %v820
        %v846 = vpack.c.b16 %v823, %v822
        %v847 = vpack.c.b16 %v825, %v824
        %v848 = vpack.c.b16 %v827, %v826
        %v849 = vpack.c.b16 %v829, %v828
        %v850 = vpack.c.b16 %v831, %v830
        %v851 = vpack.c.b16 %v833, %v832
        %v852 = vpack.c.b16 %v835, %v834
        %v853 = vpack.c.b16 %v837, %v836
        %870 = vmatprep.subr.bf16.mxu0 0
        %871 = vmatpush1.bf16.msra.mxu0 %v845
        %872 = vmatprep.subr.bf16.mxu0 0
        %873 = vmatpush1.bf16.msra.mxu0 %v844
        %874 = vmatprep.subr.bf16.mxu0 0
        %875 = vmatpush1.bf16.msra.mxu0 %v843
        %876 = vmatprep.subr.bf16.mxu0 0
        %877 = vmatpush1.bf16.msra.mxu0 %v842
        %878 = vmatprep.subr.bf16.mxu0 0
        %879 = vmatpush1.bf16.msra.mxu0 %v841
        %880 = vmatprep.subr.bf16.mxu0 0
        %881 = vmatpush1.bf16.msra.mxu0 %v840
        %882 = vmatprep.subr.bf16.mxu0 0
        %883 = vmatpush1.bf16.msra.mxu0 %v839
        %884 = vmatprep.subr.bf16.mxu0 0
        %885 = vmatpush1.bf16.msra.mxu0 %v838
        %886 = vmatprep.subr.bf16.mxu0 0
        %887 = vmatpush2.bf16.msra.mxu0 %v853
        %888 = vmatprep.subr.bf16.mxu0 0
        %889 = vmatpush2.bf16.msra.mxu0 %v852
        %890 = vmatprep.subr.bf16.mxu0 0
        %891 = vmatpush2.bf16.msra.mxu0 %v851
        %892 = vmatprep.subr.bf16.mxu0 0
        %893 = vmatpush2.bf16.msra.mxu0 %v850
        %894 = vmatprep.subr.bf16.mxu0 0
        %895 = vmatpush2.bf16.msra.mxu0 %v849
        %896 = vmatprep.subr.bf16.mxu0 0
        %897 = vmatpush2.bf16.msra.mxu0 %v848
        %898 = vmatprep.subr.bf16.mxu0 0
        %899 = vmatpush2.bf16.msra.mxu0 %v847
        %900 = vmatprep.subr.bf16.mxu0 0
        %901 = vmatpush2.bf16.msra.mxu0 %v846
        %902 = vmatprep.mubr.bf16.mxu0 %v711
        %903 = vmatmul.mubr.bf16.gmra.mxu0 %v710
        %v904 = vpop.f32.mrf.mxu0
        %v905 = vadd.f32 0.0, %v904
        %v906 = vpop.f32.mrf.mxu0
        %v907 = vpop.f32.mrf.mxu0
        %v908 = vadd.f32 0.0, %v907
        %v909 = vpop.f32.mrf.mxu0
        %910 = vmatprep.mubr.bf16.mxu0 %v713
        %911 = vmatmul.mubr.bf16.gmra.mxu0 %v712
        %v912 = vpop.f32.mrf.mxu0
        %v913 = vadd.f32 0.0, %v912
        %v914 = vpop.f32.mrf.mxu0
        %v915 = vpop.f32.mrf.mxu0
        %v916 = vadd.f32 0.0, %v915
        %v917 = vpop.f32.mrf.mxu0
        %918 = vmatprep.mubr.bf16.mxu0 %v715
        %919 = vmatmul.mubr.bf16.gmra.mxu0 %v714
        %v920 = vpop.f32.mrf.mxu0
        %v921 = vadd.f32 0.0, %v920
        %v922 = vpop.f32.mrf.mxu0
        %v923 = vpop.f32.mrf.mxu0
        %v924 = vadd.f32 0.0, %v923
        %v925 = vpop.f32.mrf.mxu0
        %926 = vmatprep.mubr.bf16.mxu0 %v717
        %927 = vmatmul.mubr.bf16.gmra.mxu0 %v716
        %v928 = vpop.f32.mrf.mxu0
        %v929 = vadd.f32 0.0, %v928
        %v930 = vpop.f32.mrf.mxu0
        %v931 = vpop.f32.mrf.mxu0
        %v932 = vadd.f32 0.0, %v931
        %v933 = vpop.f32.mrf.mxu0
        %934 = vmatprep.mubr.bf16.mxu0 %v719
        %935 = vmatmul.mubr.bf16.gmra.mxu0 %v718
        %v936 = vpop.f32.mrf.mxu0
        %v937 = vadd.f32 0.0, %v936
        %v938 = vpop.f32.mrf.mxu0
        %v939 = vpop.f32.mrf.mxu0
        %v940 = vadd.f32 0.0, %v939
        %v941 = vpop.f32.mrf.mxu0
        %942 = vmatprep.mubr.bf16.mxu0 %v721
        %943 = vmatmul.mubr.bf16.gmra.mxu0 %v720
        %v944 = vpop.f32.mrf.mxu0
        %v945 = vadd.f32 0.0, %v944
        %v946 = vpop.f32.mrf.mxu0
        %v947 = vpop.f32.mrf.mxu0
        %v948 = vadd.f32 0.0, %v947
        %v949 = vpop.f32.mrf.mxu0
        %950 = vmatprep.mubr.bf16.mxu0 %v723
        %951 = vmatmul.mubr.bf16.gmra.mxu0 %v722
        %v952 = vpop.f32.mrf.mxu0
        %v953 = vadd.f32 0.0, %v952
        %v954 = vpop.f32.mrf.mxu0
        %v955 = vpop.f32.mrf.mxu0
        %v956 = vadd.f32 0.0, %v955
        %v957 = vpop.f32.mrf.mxu0
        %958 = vmatprep.mubr.bf16.mxu0 %v725
        %959 = vmatmul.mubr.bf16.gmra.mxu0 %v724
        %v960 = vpop.f32.mrf.mxu0
        %v961 = vadd.f32 0.0, %v960
        %v962 = vpop.f32.mrf.mxu0
        %v963 = vpop.f32.mrf.mxu0
        %v964 = vadd.f32 0.0, %v963
        %v965 = vpop.f32.mrf.mxu0
        %966 = vmatprep.mubr.bf16.mxu0 %v727
        %967 = vmatmul.mubr.bf16.gmra.mxu0 %v726
        %v968 = vpop.f32.mrf.mxu0
        %v969 = vadd.f32 0.0, %v968
        %v970 = vpop.f32.mrf.mxu0
        %v971 = vpop.f32.mrf.mxu0
        %v972 = vadd.f32 0.0, %v971
        %v973 = vpop.f32.mrf.mxu0
        %974 = vmatprep.mubr.bf16.mxu0 %v729
        %975 = vmatmul.mubr.bf16.gmra.mxu0 %v728
        %v976 = vpop.f32.mrf.mxu0
        %v977 = vadd.f32 0.0, %v976
        %v978 = vpop.f32.mrf.mxu0
        %v979 = vpop.f32.mrf.mxu0
        %v980 = vadd.f32 0.0, %v979
        %v981 = vpop.f32.mrf.mxu0
        %982 = vmatprep.mubr.bf16.mxu0 %v731
        %983 = vmatmul.mubr.bf16.gmra.mxu0 %v730
        %v984 = vpop.f32.mrf.mxu0
        %v985 = vadd.f32 0.0, %v984
        %v986 = vpop.f32.mrf.mxu0
        %v987 = vpop.f32.mrf.mxu0
        %v988 = vadd.f32 0.0, %v987
        %v989 = vpop.f32.mrf.mxu0
        %990 = vmatprep.mubr.bf16.mxu0 %v733
        %991 = vmatmul.mubr.bf16.gmra.mxu0 %v732
        %v992 = vpop.f32.mrf.mxu0
        %v993 = vadd.f32 0.0, %v992
        %v994 = vpop.f32.mrf.mxu0
        %v995 = vpop.f32.mrf.mxu0
        %v996 = vadd.f32 0.0, %v995
        %v997 = vpop.f32.mrf.mxu0
        %998 = vmatprep.mubr.bf16.mxu0 %v735
        %999 = vmatmul.mubr.bf16.gmra.mxu0 %v734
        %v1000 = vpop.f32.mrf.mxu0
        %v1001 = vadd.f32 0.0, %v1000
        %v1002 = vpop.f32.mrf.mxu0
        %v1003 = vpop.f32.mrf.mxu0
        %v1004 = vadd.f32 0.0, %v1003
        %v1005 = vpop.f32.mrf.mxu0
        %1006 = vmatprep.mubr.bf16.mxu0 %v737
        %1007 = vmatmul.mubr.bf16.gmra.mxu0 %v736
        %v1008 = vpop.f32.mrf.mxu0
        %v1009 = vadd.f32 0.0, %v1008
        %v1010 = vpop.f32.mrf.mxu0
        %v1011 = vpop.f32.mrf.mxu0
        %v1012 = vadd.f32 0.0, %v1011
        %v1013 = vpop.f32.mrf.mxu0
        %1014 = vmatprep.mubr.bf16.mxu0 %v739
        %1015 = vmatmul.mubr.bf16.gmra.mxu0 %v738
        %v1016 = vpop.f32.mrf.mxu0
        %v1017 = vadd.f32 0.0, %v1016
        %v1018 = vpop.f32.mrf.mxu0
        %v1019 = vpop.f32.mrf.mxu0
        %v1020 = vadd.f32 0.0, %v1019
        %v1021 = vpop.f32.mrf.mxu0
        %1022 = vmatprep.mubr.bf16.mxu0 %v741
        %1023 = vmatmul.mubr.bf16.gmra.mxu0 %v740
        %v1024 = vpop.f32.mrf.mxu0
        %v1025 = vadd.f32 0.0, %v1024
        %v1026 = vpop.f32.mrf.mxu0
        %v1027 = vpop.f32.mrf.mxu0
        %v1028 = vadd.f32 0.0, %v1027
        %v1029 = vpop.f32.mrf.mxu0
        %1030 = vdwg.mxu0
        %v1031 = vadd.f32 %v582, %v905
        %v1032 = vadd.f32 %v583, %v908
        %v1033 = vadd.f32 %v584, %v913
        %v1034 = vadd.f32 %v585, %v916
        %v1035 = vadd.f32 %v586, %v921
        %v1036 = vadd.f32 %v587, %v924
        %v1037 = vadd.f32 %v588, %v929
        %v1038 = vadd.f32 %v589, %v932
        %v1039 = vadd.f32 %v590, %v937
        %v1040 = vadd.f32 %v591, %v940
        %v1041 = vadd.f32 %v592, %v945
        %v1042 = vadd.f32 %v593, %v948
        %v1043 = vadd.f32 %v594, %v953
        %v1044 = vadd.f32 %v595, %v956
        %v1045 = vadd.f32 %v596, %v961
        %v1046 = vadd.f32 %v597, %v964
        %v1047 = vadd.f32 %v598, %v969
        %v1048 = vadd.f32 %v599, %v972
        %v1049 = vadd.f32 %v600, %v977
        %v1050 = vadd.f32 %v601, %v980
        %v1051 = vadd.f32 %v602, %v985
        %v1052 = vadd.f32 %v603, %v988
        %v1053 = vadd.f32 %v604, %v993
        %v1054 = vadd.f32 %v605, %v996
        %v1055 = vadd.f32 %v606, %v1001
        %v1056 = vadd.f32 %v607, %v1004
        %v1057 = vadd.f32 %v608, %v1009
        %v1058 = vadd.f32 %v609, %v1012
        %v1059 = vadd.f32 %v610, %v1017
        %v1060 = vadd.f32 %v611, %v1020
        %v1061 = vadd.f32 %v612, %v1025
        %v1062 = vadd.f32 %v613, %v1028
        %1063 = vst [vmem:[#allocation2] sm:$0xff] %v1031
        %1064 = vst [vmem:[#allocation2 + $0x8] sm:$0xff] %v1032
        %1065 = vst [vmem:[#allocation2 + $0x10] sm:$0xff] %v1033
        %1066 = vst [vmem:[#allocation2 + $0x18] sm:$0xff] %v1034
        %1067 = vst [vmem:[#allocation2 + $0x20] sm:$0xff] %v1035
        %1068 = vst [vmem:[#allocation2 + $0x28] sm:$0xff] %v1036
        %1069 = vst [vmem:[#allocation2 + $0x30] sm:$0xff] %v1037
        %1070 = vst [vmem:[#allocation2 + $0x38] sm:$0xff] %v1038
        %1071 = vst [vmem:[#allocation2 + $0x40] sm:$0xff] %v1039
        %1072 = vst [vmem:[#allocation2 + $0x48] sm:$0xff] %v1040
        %1073 = vst [vmem:[#allocation2 + $0x50] sm:$0xff] %v1041
        %1074 = vst [vmem:[#allocation2 + $0x58] sm:$0xff] %v1042
        %1075 = vst [vmem:[#allocation2 + $0x60] sm:$0xff] %v1043
        %1076 = vst [vmem:[#allocation2 + $0x68] sm:$0xff] %v1044
        %1077 = vst [vmem:[#allocation2 + $0x70] sm:$0xff] %v1045
        %1078 = vst [vmem:[#allocation2 + $0x78] sm:$0xff] %v1046
        %1079 = vst [vmem:[#allocation2 + $0x80] sm:$0xff] %v1047
        %1080 = vst [vmem:[#allocation2 + $0x88] sm:$0xff] %v1048
        %1081 = vst [vmem:[#allocation2 + $0x90] sm:$0xff] %v1049
        %1082 = vst [vmem:[#allocation2 + $0x98] sm:$0xff] %v1050
        %1083 = vst [vmem:[#allocation2 + $0xa0] sm:$0xff] %v1051
        %1084 = vst [vmem:[#allocation2 + $0xa8] sm:$0xff] %v1052
        %1085 = vst [vmem:[#allocation2 + $0xb0] sm:$0xff] %v1053
        %1086 = vst [vmem:[#allocation2 + $0xb8] sm:$0xff] %v1054
        %1087 = vst [vmem:[#allocation2 + $0xc0] sm:$0xff] %v1055
        %1088 = vst [vmem:[#allocation2 + $0xc8] sm:$0xff] %v1056
        %1089 = vst [vmem:[#allocation2 + $0xd0] sm:$0xff] %v1057
        %1090 = vst [vmem:[#allocation2 + $0xd8] sm:$0xff] %v1058
        %1091 = vst [vmem:[#allocation2 + $0xe0] sm:$0xff] %v1059
        %1092 = vst [vmem:[#allocation2 + $0xe8] sm:$0xff] %v1060
        %1093 = vst [vmem:[#allocation2 + $0xf0] sm:$0xff] %v1061
        %1094 = vst [vmem:[#allocation2 + $0xf8] sm:$0xff] %v1062
        %p1095 = scmp.eq.s32.totalorder %s22, 1
        // Predicated region
        $region87: #{graphsage_forward.5} parent=77 // pred_check
          %p1096 = pneg %p1095
        $region88: #{graphsage_forward.5} parent=77 // pred_check_branch
          %1098 = sbr.rel (%p1096) target = $region90
        $region89: #{graphsage_forward.5} parent=77 // pred_region
          %v1099 = vld [vmem:[#allocation2] sm:$0xff]
          %v1100 = vld [vmem:[#allocation2 + $0x8] sm:$0xff]
          %v1101 = vld [vmem:[#allocation2 + $0x10] sm:$0xff]
          %v1102 = vld [vmem:[#allocation2 + $0x18] sm:$0xff]
          %v1103 = vld [vmem:[#allocation2 + $0x20] sm:$0xff]
          %v1104 = vld [vmem:[#allocation2 + $0x28] sm:$0xff]
          %v1105 = vld [vmem:[#allocation2 + $0x30] sm:$0xff]
          %v1106 = vld [vmem:[#allocation2 + $0x38] sm:$0xff]
          %v1107 = vld [vmem:[#allocation2 + $0x40] sm:$0xff]
          %v1108 = vld [vmem:[#allocation2 + $0x48] sm:$0xff]
          %v1109 = vld [vmem:[#allocation2 + $0x50] sm:$0xff]
          %v1110 = vld [vmem:[#allocation2 + $0x58] sm:$0xff]
          %v1111 = vld [vmem:[#allocation2 + $0x60] sm:$0xff]
          %v1112 = vld [vmem:[#allocation2 + $0x68] sm:$0xff]
          %v1113 = vld [vmem:[#allocation2 + $0x70] sm:$0xff]
          %v1114 = vld [vmem:[#allocation2 + $0x78] sm:$0xff]
          %v1115 = vld [vmem:[#allocation2 + $0x80] sm:$0xff]
          %v1116 = vld [vmem:[#allocation2 + $0x88] sm:$0xff]
          %v1117 = vld [vmem:[#allocation2 + $0x90] sm:$0xff]
          %v1118 = vld [vmem:[#allocation2 + $0x98] sm:$0xff]
          %v1119 = vld [vmem:[#allocation2 + $0xa0] sm:$0xff]
          %v1120 = vld [vmem:[#allocation2 + $0xa8] sm:$0xff]
          %v1121 = vld [vmem:[#allocation2 + $0xb0] sm:$0xff]
          %v1122 = vld [vmem:[#allocation2 + $0xb8] sm:$0xff]
          %v1123 = vld [vmem:[#allocation2 + $0xc0] sm:$0xff]
          %v1124 = vld [vmem:[#allocation2 + $0xc8] sm:$0xff]
          %v1125 = vld [vmem:[#allocation2 + $0xd0] sm:$0xff]
          %v1126 = vld [vmem:[#allocation2 + $0xd8] sm:$0xff]
          %v1127 = vld [vmem:[#allocation2 + $0xe0] sm:$0xff]
          %v1128 = vld [vmem:[#allocation2 + $0xe8] sm:$0xff]
          %v1129 = vld [vmem:[#allocation2 + $0xf0] sm:$0xff]
          %v1130 = vld [vmem:[#allocation2 + $0xf8] sm:$0xff]
          %v1131 = vld [vmem:[%s460] sm:$0xff]
          %v1132 = vld [vmem:[%s460 + $0x8] sm:$0xff]
          %v1133 = vld [vmem:[%s460 + $0x10] sm:$0xff]
          %v1134 = vld [vmem:[%s460 + $0x18] sm:$0xff]
          %v1135 = vld [vmem:[%s460 + $0x20] sm:$0xff]
          %v1136 = vld [vmem:[%s460 + $0x28] sm:$0xff]
          %v1137 = vld [vmem:[%s460 + $0x30] sm:$0xff]
          %v1138 = vld [vmem:[%s460 + $0x38] sm:$0xff]
          %v1139 = vld [vmem:[%s460 + $0x40] sm:$0xff]
          %v1140 = vld [vmem:[%s460 + $0x48] sm:$0xff]
          %v1141 = vld [vmem:[%s460 + $0x50] sm:$0xff]
          %v1142 = vld [vmem:[%s460 + $0x58] sm:$0xff]
          %v1143 = vld [vmem:[%s460 + $0x60] sm:$0xff]
          %v1144 = vld [vmem:[%s460 + $0x68] sm:$0xff]
          %v1145 = vld [vmem:[%s460 + $0x70] sm:$0xff]
          %v1146 = vld [vmem:[%s460 + $0x78] sm:$0xff]
          %v1147 = vld [vmem:[%s460 + $0x80] sm:$0xff]
          %v1148 = vld [vmem:[%s460 + $0x88] sm:$0xff]
          %v1149 = vld [vmem:[%s460 + $0x90] sm:$0xff]
          %v1150 = vld [vmem:[%s460 + $0x98] sm:$0xff]
          %v1151 = vld [vmem:[%s460 + $0xa0] sm:$0xff]
          %v1152 = vld [vmem:[%s460 + $0xa8] sm:$0xff]
          %v1153 = vld [vmem:[%s460 + $0xb0] sm:$0xff]
          %v1154 = vld [vmem:[%s460 + $0xb8] sm:$0xff]
          %v1155 = vld [vmem:[%s460 + $0xc0] sm:$0xff]
          %v1156 = vld [vmem:[%s460 + $0xc8] sm:$0xff]
          %v1157 = vld [vmem:[%s460 + $0xd0] sm:$0xff]
          %v1158 = vld [vmem:[%s460 + $0xd8] sm:$0xff]
          %v1159 = vld [vmem:[%s460 + $0xe0] sm:$0xff]
          %v1160 = vld [vmem:[%s460 + $0xe8] sm:$0xff]
          %v1161 = vld [vmem:[%s460 + $0xf0] sm:$0xff]
          %v1162 = vld [vmem:[%s460 + $0xf8] sm:$0xff]
          %1164 = vset.pattern.permute.xlu0 0
          %1165 = vperm.xlu0 %1164, %v1131
          %v1166 = vpop.permute.xlu0 %1165
          %1169 = vset.pattern.permute.xlu0 0
          %1170 = vperm.xlu0 %1169, %v1132
          %v1171 = vpop.permute.xlu0 %1170
          %1174 = vset.pattern.permute.xlu0 0
          %1175 = vperm.xlu0 %1174, %v1133
          %v1176 = vpop.permute.xlu0 %1175
          %1179 = vset.pattern.permute.xlu0 0
          %1180 = vperm.xlu0 %1179, %v1134
          %v1181 = vpop.permute.xlu0 %1180
          %1184 = vset.pattern.permute.xlu0 0
          %1185 = vperm.xlu0 %1184, %v1135
          %v1186 = vpop.permute.xlu0 %1185
          %1189 = vset.pattern.permute.xlu0 0
          %1190 = vperm.xlu0 %1189, %v1136
          %v1191 = vpop.permute.xlu0 %1190
          %1194 = vset.pattern.permute.xlu0 0
          %1195 = vperm.xlu0 %1194, %v1137
          %v1196 = vpop.permute.xlu0 %1195
          %1199 = vset.pattern.permute.xlu0 0
          %1200 = vperm.xlu0 %1199, %v1138
          %v1201 = vpop.permute.xlu0 %1200
          %1204 = vset.pattern.permute.xlu0 0
          %1205 = vperm.xlu0 %1204, %v1139
          %v1206 = vpop.permute.xlu0 %1205
          %1209 = vset.pattern.permute.xlu0 0
          %1210 = vperm.xlu0 %1209, %v1140
          %v1211 = vpop.permute.xlu0 %1210
          %1214 = vset.pattern.permute.xlu0 0
          %1215 = vperm.xlu0 %1214, %v1141
          %v1216 = vpop.permute.xlu0 %1215
          %1219 = vset.pattern.permute.xlu0 0
          %1220 = vperm.xlu0 %1219, %v1142
          %v1221 = vpop.permute.xlu0 %1220
          %1224 = vset.pattern.permute.xlu0 0
          %1225 = vperm.xlu0 %1224, %v1143
          %v1226 = vpop.permute.xlu0 %1225
          %1229 = vset.pattern.permute.xlu0 0
          %1230 = vperm.xlu0 %1229, %v1144
          %v1231 = vpop.permute.xlu0 %1230
          %1234 = vset.pattern.permute.xlu0 0
          %1235 = vperm.xlu0 %1234, %v1145
          %v1236 = vpop.permute.xlu0 %1235
          %1239 = vset.pattern.permute.xlu0 0
          %1240 = vperm.xlu0 %1239, %v1146
          %v1241 = vpop.permute.xlu0 %1240
          %1244 = vset.pattern.permute.xlu0 0
          %1245 = vperm.xlu0 %1244, %v1147
          %v1246 = vpop.permute.xlu0 %1245
          %1249 = vset.pattern.permute.xlu0 0
          %1250 = vperm.xlu0 %1249, %v1148
          %v1251 = vpop.permute.xlu0 %1250
          %1254 = vset.pattern.permute.xlu0 0
          %1255 = vperm.xlu0 %1254, %v1149
          %v1256 = vpop.permute.xlu0 %1255
          %1259 = vset.pattern.permute.xlu0 0
          %1260 = vperm.xlu0 %1259, %v1150
          %v1261 = vpop.permute.xlu0 %1260
          %1264 = vset.pattern.permute.xlu0 0
          %1265 = vperm.xlu0 %1264, %v1151
          %v1266 = vpop.permute.xlu0 %1265
          %1269 = vset.pattern.permute.xlu0 0
          %1270 = vperm.xlu0 %1269, %v1152
          %v1271 = vpop.permute.xlu0 %1270
          %1274 = vset.pattern.permute.xlu0 0
          %1275 = vperm.xlu0 %1274, %v1153
          %v1276 = vpop.permute.xlu0 %1275
          %1279 = vset.pattern.permute.xlu0 0
          %1280 = vperm.xlu0 %1279, %v1154
          %v1281 = vpop.permute.xlu0 %1280
          %1284 = vset.pattern.permute.xlu0 0
          %1285 = vperm.xlu0 %1284, %v1155
          %v1286 = vpop.permute.xlu0 %1285
          %1289 = vset.pattern.permute.xlu0 0
          %1290 = vperm.xlu0 %1289, %v1156
          %v1291 = vpop.permute.xlu0 %1290
          %1294 = vset.pattern.permute.xlu0 0
          %1295 = vperm.xlu0 %1294, %v1157
          %v1296 = vpop.permute.xlu0 %1295
          %1299 = vset.pattern.permute.xlu0 0
          %1300 = vperm.xlu0 %1299, %v1158
          %v1301 = vpop.permute.xlu0 %1300
          %1304 = vset.pattern.permute.xlu0 0
          %1305 = vperm.xlu0 %1304, %v1159
          %v1306 = vpop.permute.xlu0 %1305
          %1309 = vset.pattern.permute.xlu0 0
          %1310 = vperm.xlu0 %1309, %v1160
          %v1311 = vpop.permute.xlu0 %1310
          %1314 = vset.pattern.permute.xlu0 0
          %1315 = vperm.xlu0 %1314, %v1161
          %v1316 = vpop.permute.xlu0 %1315
          %1319 = vset.pattern.permute.xlu0 0
          %1320 = vperm.xlu0 %1319, %v1162
          %v1321 = vpop.permute.xlu0 %1320
          %v1323 = vmul.f32 %v1099, %v1166
          %v1324 = vmul.f32 %v1100, %v1171
          %v1325 = vmul.f32 %v1101, %v1176
          %v1326 = vmul.f32 %v1102, %v1181
          %v1327 = vmul.f32 %v1103, %v1186
          %v1328 = vmul.f32 %v1104, %v1191
          %v1329 = vmul.f32 %v1105, %v1196
          %v1330 = vmul.f32 %v1106, %v1201
          %v1331 = vmul.f32 %v1107, %v1206
          %v1332 = vmul.f32 %v1108, %v1211
          %v1333 = vmul.f32 %v1109, %v1216
          %v1334 = vmul.f32 %v1110, %v1221
          %v1335 = vmul.f32 %v1111, %v1226
          %v1336 = vmul.f32 %v1112, %v1231
          %v1337 = vmul.f32 %v1113, %v1236
          %v1338 = vmul.f32 %v1114, %v1241
          %v1339 = vmul.f32 %v1115, %v1246
          %v1340 = vmul.f32 %v1116, %v1251
          %v1341 = vmul.f32 %v1117, %v1256
          %v1342 = vmul.f32 %v1118, %v1261
          %v1343 = vmul.f32 %v1119, %v1266
          %v1344 = vmul.f32 %v1120, %v1271
          %v1345 = vmul.f32 %v1121, %v1276
          %v1346 = vmul.f32 %v1122, %v1281
          %v1347 = vmul.f32 %v1123, %v1286
          %v1348 = vmul.f32 %v1124, %v1291
          %v1349 = vmul.f32 %v1125, %v1296
          %v1350 = vmul.f32 %v1126, %v1301
          %v1351 = vmul.f32 %v1127, %v1306
          %v1352 = vmul.f32 %v1128, %v1311
          %v1353 = vmul.f32 %v1129, %v1316
          %v1354 = vmul.f32 %v1130, %v1321
          %v1355 = vld [vmem:[%s468] sm:$0xf]
          %v1356 = vld [vmem:[%s468 + $0x4] sm:$0xf]
          %v1357 = vld [vmem:[%s468 + $0x8] sm:$0xf]
          %v1358 = vld [vmem:[%s468 + $0xc] sm:$0xf]
          %v1359 = vld [vmem:[%s468 + $0x10] sm:$0xf]
          %v1360 = vld [vmem:[%s468 + $0x14] sm:$0xf]
          %v1361 = vld [vmem:[%s468 + $0x18] sm:$0xf]
          %v1362 = vld [vmem:[%s468 + $0x1c] sm:$0xf]
          %v1363 = vld [vmem:[%s468 + $0x20] sm:$0xf]
          %v1364 = vld [vmem:[%s468 + $0x24] sm:$0xf]
          %v1365 = vld [vmem:[%s468 + $0x28] sm:$0xf]
          %v1366 = vld [vmem:[%s468 + $0x2c] sm:$0xf]
          %v1367 = vld [vmem:[%s468 + $0x30] sm:$0xf]
          %v1368 = vld [vmem:[%s468 + $0x34] sm:$0xf]
          %v1369 = vld [vmem:[%s468 + $0x38] sm:$0xf]
          %v1370 = vld [vmem:[%s468 + $0x3c] sm:$0xf]
          %v1371 = vld [vmem:[%s468 + $0x40] sm:$0xf]
          %v1372 = vld [vmem:[%s468 + $0x44] sm:$0xf]
          %v1373 = vld [vmem:[%s468 + $0x48] sm:$0xf]
          %v1374 = vld [vmem:[%s468 + $0x4c] sm:$0xf]
          %v1375 = vld [vmem:[%s468 + $0x50] sm:$0xf]
          %v1376 = vld [vmem:[%s468 + $0x54] sm:$0xf]
          %v1377 = vld [vmem:[%s468 + $0x58] sm:$0xf]
          %v1378 = vld [vmem:[%s468 + $0x5c] sm:$0xf]
          %v1379 = vld [vmem:[%s468 + $0x60] sm:$0xf]
          %v1380 = vld [vmem:[%s468 + $0x64] sm:$0xf]
          %v1381 = vld [vmem:[%s468 + $0x68] sm:$0xf]
          %v1382 = vld [vmem:[%s468 + $0x6c] sm:$0xf]
          %v1383 = vld [vmem:[%s468 + $0x70] sm:$0xf]
          %v1384 = vld [vmem:[%s468 + $0x74] sm:$0xf]
          %v1385 = vld [vmem:[%s468 + $0x78] sm:$0xf]
          %v1386 = vld [vmem:[%s468 + $0x7c] sm:$0xf]
          %v1387 = vld [vmem:[%s4] sm:$0xf]
          %v1388 = vld [vmem:[%s4 + $0x4] sm:$0xf]
          %v1389 = vld [vmem:[%s4 + $0x8] sm:$0xf]
          %v1390 = vld [vmem:[%s4 + $0xc] sm:$0xf]
          %v1391 = vld [vmem:[%s4 + $0x10] sm:$0xf]
          %v1392 = vld [vmem:[%s4 + $0x14] sm:$0xf]
          %v1393 = vld [vmem:[%s4 + $0x18] sm:$0xf]
          %v1394 = vld [vmem:[%s4 + $0x1c] sm:$0xf]
          %v1395 = vld [vmem:[%s4 + $0x20] sm:$0xf]
          %v1396 = vld [vmem:[%s4 + $0x24] sm:$0xf]
          %v1397 = vld [vmem:[%s4 + $0x28] sm:$0xf]
          %v1398 = vld [vmem:[%s4 + $0x2c] sm:$0xf]
          %v1399 = vld [vmem:[%s4 + $0x30] sm:$0xf]
          %v1400 = vld [vmem:[%s4 + $0x34] sm:$0xf]
          %v1401 = vld [vmem:[%s4 + $0x38] sm:$0xf]
          %v1402 = vld [vmem:[%s4 + $0x3c] sm:$0xf]
          %v1435 = vunpack.c.l.b16 %v1355
          %v1436 = vunpack.c.l.b16 %v1356
          %v1437 = vunpack.c.l.b16 %v1357
          %v1438 = vunpack.c.l.b16 %v1358
          %v1439 = vunpack.c.l.b16 %v1359
          %v1440 = vunpack.c.l.b16 %v1360
          %v1441 = vunpack.c.l.b16 %v1361
          %v1442 = vunpack.c.l.b16 %v1362
          %v1443 = vunpack.c.l.b16 %v1363
          %v1444 = vunpack.c.l.b16 %v1364
          %v1445 = vunpack.c.l.b16 %v1365
          %v1446 = vunpack.c.l.b16 %v1366
          %v1447 = vunpack.c.l.b16 %v1367
          %v1448 = vunpack.c.l.b16 %v1368
          %v1449 = vunpack.c.l.b16 %v1369
          %v1450 = vunpack.c.l.b16 %v1370
          %v1451 = vunpack.c.l.b16 %v1371
          %v1452 = vunpack.c.l.b16 %v1372
          %v1453 = vunpack.c.l.b16 %v1373
          %v1454 = vunpack.c.l.b16 %v1374
          %v1455 = vunpack.c.l.b16 %v1375
          %v1456 = vunpack.c.l.b16 %v1376
          %v1457 = vunpack.c.l.b16 %v1377
          %v1458 = vunpack.c.l.b16 %v1378
          %v1459 = vunpack.c.l.b16 %v1379
          %v1460 = vunpack.c.l.b16 %v1380
          %v1461 = vunpack.c.l.b16 %v1381
          %v1462 = vunpack.c.l.b16 %v1382
          %v1463 = vunpack.c.l.b16 %v1383
          %v1464 = vunpack.c.l.b16 %v1384
          %v1465 = vunpack.c.l.b16 %v1385
          %v1466 = vunpack.c.l.b16 %v1386
          %v1467 = vpack.c.b16 %v1436, %v1435
          %v1468 = vpack.c.b16 %v1438, %v1437
          %v1469 = vpack.c.b16 %v1440, %v1439
          %v1470 = vpack.c.b16 %v1442, %v1441
          %v1471 = vpack.c.b16 %v1444, %v1443
          %v1472 = vpack.c.b16 %v1446, %v1445
          %v1473 = vpack.c.b16 %v1448, %v1447
          %v1474 = vpack.c.b16 %v1450, %v1449
          %v1475 = vpack.c.b16 %v1452, %v1451
          %v1476 = vpack.c.b16 %v1454, %v1453
          %v1477 = vpack.c.b16 %v1456, %v1455
          %v1478 = vpack.c.b16 %v1458, %v1457
          %v1479 = vpack.c.b16 %v1460, %v1459
          %v1480 = vpack.c.b16 %v1462, %v1461
          %v1481 = vpack.c.b16 %v1464, %v1463
          %v1482 = vpack.c.b16 %v1466, %v1465
          %v1515 = vunpack.c.l.b16 %v1387
          %v1516 = vunpack.c.l.b16 %v1388
          %v1517 = vunpack.c.l.b16 %v1389
          %v1518 = vunpack.c.l.b16 %v1390
          %v1519 = vunpack.c.l.b16 %v1391
          %v1520 = vunpack.c.l.b16 %v1392
          %v1521 = vunpack.c.l.b16 %v1393
          %v1522 = vunpack.c.l.b16 %v1394
          %v1523 = vunpack.c.l.b16 %v1395
          %v1524 = vunpack.c.l.b16 %v1396
          %v1525 = vunpack.c.l.b16 %v1397
          %v1526 = vunpack.c.l.b16 %v1398
          %v1527 = vunpack.c.l.b16 %v1399
          %v1528 = vunpack.c.l.b16 %v1400
          %v1529 = vunpack.c.l.b16 %v1401
          %v1530 = vunpack.c.l.b16 %v1402
          %v1531 = vpack.c.b16 %v1516, %v1515
          %v1532 = vpack.c.b16 %v1518, %v1517
          %v1533 = vpack.c.b16 %v1520, %v1519
          %v1534 = vpack.c.b16 %v1522, %v1521
          %v1535 = vpack.c.b16 %v1524, %v1523
          %v1536 = vpack.c.b16 %v1526, %v1525
          %v1537 = vpack.c.b16 %v1528, %v1527
          %v1538 = vpack.c.b16 %v1530, %v1529
          %1547 = vmatprep.subr.bf16.mxu0 0
          %1548 = vmatpush1.bf16.msra.mxu0 %v1538
          %1549 = vmatprep.subr.bf16.mxu0 0
          %1550 = vmatpush1.bf16.msra.mxu0 %v1537
          %1551 = vmatprep.subr.bf16.mxu0 0
          %1552 = vmatpush1.bf16.msra.mxu0 %v1536
          %1553 = vmatprep.subr.bf16.mxu0 0
          %1554 = vmatpush1.bf16.msra.mxu0 %v1535
          %1555 = vmatprep.subr.bf16.mxu0 0
          %1556 = vmatpush1.bf16.msra.mxu0 %v1534
          %1557 = vmatprep.subr.bf16.mxu0 0
          %1558 = vmatpush1.bf16.msra.mxu0 %v1533
          %1559 = vmatprep.subr.bf16.mxu0 0
          %1560 = vmatpush1.bf16.msra.mxu0 %v1532
          %1561 = vmatprep.subr.bf16.mxu0 0
          %1562 = vmatpush1.bf16.msra.mxu0 %v1531
          %1563 = vmatprep.subr.bf16.mxu0 0
          %1564 = vmatpush2.bf16.msra.mxu0 0
          %1565 = vmatprep.subr.bf16.mxu0 0
          %1566 = vmatpush2.bf16.msra.mxu0 0
          %1567 = vmatprep.subr.bf16.mxu0 0
          %1568 = vmatpush2.bf16.msra.mxu0 0
          %1569 = vmatprep.subr.bf16.mxu0 0
          %1570 = vmatpush2.bf16.msra.mxu0 0
          %1571 = vmatprep.subr.bf16.mxu0 0
          %1572 = vmatpush2.bf16.msra.mxu0 0
          %1573 = vmatprep.subr.bf16.mxu0 0
          %1574 = vmatpush2.bf16.msra.mxu0 0
          %1575 = vmatprep.subr.bf16.mxu0 0
          %1576 = vmatpush2.bf16.msra.mxu0 0
          %1577 = vmatprep.subr.bf16.mxu0 0
          %1578 = vmatpush2.bf16.msra.mxu0 0
          %1579 = vmatprep.mubr.bf16.mxu0 0
          %1580 = vmatmul.mubr.bf16.gmra.mxu0 %v1467
          %v1581 = vpop.f32.mrf.mxu0
          %v1582 = vadd.f32 %v1323, %v1581
          %v1583 = vpop.f32.mrf.mxu0
          %v1584 = vpop.f32.mrf.mxu0
          %v1585 = vadd.f32 %v1324, %v1584
          %v1586 = vpop.f32.mrf.mxu0
          %1587 = vmatprep.mubr.bf16.mxu0 0
          %1588 = vmatmul.mubr.bf16.gmra.mxu0 %v1468
          %v1589 = vpop.f32.mrf.mxu0
          %v1590 = vadd.f32 %v1325, %v1589
          %v1591 = vpop.f32.mrf.mxu0
          %v1592 = vpop.f32.mrf.mxu0
          %v1593 = vadd.f32 %v1326, %v1592
          %v1594 = vpop.f32.mrf.mxu0
          %1595 = vmatprep.mubr.bf16.mxu0 0
          %1596 = vmatmul.mubr.bf16.gmra.mxu0 %v1469
          %v1597 = vpop.f32.mrf.mxu0
          %v1598 = vadd.f32 %v1327, %v1597
          %v1599 = vpop.f32.mrf.mxu0
          %v1600 = vpop.f32.mrf.mxu0
          %v1601 = vadd.f32 %v1328, %v1600
          %v1602 = vpop.f32.mrf.mxu0
          %1603 = vmatprep.mubr.bf16.mxu0 0
          %1604 = vmatmul.mubr.bf16.gmra.mxu0 %v1470
          %v1605 = vpop.f32.mrf.mxu0
          %v1606 = vadd.f32 %v1329, %v1605
          %v1607 = vpop.f32.mrf.mxu0
          %v1608 = vpop.f32.mrf.mxu0
          %v1609 = vadd.f32 %v1330, %v1608
          %v1610 = vpop.f32.mrf.mxu0
          %1611 = vmatprep.mubr.bf16.mxu0 0
          %1612 = vmatmul.mubr.bf16.gmra.mxu0 %v1471
          %v1613 = vpop.f32.mrf.mxu0
          %v1614 = vadd.f32 %v1331, %v1613
          %v1615 = vpop.f32.mrf.mxu0
          %v1616 = vpop.f32.mrf.mxu0
          %v1617 = vadd.f32 %v1332, %v1616
          %v1618 = vpop.f32.mrf.mxu0
          %1619 = vmatprep.mubr.bf16.mxu0 0
          %1620 = vmatmul.mubr.bf16.gmra.mxu0 %v1472
          %v1621 = vpop.f32.mrf.mxu0
          %v1622 = vadd.f32 %v1333, %v1621
          %v1623 = vpop.f32.mrf.mxu0
          %v1624 = vpop.f32.mrf.mxu0
          %v1625 = vadd.f32 %v1334, %v1624
          %v1626 = vpop.f32.mrf.mxu0
          %1627 = vmatprep.mubr.bf16.mxu0 0
          %1628 = vmatmul.mubr.bf16.gmra.mxu0 %v1473
          %v1629 = vpop.f32.mrf.mxu0
          %v1630 = vadd.f32 %v1335, %v1629
          %v1631 = vpop.f32.mrf.mxu0
          %v1632 = vpop.f32.mrf.mxu0
          %v1633 = vadd.f32 %v1336, %v1632
          %v1634 = vpop.f32.mrf.mxu0
          %1635 = vmatprep.mubr.bf16.mxu0 0
          %1636 = vmatmul.mubr.bf16.gmra.mxu0 %v1474
          %v1637 = vpop.f32.mrf.mxu0
          %v1638 = vadd.f32 %v1337, %v1637
          %v1639 = vpop.f32.mrf.mxu0
          %v1640 = vpop.f32.mrf.mxu0
          %v1641 = vadd.f32 %v1338, %v1640
          %v1642 = vpop.f32.mrf.mxu0
          %1643 = vmatprep.mubr.bf16.mxu0 0
          %1644 = vmatmul.mubr.bf16.gmra.mxu0 %v1475
          %v1645 = vpop.f32.mrf.mxu0
          %v1646 = vadd.f32 %v1339, %v1645
          %v1647 = vpop.f32.mrf.mxu0
          %v1648 = vpop.f32.mrf.mxu0
          %v1649 = vadd.f32 %v1340, %v1648
          %v1650 = vpop.f32.mrf.mxu0
          %1651 = vmatprep.mubr.bf16.mxu0 0
          %1652 = vmatmul.mubr.bf16.gmra.mxu0 %v1476
          %v1653 = vpop.f32.mrf.mxu0
          %v1654 = vadd.f32 %v1341, %v1653
          %v1655 = vpop.f32.mrf.mxu0
          %v1656 = vpop.f32.mrf.mxu0
          %v1657 = vadd.f32 %v1342, %v1656
          %v1658 = vpop.f32.mrf.mxu0
          %1659 = vmatprep.mubr.bf16.mxu0 0
          %1660 = vmatmul.mubr.bf16.gmra.mxu0 %v1477
          %v1661 = vpop.f32.mrf.mxu0
          %v1662 = vadd.f32 %v1343, %v1661
          %v1663 = vpop.f32.mrf.mxu0
          %v1664 = vpop.f32.mrf.mxu0
          %v1665 = vadd.f32 %v1344, %v1664
          %v1666 = vpop.f32.mrf.mxu0
          %1667 = vmatprep.mubr.bf16.mxu0 0
          %1668 = vmatmul.mubr.bf16.gmra.mxu0 %v1478
          %v1669 = vpop.f32.mrf.mxu0
          %v1670 = vadd.f32 %v1345, %v1669
          %v1671 = vpop.f32.mrf.mxu0
          %v1672 = vpop.f32.mrf.mxu0
          %v1673 = vadd.f32 %v1346, %v1672
          %v1674 = vpop.f32.mrf.mxu0
          %1675 = vmatprep.mubr.bf16.mxu0 0
          %1676 = vmatmul.mubr.bf16.gmra.mxu0 %v1479
          %v1677 = vpop.f32.mrf.mxu0
          %v1678 = vadd.f32 %v1347, %v1677
          %v1679 = vpop.f32.mrf.mxu0
          %v1680 = vpop.f32.mrf.mxu0
          %v1681 = vadd.f32 %v1348, %v1680
          %v1682 = vpop.f32.mrf.mxu0
          %1683 = vmatprep.mubr.bf16.mxu0 0
          %1684 = vmatmul.mubr.bf16.gmra.mxu0 %v1480
          %v1685 = vpop.f32.mrf.mxu0
          %v1686 = vadd.f32 %v1349, %v1685
          %v1687 = vpop.f32.mrf.mxu0
          %v1688 = vpop.f32.mrf.mxu0
          %v1689 = vadd.f32 %v1350, %v1688
          %v1690 = vpop.f32.mrf.mxu0
          %1691 = vmatprep.mubr.bf16.mxu0 0
          %1692 = vmatmul.mubr.bf16.gmra.mxu0 %v1481
          %v1693 = vpop.f32.mrf.mxu0
          %v1694 = vadd.f32 %v1351, %v1693
          %v1695 = vpop.f32.mrf.mxu0
          %v1696 = vpop.f32.mrf.mxu0
          %v1697 = vadd.f32 %v1352, %v1696
          %v1698 = vpop.f32.mrf.mxu0
          %1699 = vmatprep.mubr.bf16.mxu0 0
          %1700 = vmatmul.mubr.bf16.gmra.mxu0 %v1482
          %v1701 = vpop.f32.mrf.mxu0
          %v1702 = vadd.f32 %v1353, %v1701
          %v1703 = vpop.f32.mrf.mxu0
          %v1704 = vpop.f32.mrf.mxu0
          %v1705 = vadd.f32 %v1354, %v1704
          %v1706 = vpop.f32.mrf.mxu0
          %1707 = vdwg.mxu0
          %v1708 = vld [vmem:[%s5] sm:$0x1]
          %v1710 = vlaneseq
          %v1711 = vshrl.u32 %v1710, 7
          %v1712 = vsub.s32 0, %v1711
          %v1713 = vrot.slane %v1708, %v1712
          %v1715 = vadd.f32 %v1582, %v1713
          %v1716 = vadd.f32 %v1585, %v1713
          %v1717 = vadd.f32 %v1590, %v1713
          %v1718 = vadd.f32 %v1593, %v1713
          %v1719 = vadd.f32 %v1598, %v1713
          %v1720 = vadd.f32 %v1601, %v1713
          %v1721 = vadd.f32 %v1606, %v1713
          %v1722 = vadd.f32 %v1609, %v1713
          %v1723 = vadd.f32 %v1614, %v1713
          %v1724 = vadd.f32 %v1617, %v1713
          %v1725 = vadd.f32 %v1622, %v1713
          %v1726 = vadd.f32 %v1625, %v1713
          %v1727 = vadd.f32 %v1630, %v1713
          %v1728 = vadd.f32 %v1633, %v1713
          %v1729 = vadd.f32 %v1638, %v1713
          %v1730 = vadd.f32 %v1641, %v1713
          %v1731 = vadd.f32 %v1646, %v1713
          %v1732 = vadd.f32 %v1649, %v1713
          %v1733 = vadd.f32 %v1654, %v1713
          %v1734 = vadd.f32 %v1657, %v1713
          %v1735 = vadd.f32 %v1662, %v1713
          %v1736 = vadd.f32 %v1665, %v1713
          %v1737 = vadd.f32 %v1670, %v1713
          %v1738 = vadd.f32 %v1673, %v1713
          %v1739 = vadd.f32 %v1678, %v1713
          %v1740 = vadd.f32 %v1681, %v1713
          %v1741 = vadd.f32 %v1686, %v1713
          %v1742 = vadd.f32 %v1689, %v1713
          %v1743 = vadd.f32 %v1694, %v1713
          %v1744 = vadd.f32 %v1697, %v1713
          %v1745 = vadd.f32 %v1702, %v1713
          %v1746 = vadd.f32 %v1705, %v1713
          %1747 = vst [vmem:[%s474] sm:$0xff] %v1715
          %1748 = vst [vmem:[%s474 + $0x8] sm:$0xff] %v1716
          %1749 = vst [vmem:[%s474 + $0x10] sm:$0xff] %v1717
          %1750 = vst [vmem:[%s474 + $0x18] sm:$0xff] %v1718
          %1751 = vst [vmem:[%s474 + $0x20] sm:$0xff] %v1719
          %1752 = vst [vmem:[%s474 + $0x28] sm:$0xff] %v1720
          %1753 = vst [vmem:[%s474 + $0x30] sm:$0xff] %v1721
          %1754 = vst [vmem:[%s474 + $0x38] sm:$0xff] %v1722
          %1755 = vst [vmem:[%s474 + $0x40] sm:$0xff] %v1723
          %1756 = vst [vmem:[%s474 + $0x48] sm:$0xff] %v1724
          %1757 = vst [vmem:[%s474 + $0x50] sm:$0xff] %v1725
          %1758 = vst [vmem:[%s474 + $0x58] sm:$0xff] %v1726
          %1759 = vst [vmem:[%s474 + $0x60] sm:$0xff] %v1727
          %1760 = vst [vmem:[%s474 + $0x68] sm:$0xff] %v1728
          %1761 = vst [vmem:[%s474 + $0x70] sm:$0xff] %v1729
          %1762 = vst [vmem:[%s474 + $0x78] sm:$0xff] %v1730
          %1763 = vst [vmem:[%s474 + $0x80] sm:$0xff] %v1731
          %1764 = vst [vmem:[%s474 + $0x88] sm:$0xff] %v1732
          %1765 = vst [vmem:[%s474 + $0x90] sm:$0xff] %v1733
          %1766 = vst [vmem:[%s474 + $0x98] sm:$0xff] %v1734
          %1767 = vst [vmem:[%s474 + $0xa0] sm:$0xff] %v1735
          %1768 = vst [vmem:[%s474 + $0xa8] sm:$0xff] %v1736
          %1769 = vst [vmem:[%s474 + $0xb0] sm:$0xff] %v1737
          %1770 = vst [vmem:[%s474 + $0xb8] sm:$0xff] %v1738
          %1771 = vst [vmem:[%s474 + $0xc0] sm:$0xff] %v1739
          %1772 = vst [vmem:[%s474 + $0xc8] sm:$0xff] %v1740
          %1773 = vst [vmem:[%s474 + $0xd0] sm:$0xff] %v1741
          %1774 = vst [vmem:[%s474 + $0xd8] sm:$0xff] %v1742
          %1775 = vst [vmem:[%s474 + $0xe0] sm:$0xff] %v1743
          %1776 = vst [vmem:[%s474 + $0xe8] sm:$0xff] %v1744
          %1777 = vst [vmem:[%s474 + $0xf0] sm:$0xff] %v1745
          %1778 = vst [vmem:[%s474 + $0xf8] sm:$0xff] %v1746
        $region90: #{graphsage_forward.5} parent=77 // pred_fallthru
          _
        %s1779 = smul.u32 32, %s21
        %p1780 = scmp.lt.s32.totalorder %s1779, 63
        %s1781 = scalar_select %p1780, %s1779, 63
        %s1782 = smul.addr %s1781, 8
        %s1783 = scalar_lea.vmem %s6, %s1782
        // Predicated region
        $region91: #{graphsage_forward.5} parent=77 // pred_check
          %p1784 = pneg %p190
        $region92: #{graphsage_forward.5} parent=77 // pred_check_branch
          %1786 = sbr.rel (%p1784) target = $region94
        $region93: #{graphsage_forward.5} parent=77 // pred_region
          %s1787 = smul.u32 32, %s21
        $region94: #{graphsage_forward.5} parent=77 // pred_fallthru
          _
      $region78: #{graphsage_forward.5} parent=5 // pred_fallthru
        _
      %p1788 = scmp.le.s32.totalorder 2, %s12
      // Predicated region
      $region95: #{graphsage_forward.5} parent=5 // pred_check
        %p1789 = pneg %p1788
      $region96: #{graphsage_forward.5} parent=5 // pred_check_branch
        %1791 = sbr.rel (%p1789) target = $region98
      $region97: #{graphsage_forward.5} parent=5 // pred_region
        %s1792 = ssub.s32 %s12, 2
        // Predicated region
        $region99: #{graphsage_forward.5} parent=97 // pred_check
          %p1793 = pneg %p196
        $region100: #{graphsage_forward.5} parent=97 // pred_check_branch
          %1795 = sbr.rel (%p1793) target = $region102
        $region101: #{graphsage_forward.5} parent=97 // pred_region
          %s1796 = smul.u32 32, %s23
          %p1797 = scmp.lt.s32.totalorder %s1796, 63
          %s1798 = scalar_select %p1797, %s1796, 63
          %s1799 = smul.addr %s1798, 8
          %s1800 = scalar_lea.vmem %s6, %s1799
        $region102: #{graphsage_forward.5} parent=97 // pred_fallthru
          _
      $region98: #{graphsage_forward.5} parent=5 // pred_fallthru
        _
    $region6: #{graphsage_forward.5} parent=1 // loop_footer
      %s16 = sadd.s32 1, %s12
    $region7: #{graphsage_forward.5} parent=1 // loop_footer_branch
      %11 = sbr.rel target = $region3
    $region8: #{graphsage_forward.5} parent=1 // loop_exit
      _

// kernel: graphsage_forward.3
$region0: #{graphsage_forward.3}
  #allocation0 [shape = 'u32[]', space=smem, size = 0x4, offset = 0x4, fixed_abs, tag = 'smem constant byte address 0x4 - core index']
  #allocation1 [shape = 'u32[144,128]{1,0:T(1,128)}', space=vmem, size = 0x12000, scoped, tag = 'internal scratch']
  #allocation2 [shape = 'f32[256,128]{1,0:T(8,128)}', space=vmem, size = 0x20000, scoped, tag = 'scratch operand']
  %s0 = inlined_call_operand.vmem [shape: f32[512,1], index: 0, kind: input, shape index: {}]
  %s1 = inlined_call_operand.vmem [shape: bf16[512,512], index: 1, kind: input, shape index: {}]
  %s2 = inlined_call_operand.vmem [shape: bf16[512,128], index: 2, kind: input, shape index: {}]
  %s3 = inlined_call_operand.vmem [shape: bf16[512,128], index: 3, kind: input, shape index: {}]
  %s4 = inlined_call_operand.vmem [shape: bf16[128,128], index: 4, kind: input, shape index: {}]
  %s5 = inlined_call_operand.vmem [shape: f32[1,128], index: 5, kind: input, shape index: {}]
  %s6 = inlined_call_operand.vmem [shape: bf16[512,128], index: 6, kind: output, shape index: {}]
  %s7 = sld [smem:[#allocation0]]
  $region103: #{graphsage_forward.3} parent=0
    _
  %s9 = ssub.s32 1, %s7
  %s10 = scalar_select 0, %s9, %s7
  $region1: #{graphsage_forward.3} parent=0
    #allocation3 [shape = 'u8[262144]{0}', space=vmem, size = 0x40000, scoped, tag = 'input window, operand 1']
    loop: start=0, step=1, limit=6
    $region2: #{graphsage_forward.3} parent=1 // loop_pre_header
      _
    $region3: #{graphsage_forward.3} parent=1 // loop_header
      %s12 = sphi 0, %s16
      %p13 = scmp.ge.s32.totalorder %s12, 6
      %s19 = sphi 0, %s31
      %s20 = sphi 0, %s27
      %s21 = sphi 0, %s19
      %s22 = sphi 0, %s20
      %s23 = sphi 0, %s21
      %s24 = sphi 0, %s22
      %s34 = sphi 0, %s36
      %s37 = sphi 0, %s34
      %s38 = sphi 0, %s37
      %s54 = sphi 0, %s38
      %s62 = sphi 0, %s64
      %s65 = sphi 0, %s62
      %s66 = sphi 0, %s65
      %s82 = sphi 0, %s66
      %s86 = sphi 0, %s86
      %s88 = sphi 0, %s86
      %s89 = sphi 0, %s88
      %s103 = sphi 0, %s89
      %s109 = sphi 0, %s111
      %s112 = sphi 0, %s109
      %s113 = sphi 0, %s112
      %s129 = sphi 0, %s113
      %s133 = sphi 0, %s133
      %s135 = sphi 0, %s133
      %s136 = sphi 0, %s135
      %s150 = sphi 0, %s136
      %s154 = sphi 0, %s154
      %s156 = sphi 0, %s154
      %s157 = sphi 0, %s156
      %s171 = sphi 0, %s157
      %s177 = sphi 0, %s179
      %s180 = sphi 0, %s177
      %s181 = sphi 0, %s180
      %s197 = sphi 0, %s181
    $region4: #{graphsage_forward.3} parent=1 // loop_header_branch
      %15 = sbr.rel (%p13) target = $region8
    $region5: #{graphsage_forward.3} parent=1 // loop_body
      %s17 = ssub.s32 %s12, 1
      %s18 = ssub.s32 %s12, 2
      %s25 = sadd.s32 1, %s20
      %p26 = scmp.ge.s32.totalorder %s25, 2
      %s27 = scalar_select %p26, 0, %s25
      %s28 = sadd.s32 1, %s19
      %s29 = scalar_select %p26, %s28, %s19
      %p30 = scmp.ge.s32.totalorder %s29, 2
      %s31 = scalar_select %p30, 0, %s29
      %s32 = ssub.s32 %s19, %s31
      %p33 = scmp.eq.s32.totalorder %s32, 0
      %s35 = sadd.s32 %s34, 1
      %s36 = scalar_select %p33, %s34, %s35
      %p39 = pneg %p33
      %p40 = scmp.eq.s32.totalorder %s12, 3
      %p41 = por %p39, %p40
      %p42 = scmp.ne.s32.totalorder %s34, %s37
      %p43 = scmp.eq.s32.totalorder %s12, 0
      %p44 = por %p42, %p43
      %p45 = scmp.ne.s32.totalorder %s34, %s37
      %p46 = scmp.eq.s32.totalorder %s17, 3
      %p47 = por %p45, %p46
      %p48 = scmp.ne.s32.totalorder %s37, %s38
      %p49 = scmp.eq.s32.totalorder %s17, 0
      %p50 = por %p48, %p49
      %p51 = scmp.ne.s32.totalorder %s37, %s38
      %p52 = scmp.eq.s32.totalorder %s18, 3
      %p53 = por %p51, %p52
      %p55 = scmp.ne.s32.totalorder %s38, %s54
      %p56 = scmp.eq.s32.totalorder %s18, 0
      %p57 = por %p55, %p56
      %s58 = ssub.s32 %s19, %s31
      %s59 = ssub.s32 %s20, %s27
      %s60 = sor.u32 %s58, %s59
      %p61 = scmp.eq.s32.totalorder %s60, 0
      %s63 = sadd.s32 %s62, 1
      %s64 = scalar_select %p61, %s62, %s63
      %p67 = pneg %p61
      %p68 = scmp.eq.s32.totalorder %s12, 3
      %p69 = por %p67, %p68
      %p70 = scmp.ne.s32.totalorder %s62, %s65
      %p71 = scmp.eq.s32.totalorder %s12, 0
      %p72 = por %p70, %p71
      %p73 = scmp.ne.s32.totalorder %s62, %s65
      %p74 = scmp.eq.s32.totalorder %s17, 3
      %p75 = por %p73, %p74
      %p76 = scmp.ne.s32.totalorder %s65, %s66
      %p77 = scmp.eq.s32.totalorder %s17, 0
      %p78 = por %p76, %p77
      %p79 = scmp.ne.s32.totalorder %s65, %s66
      %p80 = scmp.eq.s32.totalorder %s18, 3
      %p81 = por %p79, %p80
      %p83 = scmp.ne.s32.totalorder %s66, %s82
      %p84 = scmp.eq.s32.totalorder %s18, 0
      %p85 = por %p83, %p84
      %s87 = sadd.s32 %s86, 1
      %p90 = scmp.eq.s32.totalorder %s12, 3
      %p91 = scmp.ne.s32.totalorder %s86, %s88
      %p92 = scmp.eq.s32.totalorder %s12, 0
      %p93 = por %p91, %p92
      %p94 = scmp.ne.s32.totalorder %s86, %s88
      %p95 = scmp.eq.s32.totalorder %s17, 3
      %p96 = por %p94, %p95
      %p97 = scmp.ne.s32.totalorder %s88, %s89
      %p98 = scmp.eq.s32.totalorder %s17, 0
      %p99 = por %p97, %p98
      %p100 = scmp.ne.s32.totalorder %s88, %s89
      %p101 = scmp.eq.s32.totalorder %s18, 3
      %p102 = por %p100, %p101
      %p104 = scmp.ne.s32.totalorder %s89, %s103
      %p105 = scmp.eq.s32.totalorder %s18, 0
      %p106 = por %p104, %p105
      %s107 = ssub.s32 %s19, %s31
      %p108 = scmp.eq.s32.totalorder %s107, 0
      %s110 = sadd.s32 %s109, 1
      %s111 = scalar_select %p108, %s109, %s110
      %p114 = pneg %p108
      %p115 = scmp.eq.s32.totalorder %s12, 3
      %p116 = por %p114, %p115
      %p117 = scmp.ne.s32.totalorder %s109, %s112
      %p118 = scmp.eq.s32.totalorder %s12, 0
      %p119 = por %p117, %p118
      %p120 = scmp.ne.s32.totalorder %s109, %s112
      %p121 = scmp.eq.s32.totalorder %s17, 3
      %p122 = por %p120, %p121
      %p123 = scmp.ne.s32.totalorder %s112, %s113
      %p124 = scmp.eq.s32.totalorder %s17, 0
      %p125 = por %p123, %p124
      %p126 = scmp.ne.s32.totalorder %s112, %s113
      %p127 = scmp.eq.s32.totalorder %s18, 3
      %p128 = por %p126, %p127
      %p130 = scmp.ne.s32.totalorder %s113, %s129
      %p131 = scmp.eq.s32.totalorder %s18, 0
      %p132 = por %p130, %p131
      %s134 = sadd.s32 %s133, 1
      %p137 = scmp.eq.s32.totalorder %s12, 3
      %p138 = scmp.ne.s32.totalorder %s133, %s135
      %p139 = scmp.eq.s32.totalorder %s12, 0
      %p140 = por %p138, %p139
      %p141 = scmp.ne.s32.totalorder %s133, %s135
      %p142 = scmp.eq.s32.totalorder %s17, 3
      %p143 = por %p141, %p142
      %p144 = scmp.ne.s32.totalorder %s135, %s136
      %p145 = scmp.eq.s32.totalorder %s17, 0
      %p146 = por %p144, %p145
      %p147 = scmp.ne.s32.totalorder %s135, %s136
      %p148 = scmp.eq.s32.totalorder %s18, 3
      %p149 = por %p147, %p148
      %p151 = scmp.ne.s32.totalorder %s136, %s150
      %p152 = scmp.eq.s32.totalorder %s18, 0
      %p153 = por %p151, %p152
      %s155 = sadd.s32 %s154, 1
      %p158 = scmp.eq.s32.totalorder %s12, 3
      %p159 = scmp.ne.s32.totalorder %s154, %s156
      %p160 = scmp.eq.s32.totalorder %s12, 0
      %p161 = por %p159, %p160
      %p162 = scmp.ne.s32.totalorder %s154, %s156
      %p163 = scmp.eq.s32.totalorder %s17, 3
      %p164 = por %p162, %p163
      %p165 = scmp.ne.s32.totalorder %s156, %s157
      %p166 = scmp.eq.s32.totalorder %s17, 0
      %p167 = por %p165, %p166
      %p168 = scmp.ne.s32.totalorder %s156, %s157
      %p169 = scmp.eq.s32.totalorder %s18, 3
      %p170 = por %p168, %p169
      %p172 = scmp.ne.s32.totalorder %s157, %s171
      %p173 = scmp.eq.s32.totalorder %s18, 0
      %p174 = por %p172, %p173
      %s175 = ssub.s32 %s19, %s31
      %p176 = scmp.eq.s32.totalorder %s175, 0
      %s178 = sadd.s32 %s177, 1
      %s179 = scalar_select %p176, %s177, %s178
      %p182 = pneg %p176
      %p183 = scmp.eq.s32.totalorder %s12, 3
      %p184 = por %p182, %p183
      %p185 = scmp.ne.s32.totalorder %s177, %s180
      %p186 = scmp.eq.s32.totalorder %s12, 0
      %p187 = por %p185, %p186
      %p188 = scmp.ne.s32.totalorder %s177, %s180
      %p189 = scmp.eq.s32.totalorder %s17, 3
      %p190 = por %p188, %p189
      %p191 = scmp.ne.s32.totalorder %s180, %s181
      %p192 = scmp.eq.s32.totalorder %s17, 0
      %p193 = por %p191, %p192
      %p194 = scmp.ne.s32.totalorder %s180, %s181
      %p195 = scmp.eq.s32.totalorder %s18, 3
      %p196 = por %p194, %p195
      %p198 = scmp.ne.s32.totalorder %s181, %s197
      %p199 = scmp.eq.s32.totalorder %s18, 0
      %p200 = por %p198, %p199
      %p201 = scmp.le.s32.totalorder 1, %s12
      %p202 = scmp.lt.s32.totalorder %s12, 5
      %p203 = pnand %p201, %p202
      %p204 = pneg %p203
      // Predicated region
      $region9: #{graphsage_forward.3} parent=5 // pred_check
        _
      $region10: #{graphsage_forward.3} parent=5 // pred_check_branch
        %206 = sbr.rel (%p203) target = $region12
      $region11: #{graphsage_forward.3} parent=5 // pred_region
        %s207 = ssub.s32 %s12, 1
        // Predicated region
        $region13: #{graphsage_forward.3} parent=11 // pred_check
          %p208 = pneg %p99
        $region14: #{graphsage_forward.3} parent=11 // pred_check_branch
          %210 = sbr.rel (%p208) target = $region16
        $region15: #{graphsage_forward.3} parent=11 // pred_region
          _
        $region16: #{graphsage_forward.3} parent=11 // pred_fallthru
          _
        // Predicated region
        $region17: #{graphsage_forward.3} parent=11 // pred_check
          %p211 = pneg %p146
        $region18: #{graphsage_forward.3} parent=11 // pred_check_branch
          %213 = sbr.rel (%p211) target = $region20
        $region19: #{graphsage_forward.3} parent=11 // pred_region
          _
        $region20: #{graphsage_forward.3} parent=11 // pred_fallthru
          _
        // Predicated region
        $region21: #{graphsage_forward.3} parent=11 // pred_check
          %p214 = pneg %p167
        $region22: #{graphsage_forward.3} parent=11 // pred_check_branch
          %216 = sbr.rel (%p214) target = $region24
        $region23: #{graphsage_forward.3} parent=11 // pred_region
          _
        $region24: #{graphsage_forward.3} parent=11 // pred_fallthru
          _
      $region12: #{graphsage_forward.3} parent=5 // pred_fallthru
        _
      %p217 = scmp.lt.s32.totalorder %s12, 4
      // Predicated region
      $region25: #{graphsage_forward.3} parent=5 // pred_check
        %p218 = pneg %p217
      $region26: #{graphsage_forward.3} parent=5 // pred_check_branch
        %220 = sbr.rel (%p218) target = $region28
      $region27: #{graphsage_forward.3} parent=5 // pred_region
        // Predicated region
        $region29: #{graphsage_forward.3} parent=27 // pred_check
          %p221 = pneg %p44
        $region30: #{graphsage_forward.3} parent=27 // pred_check_branch
          %223 = sbr.rel (%p221) target = $region32
        $region31: #{graphsage_forward.3} parent=27 // pred_region
          %s224 = smul.u32 32, %s19
          %p225 = scmp.lt.s32.totalorder %s224, 63
          %s226 = scalar_select %p225, %s224, 63
          %s227 = smul.addr %s226, 8
          %s228 = scalar_lea.vmem %s0, %s227
          %s229 = smul.u32 32, %s19
        $region32: #{graphsage_forward.3} parent=27 // pred_fallthru
          _
        // Predicated region
        $region33: #{graphsage_forward.3} parent=27 // pred_check
          %p230 = pneg %p72
        $region34: #{graphsage_forward.3} parent=27 // pred_check_branch
          %232 = sbr.rel (%p230) target = $region36
        $region35: #{graphsage_forward.3} parent=27 // pred_region
          %s233 = sand.u32 %s62, 1
          %s234 = sand.u32 %s62, 1
          %s235 = smul.addr %s234, 256
          %s236 = scalar_lea.vmem [#allocation3], %s235
          %s237 = smul.u32 32, %s19
          %s238 = smul.u32 2, %s20
          %s239 = smul.addr %s237, 4
          %s240 = sadd.s32 %s238, %s239
          %s241 = smul.addr %s240, 4
          %s242 = scalar_lea.vmem %s1, %s241
          // Predicated region
          $region37: #{graphsage_forward.3} parent=35 // pred_check
            _
          $region38: #{graphsage_forward.3} parent=35 // pred_check_branch
            %244 = sbr.rel (0) target = $region40
          $region39: #{graphsage_forward.3} parent=35 // pred_region
            // Predicated region
            $region41: #{graphsage_forward.3} parent=39 // pred_check
              _
            $region42: #{graphsage_forward.3} parent=39 // pred_check_branch
              %246 = sbr.rel (0) target = $region44
            $region43: #{graphsage_forward.3} parent=39 // pred_region
              // Predicated region
              $region56: #{graphsage_forward.3} parent=43 // pred_check
                _
              $region57: #{graphsage_forward.3} parent=43 // pred_check_branch
                %324 = sbr.rel (0) target = $region59
              $region58: #{graphsage_forward.3} parent=43 // pred_region
                loop: start=0, step=1, limit=1
                $region60: #{graphsage_forward.3} parent=58 // loop_pre_header
                  _
                $region61: #{graphsage_forward.3} parent=58 // loop_header
                  %s326 = sphi 0, %s330
                  %p327 = scmp.ge.s32.totalorder %s326, 1
                  %s331 = sphi %s242, %s242
                  %s332 = sphi %s236, %s236
                $region62: #{graphsage_forward.3} parent=58 // loop_header_branch
                  %329 = sbr.rel (%p327) target = $region66
                $region63: #{graphsage_forward.3} parent=58 // loop_body
                  %v333 = vld [vmem:[%s331] sm:$0xff]
                  %334 = vst [vmem:[%s332] sm:$0xff] %v333
                  %v335 = vld [vmem:[%s331 + $0x10] sm:$0xff]
                  %336 = vst [vmem:[%s332 + $0x8] sm:$0xff] %v335
                  %v337 = vld [vmem:[%s331 + $0x20] sm:$0xff]
                  %338 = vst [vmem:[%s332 + $0x10] sm:$0xff] %v337
                  %v339 = vld [vmem:[%s331 + $0x30] sm:$0xff]
                  %340 = vst [vmem:[%s332 + $0x18] sm:$0xff] %v339
                  %v341 = vld [vmem:[%s331 + $0x40] sm:$0xff]
                  %342 = vst [vmem:[%s332 + $0x20] sm:$0xff] %v341
                  %v343 = vld [vmem:[%s331 + $0x50] sm:$0xff]
                  %344 = vst [vmem:[%s332 + $0x28] sm:$0xff] %v343
                  %v345 = vld [vmem:[%s331 + $0x60] sm:$0xff]
                  %346 = vst [vmem:[%s332 + $0x30] sm:$0xff] %v345
                  %v347 = vld [vmem:[%s331 + $0x70] sm:$0xff]
                  %348 = vst [vmem:[%s332 + $0x38] sm:$0xff] %v347
                  %v349 = vld [vmem:[%s331 + $0x80] sm:$0xff]
                  %350 = vst [vmem:[%s332 + $0x40] sm:$0xff] %v349
                  %v351 = vld [vmem:[%s331 + $0x90] sm:$0xff]
                  %352 = vst [vmem:[%s332 + $0x48] sm:$0xff] %v351
                  %v353 = vld [vmem:[%s331 + $0xa0] sm:$0xff]
                  %354 = vst [vmem:[%s332 + $0x50] sm:$0xff] %v353
                  %v355 = vld [vmem:[%s331 + $0xb0] sm:$0xff]
                  %356 = vst [vmem:[%s332 + $0x58] sm:$0xff] %v355
                  %v357 = vld [vmem:[%s331 + $0xc0] sm:$0xff]
                  %358 = vst [vmem:[%s332 + $0x60] sm:$0xff] %v357
                  %v359 = vld [vmem:[%s331 + $0xd0] sm:$0xff]
                  %360 = vst [vmem:[%s332 + $0x68] sm:$0xff] %v359
                  %v361 = vld [vmem:[%s331 + $0xe0] sm:$0xff]
                  %362 = vst [vmem:[%s332 + $0x70] sm:$0xff] %v361
                  %v363 = vld [vmem:[%s331 + $0xf0] sm:$0xff]
                  %364 = vst [vmem:[%s332 + $0x78] sm:$0xff] %v363
                  %v365 = vld [vmem:[%s331 + $0x100] sm:$0xff]
                  %366 = vst [vmem:[%s332 + $0x80] sm:$0xff] %v365
                  %v367 = vld [vmem:[%s331 + $0x110] sm:$0xff]
                  %368 = vst [vmem:[%s332 + $0x88] sm:$0xff] %v367
                  %v369 = vld [vmem:[%s331 + $0x120] sm:$0xff]
                  %370 = vst [vmem:[%s332 + $0x90] sm:$0xff] %v369
                  %v371 = vld [vmem:[%s331 + $0x130] sm:$0xff]
                  %372 = vst [vmem:[%s332 + $0x98] sm:$0xff] %v371
                  %v373 = vld [vmem:[%s331 + $0x140] sm:$0xff]
                  %374 = vst [vmem:[%s332 + $0xa0] sm:$0xff] %v373
                  %v375 = vld [vmem:[%s331 + $0x150] sm:$0xff]
                  %376 = vst [vmem:[%s332 + $0xa8] sm:$0xff] %v375
                  %v377 = vld [vmem:[%s331 + $0x160] sm:$0xff]
                  %378 = vst [vmem:[%s332 + $0xb0] sm:$0xff] %v377
                  %v379 = vld [vmem:[%s331 + $0x170] sm:$0xff]
                  %380 = vst [vmem:[%s332 + $0xb8] sm:$0xff] %v379
                  %v381 = vld [vmem:[%s331 + $0x180] sm:$0xff]
                  %382 = vst [vmem:[%s332 + $0xc0] sm:$0xff] %v381
                  %v383 = vld [vmem:[%s331 + $0x190] sm:$0xff]
                  %384 = vst [vmem:[%s332 + $0xc8] sm:$0xff] %v383
                  %v385 = vld [vmem:[%s331 + $0x1a0] sm:$0xff]
                  %386 = vst [vmem:[%s332 + $0xd0] sm:$0xff] %v385
                  %v387 = vld [vmem:[%s331 + $0x1b0] sm:$0xff]
                  %388 = vst [vmem:[%s332 + $0xd8] sm:$0xff] %v387
                  %v389 = vld [vmem:[%s331 + $0x1c0] sm:$0xff]
                  %390 = vst [vmem:[%s332 + $0xe0] sm:$0xff] %v389
                  %v391 = vld [vmem:[%s331 + $0x1d0] sm:$0xff]
                  %392 = vst [vmem:[%s332 + $0xe8] sm:$0xff] %v391
                  %v393 = vld [vmem:[%s331 + $0x1e0] sm:$0xff]
                  %394 = vst [vmem:[%s332 + $0xf0] sm:$0xff] %v393
                  %v395 = vld [vmem:[%s331 + $0x1f0] sm:$0xff]
                  %396 = vst [vmem:[%s332 + $0xf8] sm:$0xff] %v395
                $region64: #{graphsage_forward.3} parent=58 // loop_footer
                  %s330 = sadd.s32 1, %s326
                $region65: #{graphsage_forward.3} parent=58 // loop_footer_branch
                  %325 = sbr.rel target = $region61
                $region66: #{graphsage_forward.3} parent=58 // loop_exit
                  _
              $region59: #{graphsage_forward.3} parent=43 // pred_fallthru
                _
              // Predicated region
              $region67: #{graphsage_forward.3} parent=43 // pred_check
                _
              $region68: #{graphsage_forward.3} parent=43 // pred_check_branch
                %398 = sbr.rel target = $region70
              $region69: #{graphsage_forward.3} parent=43 // pred_region
                _
              $region70: #{graphsage_forward.3} parent=43 // pred_fallthru
                _
            $region44: #{graphsage_forward.3} parent=39 // pred_fallthru
              _
            // Predicated region
            $region45: #{graphsage_forward.3} parent=39 // pred_check
              _
            $region46: #{graphsage_forward.3} parent=39 // pred_check_branch
              %248 = sbr.rel target = $region48
            $region47: #{graphsage_forward.3} parent=39 // pred_region
              %s250 = ssub.s32 256, 1
              loop: start=0, step=1, limit=1
              $region49: #{graphsage_forward.3} parent=47 // loop_pre_header
                _
              $region50: #{graphsage_forward.3} parent=47 // loop_header
                %s252 = sphi 0, %s256
                %p253 = scmp.ge.s32.totalorder %s252, 1
                %s257 = sphi %s242, %s242
                %s258 = sphi %s236, %s236
              $region51: #{graphsage_forward.3} parent=47 // loop_header_branch
                %255 = sbr.rel (%p253) target = $region55
              $region52: #{graphsage_forward.3} parent=47 // loop_body
                %v259 = vld [vmem:[%s257] sm:%s250]
                %260 = vst [vmem:[%s258] sm:%s250] %v259
                %v261 = vld [vmem:[%s257 + $0x10] sm:%s250]
                %262 = vst [vmem:[%s258 + $0x8] sm:%s250] %v261
                %v263 = vld [vmem:[%s257 + $0x20] sm:%s250]
                %264 = vst [vmem:[%s258 + $0x10] sm:%s250] %v263
                %v265 = vld [vmem:[%s257 + $0x30] sm:%s250]
                %266 = vst [vmem:[%s258 + $0x18] sm:%s250] %v265
                %v267 = vld [vmem:[%s257 + $0x40] sm:%s250]
                %268 = vst [vmem:[%s258 + $0x20] sm:%s250] %v267
                %v269 = vld [vmem:[%s257 + $0x50] sm:%s250]
                %270 = vst [vmem:[%s258 + $0x28] sm:%s250] %v269
                %v271 = vld [vmem:[%s257 + $0x60] sm:%s250]
                %272 = vst [vmem:[%s258 + $0x30] sm:%s250] %v271
                %v273 = vld [vmem:[%s257 + $0x70] sm:%s250]
                %274 = vst [vmem:[%s258 + $0x38] sm:%s250] %v273
                %v275 = vld [vmem:[%s257 + $0x80] sm:%s250]
                %276 = vst [vmem:[%s258 + $0x40] sm:%s250] %v275
                %v277 = vld [vmem:[%s257 + $0x90] sm:%s250]
                %278 = vst [vmem:[%s258 + $0x48] sm:%s250] %v277
                %v279 = vld [vmem:[%s257 + $0xa0] sm:%s250]
                %280 = vst [vmem:[%s258 + $0x50] sm:%s250] %v279
                %v281 = vld [vmem:[%s257 + $0xb0] sm:%s250]
                %282 = vst [vmem:[%s258 + $0x58] sm:%s250] %v281
                %v283 = vld [vmem:[%s257 + $0xc0] sm:%s250]
                %284 = vst [vmem:[%s258 + $0x60] sm:%s250] %v283
                %v285 = vld [vmem:[%s257 + $0xd0] sm:%s250]
                %286 = vst [vmem:[%s258 + $0x68] sm:%s250] %v285
                %v287 = vld [vmem:[%s257 + $0xe0] sm:%s250]
                %288 = vst [vmem:[%s258 + $0x70] sm:%s250] %v287
                %v289 = vld [vmem:[%s257 + $0xf0] sm:%s250]
                %290 = vst [vmem:[%s258 + $0x78] sm:%s250] %v289
                %v291 = vld [vmem:[%s257 + $0x100] sm:%s250]
                %292 = vst [vmem:[%s258 + $0x80] sm:%s250] %v291
                %v293 = vld [vmem:[%s257 + $0x110] sm:%s250]
                %294 = vst [vmem:[%s258 + $0x88] sm:%s250] %v293
                %v295 = vld [vmem:[%s257 + $0x120] sm:%s250]
                %296 = vst [vmem:[%s258 + $0x90] sm:%s250] %v295
                %v297 = vld [vmem:[%s257 + $0x130] sm:%s250]
                %298 = vst [vmem:[%s258 + $0x98] sm:%s250] %v297
                %v299 = vld [vmem:[%s257 + $0x140] sm:%s250]
                %300 = vst [vmem:[%s258 + $0xa0] sm:%s250] %v299
                %v301 = vld [vmem:[%s257 + $0x150] sm:%s250]
                %302 = vst [vmem:[%s258 + $0xa8] sm:%s250] %v301
                %v303 = vld [vmem:[%s257 + $0x160] sm:%s250]
                %304 = vst [vmem:[%s258 + $0xb0] sm:%s250] %v303
                %v305 = vld [vmem:[%s257 + $0x170] sm:%s250]
                %306 = vst [vmem:[%s258 + $0xb8] sm:%s250] %v305
                %v307 = vld [vmem:[%s257 + $0x180] sm:%s250]
                %308 = vst [vmem:[%s258 + $0xc0] sm:%s250] %v307
                %v309 = vld [vmem:[%s257 + $0x190] sm:%s250]
                %310 = vst [vmem:[%s258 + $0xc8] sm:%s250] %v309
                %v311 = vld [vmem:[%s257 + $0x1a0] sm:%s250]
                %312 = vst [vmem:[%s258 + $0xd0] sm:%s250] %v311
                %v313 = vld [vmem:[%s257 + $0x1b0] sm:%s250]
                %314 = vst [vmem:[%s258 + $0xd8] sm:%s250] %v313
                %v315 = vld [vmem:[%s257 + $0x1c0] sm:%s250]
                %316 = vst [vmem:[%s258 + $0xe0] sm:%s250] %v315
                %v317 = vld [vmem:[%s257 + $0x1d0] sm:%s250]
                %318 = vst [vmem:[%s258 + $0xe8] sm:%s250] %v317
                %v319 = vld [vmem:[%s257 + $0x1e0] sm:%s250]
                %320 = vst [vmem:[%s258 + $0xf0] sm:%s250] %v319
                %v321 = vld [vmem:[%s257 + $0x1f0] sm:%s250]
                %322 = vst [vmem:[%s258 + $0xf8] sm:%s250] %v321
              $region53: #{graphsage_forward.3} parent=47 // loop_footer
                %s256 = sadd.s32 1, %s252
              $region54: #{graphsage_forward.3} parent=47 // loop_footer_branch
                %251 = sbr.rel target = $region50
              $region55: #{graphsage_forward.3} parent=47 // loop_exit
                _
            $region48: #{graphsage_forward.3} parent=39 // pred_fallthru
              _
          $region40: #{graphsage_forward.3} parent=35 // pred_fallthru
            _
          %399 = vnop
        $region36: #{graphsage_forward.3} parent=27 // pred_fallthru
          _
        // Predicated region
        $region71: #{graphsage_forward.3} parent=27 // pred_check
          %p400 = pneg %p119
        $region72: #{graphsage_forward.3} parent=27 // pred_check_branch
          %402 = sbr.rel (%p400) target = $region74
        $region73: #{graphsage_forward.3} parent=27 // pred_region
          %s403 = smul.u32 32, %s19
          %p404 = scmp.lt.s32.totalorder %s403, 63
          %s405 = scalar_select %p404, %s403, 63
          %s406 = smul.addr %s405, 4
          %s407 = scalar_lea.vmem %s3, %s406
          %s408 = smul.u32 32, %s19
        $region74: #{graphsage_forward.3} parent=27 // pred_fallthru
          _
      $region28: #{graphsage_forward.3} parent=5 // pred_fallthru
        _
      %p409 = scmp.le.s32.totalorder 1, %s12
      %p410 = scmp.lt.s32.totalorder %s12, 5
      %p411 = pnand %p409, %p410
      %p412 = pneg %p411
      // Predicated region
      $region75: #{graphsage_forward.3} parent=5 // pred_check
        _
      $region76: #{graphsage_forward.3} parent=5 // pred_check_branch
        %414 = sbr.rel (%p411) target = $region78
      $region77: #{graphsage_forward.3} parent=5 // pred_region
        %s415 = ssub.s32 %s12, 1
        %s416 = sand.u32 %s65, 1
        %s417 = sand.u32 %s65, 1
        %s418 = smul.addr %s417, 256
        %s419 = scalar_lea.vmem [#allocation3], %s418
        // Predicated region
        $region79: #{graphsage_forward.3} parent=77 // pred_check
          %p420 = pneg %p78
        $region80: #{graphsage_forward.3} parent=77 // pred_check_branch
          %422 = sbr.rel (%p420) target = $region82
        $region81: #{graphsage_forward.3} parent=77 // pred_region
          _
        $region82: #{graphsage_forward.3} parent=77 // pred_fallthru
          _
        %s423 = smul.u32 32, %s21
        %p424 = scmp.lt.s32.totalorder %s423, 63
        %s425 = scalar_select %p424, %s423, 63
        %s426 = smul.addr %s425, 8
        %s427 = scalar_lea.vmem %s0, %s426
        %p428 = pneg %p50
        %p429 = pneg %p47
        %s430 = sand.u32 %s65, 1
        %s431 = sand.u32 %s65, 1
        %s432 = smul.addr %s431, 256
        %s433 = scalar_lea.vmem [#allocation3], %s432
        %p434 = pneg %p78
        %p435 = pneg %p75
        %p436 = pneg %p99
        %p437 = pneg %p96
        %s438 = smul.u32 32, %s21
        %p439 = scmp.lt.s32.totalorder %s438, 63
        %s440 = scalar_select %p439, %s438, 63
        %s441 = smul.addr %s440, 4
        %s442 = scalar_lea.vmem %s3, %s441
        %p443 = pneg %p125
        %p444 = pneg %p122
        %p445 = pneg %p146
        %p446 = pneg %p143
        %p447 = pneg %p167
        %p448 = pneg %p164
        %p449 = pneg %p193
        %p450 = pneg %p190
        %s451 = smul.u32 32, %s21
        %p452 = scmp.lt.s32.totalorder %s451, 63
        %s453 = scalar_select %p452, %s451, 63
        %s454 = smul.addr %s453, 4
        %s455 = scalar_lea.vmem %s6, %s454
        %s456 = smul.u32 32, %s21
        %p457 = scmp.lt.s32.totalorder %s456, 63
        %s458 = scalar_select %p457, %s456, 63
        %s459 = smul.addr %s458, 8
        %s460 = scalar_lea.vmem %s0, %s459
        %s461 = smul.u32 32, %s21
        %s462 = smul.u32 32, %s21
        %s463 = smul.u32 2, %s22
        %s464 = smul.u32 32, %s21
        %p465 = scmp.lt.s32.totalorder %s464, 63
        %s466 = scalar_select %p465, %s464, 63
        %s467 = smul.addr %s466, 4
        %s468 = scalar_lea.vmem %s3, %s467
        %s469 = smul.u32 32, %s21
        %s470 = smul.u32 32, %s21
        %p471 = scmp.lt.s32.totalorder %s470, 63
        %s472 = scalar_select %p471, %s470, 63
        %s473 = smul.addr %s472, 4
        %s474 = scalar_lea.vmem %s6, %s473
        %s475 = smul.u32 32, %s21
        %p477 = scmp.eq.s32.totalorder %s22, 0
        // Predicated region
        $region83: #{graphsage_forward.3} parent=77 // pred_check
          %p478 = pneg %p477
        $region84: #{graphsage_forward.3} parent=77 // pred_check_branch
          %480 = sbr.rel (%p478) target = $region86
        $region85: #{graphsage_forward.3} parent=77 // pred_region
          %481 = vst [vmem:[#allocation2] sm:$0xff] 0.0
          %482 = vst [vmem:[#allocation2 + $0x8] sm:$0xff] 0.0
          %483 = vst [vmem:[#allocation2 + $0x10] sm:$0xff] 0.0
          %484 = vst [vmem:[#allocation2 + $0x18] sm:$0xff] 0.0
          %485 = vst [vmem:[#allocation2 + $0x20] sm:$0xff] 0.0
          %486 = vst [vmem:[#allocation2 + $0x28] sm:$0xff] 0.0
          %487 = vst [vmem:[#allocation2 + $0x30] sm:$0xff] 0.0
          %488 = vst [vmem:[#allocation2 + $0x38] sm:$0xff] 0.0
          %489 = vst [vmem:[#allocation2 + $0x40] sm:$0xff] 0.0
          %490 = vst [vmem:[#allocation2 + $0x48] sm:$0xff] 0.0
          %491 = vst [vmem:[#allocation2 + $0x50] sm:$0xff] 0.0
          %492 = vst [vmem:[#allocation2 + $0x58] sm:$0xff] 0.0
          %493 = vst [vmem:[#allocation2 + $0x60] sm:$0xff] 0.0
          %494 = vst [vmem:[#allocation2 + $0x68] sm:$0xff] 0.0
          %495 = vst [vmem:[#allocation2 + $0x70] sm:$0xff] 0.0
          %496 = vst [vmem:[#allocation2 + $0x78] sm:$0xff] 0.0
          %497 = vst [vmem:[#allocation2 + $0x80] sm:$0xff] 0.0
          %498 = vst [vmem:[#allocation2 + $0x88] sm:$0xff] 0.0
          %499 = vst [vmem:[#allocation2 + $0x90] sm:$0xff] 0.0
          %500 = vst [vmem:[#allocation2 + $0x98] sm:$0xff] 0.0
          %501 = vst [vmem:[#allocation2 + $0xa0] sm:$0xff] 0.0
          %502 = vst [vmem:[#allocation2 + $0xa8] sm:$0xff] 0.0
          %503 = vst [vmem:[#allocation2 + $0xb0] sm:$0xff] 0.0
          %504 = vst [vmem:[#allocation2 + $0xb8] sm:$0xff] 0.0
          %505 = vst [vmem:[#allocation2 + $0xc0] sm:$0xff] 0.0
          %506 = vst [vmem:[#allocation2 + $0xc8] sm:$0xff] 0.0
          %507 = vst [vmem:[#allocation2 + $0xd0] sm:$0xff] 0.0
          %508 = vst [vmem:[#allocation2 + $0xd8] sm:$0xff] 0.0
          %509 = vst [vmem:[#allocation2 + $0xe0] sm:$0xff] 0.0
          %510 = vst [vmem:[#allocation2 + $0xe8] sm:$0xff] 0.0
          %511 = vst [vmem:[#allocation2 + $0xf0] sm:$0xff] 0.0
          %512 = vst [vmem:[#allocation2 + $0xf8] sm:$0xff] 0.0
        $region86: #{graphsage_forward.3} parent=77 // pred_fallthru
          _
        %v513 = vld [vmem:[%s419] sm:$0xff]
        %v514 = vld [vmem:[%s419 + $0x8] sm:$0xff]
        %v515 = vld [vmem:[%s419 + $0x10] sm:$0xff]
        %v516 = vld [vmem:[%s419 + $0x18] sm:$0xff]
        %v517 = vld [vmem:[%s419 + $0x20] sm:$0xff]
        %v518 = vld [vmem:[%s419 + $0x28] sm:$0xff]
        %v519 = vld [vmem:[%s419 + $0x30] sm:$0xff]
        %v520 = vld [vmem:[%s419 + $0x38] sm:$0xff]
        %v521 = vld [vmem:[%s419 + $0x40] sm:$0xff]
        %v522 = vld [vmem:[%s419 + $0x48] sm:$0xff]
        %v523 = vld [vmem:[%s419 + $0x50] sm:$0xff]
        %v524 = vld [vmem:[%s419 + $0x58] sm:$0xff]
        %v525 = vld [vmem:[%s419 + $0x60] sm:$0xff]
        %v526 = vld [vmem:[%s419 + $0x68] sm:$0xff]
        %v527 = vld [vmem:[%s419 + $0x70] sm:$0xff]
        %v528 = vld [vmem:[%s419 + $0x78] sm:$0xff]
        %v529 = vld [vmem:[%s419 + $0x80] sm:$0xff]
        %v530 = vld [vmem:[%s419 + $0x88] sm:$0xff]
        %v531 = vld [vmem:[%s419 + $0x90] sm:$0xff]
        %v532 = vld [vmem:[%s419 + $0x98] sm:$0xff]
        %v533 = vld [vmem:[%s419 + $0xa0] sm:$0xff]
        %v534 = vld [vmem:[%s419 + $0xa8] sm:$0xff]
        %v535 = vld [vmem:[%s419 + $0xb0] sm:$0xff]
        %v536 = vld [vmem:[%s419 + $0xb8] sm:$0xff]
        %v537 = vld [vmem:[%s419 + $0xc0] sm:$0xff]
        %v538 = vld [vmem:[%s419 + $0xc8] sm:$0xff]
        %v539 = vld [vmem:[%s419 + $0xd0] sm:$0xff]
        %v540 = vld [vmem:[%s419 + $0xd8] sm:$0xff]
        %v541 = vld [vmem:[%s419 + $0xe0] sm:$0xff]
        %v542 = vld [vmem:[%s419 + $0xe8] sm:$0xff]
        %v543 = vld [vmem:[%s419 + $0xf0] sm:$0xff]
        %v544 = vld [vmem:[%s419 + $0xf8] sm:$0xff]
        %s545 = smul.u32 %s22, 256
        %s546 = sshra.s32 %s545, 3
        %s547 = sand.u32 %s545, 7
        %s548 = smul.addr %s546, 4
        %s549 = scalar_lea.vmem %s2, %s548
        %v550 = vld [vmem:[%s549] sm:$0xf]
        %v551 = vld [vmem:[%s549 + $0x4] sm:$0xf]
        %v552 = vld [vmem:[%s549 + $0x8] sm:$0xf]
        %v553 = vld [vmem:[%s549 + $0xc] sm:$0xf]
        %v554 = vld [vmem:[%s549 + $0x10] sm:$0xf]
        %v555 = vld [vmem:[%s549 + $0x14] sm:$0xf]
        %v556 = vld [vmem:[%s549 + $0x18] sm:$0xf]
        %v557 = vld [vmem:[%s549 + $0x1c] sm:$0xf]
        %v558 = vld [vmem:[%s549 + $0x20] sm:$0xf]
        %v559 = vld [vmem:[%s549 + $0x24] sm:$0xf]
        %v560 = vld [vmem:[%s549 + $0x28] sm:$0xf]
        %v561 = vld [vmem:[%s549 + $0x2c] sm:$0xf]
        %v562 = vld [vmem:[%s549 + $0x30] sm:$0xf]
        %v563 = vld [vmem:[%s549 + $0x34] sm:$0xf]
        %v564 = vld [vmem:[%s549 + $0x38] sm:$0xf]
        %v565 = vld [vmem:[%s549 + $0x3c] sm:$0xf]
        %v566 = vld [vmem:[%s549 + $0x40] sm:$0xf]
        %v567 = vld [vmem:[%s549 + $0x44] sm:$0xf]
        %v568 = vld [vmem:[%s549 + $0x48] sm:$0xf]
        %v569 = vld [vmem:[%s549 + $0x4c] sm:$0xf]
        %v570 = vld [vmem:[%s549 + $0x50] sm:$0xf]
        %v571 = vld [vmem:[%s549 + $0x54] sm:$0xf]
        %v572 = vld [vmem:[%s549 + $0x58] sm:$0xf]
        %v573 = vld [vmem:[%s549 + $0x5c] sm:$0xf]
        %v574 = vld [vmem:[%s549 + $0x60] sm:$0xf]
        %v575 = vld [vmem:[%s549 + $0x64] sm:$0xf]
        %v576 = vld [vmem:[%s549 + $0x68] sm:$0xf]
        %v577 = vld [vmem:[%s549 + $0x6c] sm:$0xf]
        %v578 = vld [vmem:[%s549 + $0x70] sm:$0xf]
        %v579 = vld [vmem:[%s549 + $0x74] sm:$0xf]
        %v580 = vld [vmem:[%s549 + $0x78] sm:$0xf]
        %v581 = vld [vmem:[%s549 + $0x7c] sm:$0xf]
        %v582 = vld [vmem:[#allocation2] sm:$0xff]
        %v583 = vld [vmem:[#allocation2 + $0x8] sm:$0xff]
        %v584 = vld [vmem:[#allocation2 + $0x10] sm:$0xff]
        %v585 = vld [vmem:[#allocation2 + $0x18] sm:$0xff]
        %v586 = vld [vmem:[#allocation2 + $0x20] sm:$0xff]
        %v587 = vld [vmem:[#allocation2 + $0x28] sm:$0xff]
        %v588 = vld [vmem:[#allocation2 + $0x30] sm:$0xff]
        %v589 = vld [vmem:[#allocation2 + $0x38] sm:$0xff]
        %v590 = vld [vmem:[#allocation2 + $0x40] sm:$0xff]
        %v591 = vld [vmem:[#allocation2 + $0x48] sm:$0xff]
        %v592 = vld [vmem:[#allocation2 + $0x50] sm:$0xff]
        %v593 = vld [vmem:[#allocation2 + $0x58] sm:$0xff]
        %v594 = vld [vmem:[#allocation2 + $0x60] sm:$0xff]
        %v595 = vld [vmem:[#allocation2 + $0x68] sm:$0xff]
        %v596 = vld [vmem:[#allocation2 + $0x70] sm:$0xff]
        %v597 = vld [vmem:[#allocation2 + $0x78] sm:$0xff]
        %v598 = vld [vmem:[#allocation2 + $0x80] sm:$0xff]
        %v599 = vld [vmem:[#allocation2 + $0x88] sm:$0xff]
        %v600 = vld [vmem:[#allocation2 + $0x90] sm:$0xff]
        %v601 = vld [vmem:[#allocation2 + $0x98] sm:$0xff]
        %v602 = vld [vmem:[#allocation2 + $0xa0] sm:$0xff]
        %v603 = vld [vmem:[#allocation2 + $0xa8] sm:$0xff]
        %v604 = vld [vmem:[#allocation2 + $0xb0] sm:$0xff]
        %v605 = vld [vmem:[#allocation2 + $0xb8] sm:$0xff]
        %v606 = vld [vmem:[#allocation2 + $0xc0] sm:$0xff]
        %v607 = vld [vmem:[#allocation2 + $0xc8] sm:$0xff]
        %v608 = vld [vmem:[#allocation2 + $0xd0] sm:$0xff]
        %v609 = vld [vmem:[#allocation2 + $0xd8] sm:$0xff]
        %v610 = vld [vmem:[#allocation2 + $0xe0] sm:$0xff]
        %v611 = vld [vmem:[#allocation2 + $0xe8] sm:$0xff]
        %v612 = vld [vmem:[#allocation2 + $0xf0] sm:$0xff]
        %v613 = vld [vmem:[#allocation2 + $0xf8] sm:$0xff]
        %v646 = vunpack.c.l.b16 %v513
        %v647 = vunpack.c.h.b16 %v513
        %v648 = vunpack.c.l.b16 %v514
        %v649 = vunpack.c.h.b16 %v514
        %v650 = vunpack.c.l.b16 %v515
        %v651 = vunpack.c.h.b16 %v515
        %v652 = vunpack.c.l.b16 %v516
        %v653 = vunpack.c.h.b16 %v516
        %v654 = vunpack.c.l.b16 %v517
        %v655 = vunpack.c.h.b16 %v517
        %v656 = vunpack.c.l.b16 %v518
        %v657 = vunpack.c.h.b16 %v518
        %v658 = vunpack.c.l.b16 %v519
        %v659 = vunpack.c.h.b16 %v519
        %v660 = vunpack.c.l.b16 %v520
        %v661 = vunpack.c.h.b16 %v520
        %v662 = vunpack.c.l.b16 %v521
        %v663 = vunpack.c.h.b16 %v521
        %v664 = vunpack.c.l.b16 %v522
        %v665 = vunpack.c.h.b16 %v522
        %v666 = vunpack.c.l.b16 %v523
        %v667 = vunpack.c.h.b16 %v523
        %v668 = vunpack.c.l.b16 %v524
        %v669 = vunpack.c.h.b16 %v524
        %v670 = vunpack.c.l.b16 %v525
        %v671 = vunpack.c.h.b16 %v525
        %v672 = vunpack.c.l.b16 %v526
        %v673 = vunpack.c.h.b16 %v526
        %v674 = vunpack.c.l.b16 %v527
        %v675 = vunpack.c.h.b16 %v527
        %v676 = vunpack.c.l.b16 %v528
        %v677 = vunpack.c.h.b16 %v528
        %v678 = vunpack.c.l.b16 %v529
        %v679 = vunpack.c.h.b16 %v529
        %v680 = vunpack.c.l.b16 %v530
        %v681 = vunpack.c.h.b16 %v530
        %v682 = vunpack.c.l.b16 %v531
        %v683 = vunpack.c.h.b16 %v531
        %v684 = vunpack.c.l.b16 %v532
        %v685 = vunpack.c.h.b16 %v532
        %v686 = vunpack.c.l.b16 %v533
        %v687 = vunpack.c.h.b16 %v533
        %v688 = vunpack.c.l.b16 %v534
        %v689 = vunpack.c.h.b16 %v534
        %v690 = vunpack.c.l.b16 %v535
        %v691 = vunpack.c.h.b16 %v535
        %v692 = vunpack.c.l.b16 %v536
        %v693 = vunpack.c.h.b16 %v536
        %v694 = vunpack.c.l.b16 %v537
        %v695 = vunpack.c.h.b16 %v537
        %v696 = vunpack.c.l.b16 %v538
        %v697 = vunpack.c.h.b16 %v538
        %v698 = vunpack.c.l.b16 %v539
        %v699 = vunpack.c.h.b16 %v539
        %v700 = vunpack.c.l.b16 %v540
        %v701 = vunpack.c.h.b16 %v540
        %v702 = vunpack.c.l.b16 %v541
        %v703 = vunpack.c.h.b16 %v541
        %v704 = vunpack.c.l.b16 %v542
        %v705 = vunpack.c.h.b16 %v542
        %v706 = vunpack.c.l.b16 %v543
        %v707 = vunpack.c.h.b16 %v543
        %v708 = vunpack.c.l.b16 %v544
        %v709 = vunpack.c.h.b16 %v544
        %v710 = vpack.c.b16 %v648, %v646
        %v711 = vpack.c.b16 %v649, %v647
        %v712 = vpack.c.b16 %v652, %v650
        %v713 = vpack.c.b16 %v653, %v651
        %v714 = vpack.c.b16 %v656, %v654
        %v715 = vpack.c.b16 %v657, %v655
        %v716 = vpack.c.b16 %v660, %v658
        %v717 = vpack.c.b16 %v661, %v659
        %v718 = vpack.c.b16 %v664, %v662
        %v719 = vpack.c.b16 %v665, %v663
        %v720 = vpack.c.b16 %v668, %v666
        %v721 = vpack.c.b16 %v669, %v667
        %v722 = vpack.c.b16 %v672, %v670
        %v723 = vpack.c.b16 %v673, %v671
        %v724 = vpack.c.b16 %v676, %v674
        %v725 = vpack.c.b16 %v677, %v675
        %v726 = vpack.c.b16 %v680, %v678
        %v727 = vpack.c.b16 %v681, %v679
        %v728 = vpack.c.b16 %v684, %v682
        %v729 = vpack.c.b16 %v685, %v683
        %v730 = vpack.c.b16 %v688, %v686
        %v731 = vpack.c.b16 %v689, %v687
        %v732 = vpack.c.b16 %v692, %v690
        %v733 = vpack.c.b16 %v693, %v691
        %v734 = vpack.c.b16 %v696, %v694
        %v735 = vpack.c.b16 %v697, %v695
        %v736 = vpack.c.b16 %v700, %v698
        %v737 = vpack.c.b16 %v701, %v699
        %v738 = vpack.c.b16 %v704, %v702
        %v739 = vpack.c.b16 %v705, %v703
        %v740 = vpack.c.b16 %v708, %v706
        %v741 = vpack.c.b16 %v709, %v707
        %v806 = vunpack.c.l.b16 %v550
        %v807 = vunpack.c.l.b16 %v551
        %v808 = vunpack.c.l.b16 %v552
        %v809 = vunpack.c.l.b16 %v553
        %v810 = vunpack.c.l.b16 %v554
        %v811 = vunpack.c.l.b16 %v555
        %v812 = vunpack.c.l.b16 %v556
        %v813 = vunpack.c.l.b16 %v557
        %v814 = vunpack.c.l.b16 %v558
        %v815 = vunpack.c.l.b16 %v559
        %v816 = vunpack.c.l.b16 %v560
        %v817 = vunpack.c.l.b16 %v561
        %v818 = vunpack.c.l.b16 %v562
        %v819 = vunpack.c.l.b16 %v563
        %v820 = vunpack.c.l.b16 %v564
        %v821 = vunpack.c.l.b16 %v565
        %v822 = vunpack.c.l.b16 %v566
        %v823 = vunpack.c.l.b16 %v567
        %v824 = vunpack.c.l.b16 %v568
        %v825 = vunpack.c.l.b16 %v569
        %v826 = vunpack.c.l.b16 %v570
        %v827 = vunpack.c.l.b16 %v571
        %v828 = vunpack.c.l.b16 %v572
        %v829 = vunpack.c.l.b16 %v573
        %v830 = vunpack.c.l.b16 %v574
        %v831 = vunpack.c.l.b16 %v575
        %v832 = vunpack.c.l.b16 %v576
        %v833 = vunpack.c.l.b16 %v577
        %v834 = vunpack.c.l.b16 %v578
        %v835 = vunpack.c.l.b16 %v579
        %v836 = vunpack.c.l.b16 %v580
        %v837 = vunpack.c.l.b16 %v581
        %v838 = vpack.c.b16 %v807, %v806
        %v839 = vpack.c.b16 %v809, %v808
        %v840 = vpack.c.b16 %v811, %v810
        %v841 = vpack.c.b16 %v813, %v812
        %v842 = vpack.c.b16 %v815, %v814
        %v843 = vpack.c.b16 %v817, %v816
        %v844 = vpack.c.b16 %v819, %v818
        %v845 = vpack.c.b16 %v821, %v820
        %v846 = vpack.c.b16 %v823, %v822
        %v847 = vpack.c.b16 %v825, %v824
        %v848 = vpack.c.b16 %v827, %v826
        %v849 = vpack.c.b16 %v829, %v828
        %v850 = vpack.c.b16 %v831, %v830
        %v851 = vpack.c.b16 %v833, %v832
        %v852 = vpack.c.b16 %v835, %v834
        %v853 = vpack.c.b16 %v837, %v836
        %870 = vmatprep.subr.bf16.mxu0 0
        %871 = vmatpush1.bf16.msra.mxu0 %v845
        %872 = vmatprep.subr.bf16.mxu0 0
        %873 = vmatpush1.bf16.msra.mxu0 %v844
        %874 = vmatprep.subr.bf16.mxu0 0
        %875 = vmatpush1.bf16.msra.mxu0 %v843
        %876 = vmatprep.subr.bf16.mxu0 0
        %877 = vmatpush1.bf16.msra.mxu0 %v842
        %878 = vmatprep.subr.bf16.mxu0 0
        %879 = vmatpush1.bf16.msra.mxu0 %v841
        %880 = vmatprep.subr.bf16.mxu0 0
        %881 = vmatpush1.bf16.msra.mxu0 %v840
        %882 = vmatprep.subr.bf16.mxu0 0
        %883 = vmatpush1.bf16.msra.mxu0 %v839
        %884 = vmatprep.subr.bf16.mxu0 0
        %885 = vmatpush1.bf16.msra.mxu0 %v838
        %886 = vmatprep.subr.bf16.mxu0 0
        %887 = vmatpush2.bf16.msra.mxu0 %v853
        %888 = vmatprep.subr.bf16.mxu0 0
        %889 = vmatpush2.bf16.msra.mxu0 %v852
        %890 = vmatprep.subr.bf16.mxu0 0
        %891 = vmatpush2.bf16.msra.mxu0 %v851
        %892 = vmatprep.subr.bf16.mxu0 0
        %893 = vmatpush2.bf16.msra.mxu0 %v850
        %894 = vmatprep.subr.bf16.mxu0 0
        %895 = vmatpush2.bf16.msra.mxu0 %v849
        %896 = vmatprep.subr.bf16.mxu0 0
        %897 = vmatpush2.bf16.msra.mxu0 %v848
        %898 = vmatprep.subr.bf16.mxu0 0
        %899 = vmatpush2.bf16.msra.mxu0 %v847
        %900 = vmatprep.subr.bf16.mxu0 0
        %901 = vmatpush2.bf16.msra.mxu0 %v846
        %902 = vmatprep.mubr.bf16.mxu0 %v711
        %903 = vmatmul.mubr.bf16.gmra.mxu0 %v710
        %v904 = vpop.f32.mrf.mxu0
        %v905 = vadd.f32 0.0, %v904
        %v906 = vpop.f32.mrf.mxu0
        %v907 = vpop.f32.mrf.mxu0
        %v908 = vadd.f32 0.0, %v907
        %v909 = vpop.f32.mrf.mxu0
        %910 = vmatprep.mubr.bf16.mxu0 %v713
        %911 = vmatmul.mubr.bf16.gmra.mxu0 %v712
        %v912 = vpop.f32.mrf.mxu0
        %v913 = vadd.f32 0.0, %v912
        %v914 = vpop.f32.mrf.mxu0
        %v915 = vpop.f32.mrf.mxu0
        %v916 = vadd.f32 0.0, %v915
        %v917 = vpop.f32.mrf.mxu0
        %918 = vmatprep.mubr.bf16.mxu0 %v715
        %919 = vmatmul.mubr.bf16.gmra.mxu0 %v714
        %v920 = vpop.f32.mrf.mxu0
        %v921 = vadd.f32 0.0, %v920
        %v922 = vpop.f32.mrf.mxu0
        %v923 = vpop.f32.mrf.mxu0
        %v924 = vadd.f32 0.0, %v923
        %v925 = vpop.f32.mrf.mxu0
        %926 = vmatprep.mubr.bf16.mxu0 %v717
        %927 = vmatmul.mubr.bf16.gmra.mxu0 %v716
        %v928 = vpop.f32.mrf.mxu0
        %v929 = vadd.f32 0.0, %v928
        %v930 = vpop.f32.mrf.mxu0
        %v931 = vpop.f32.mrf.mxu0
        %v932 = vadd.f32 0.0, %v931
        %v933 = vpop.f32.mrf.mxu0
        %934 = vmatprep.mubr.bf16.mxu0 %v719
        %935 = vmatmul.mubr.bf16.gmra.mxu0 %v718
        %v936 = vpop.f32.mrf.mxu0
        %v937 = vadd.f32 0.0, %v936
        %v938 = vpop.f32.mrf.mxu0
        %v939 = vpop.f32.mrf.mxu0
        %v940 = vadd.f32 0.0, %v939
        %v941 = vpop.f32.mrf.mxu0
        %942 = vmatprep.mubr.bf16.mxu0 %v721
        %943 = vmatmul.mubr.bf16.gmra.mxu0 %v720
        %v944 = vpop.f32.mrf.mxu0
        %v945 = vadd.f32 0.0, %v944
        %v946 = vpop.f32.mrf.mxu0
        %v947 = vpop.f32.mrf.mxu0
        %v948 = vadd.f32 0.0, %v947
        %v949 = vpop.f32.mrf.mxu0
        %950 = vmatprep.mubr.bf16.mxu0 %v723
        %951 = vmatmul.mubr.bf16.gmra.mxu0 %v722
        %v952 = vpop.f32.mrf.mxu0
        %v953 = vadd.f32 0.0, %v952
        %v954 = vpop.f32.mrf.mxu0
        %v955 = vpop.f32.mrf.mxu0
        %v956 = vadd.f32 0.0, %v955
        %v957 = vpop.f32.mrf.mxu0
        %958 = vmatprep.mubr.bf16.mxu0 %v725
        %959 = vmatmul.mubr.bf16.gmra.mxu0 %v724
        %v960 = vpop.f32.mrf.mxu0
        %v961 = vadd.f32 0.0, %v960
        %v962 = vpop.f32.mrf.mxu0
        %v963 = vpop.f32.mrf.mxu0
        %v964 = vadd.f32 0.0, %v963
        %v965 = vpop.f32.mrf.mxu0
        %966 = vmatprep.mubr.bf16.mxu0 %v727
        %967 = vmatmul.mubr.bf16.gmra.mxu0 %v726
        %v968 = vpop.f32.mrf.mxu0
        %v969 = vadd.f32 0.0, %v968
        %v970 = vpop.f32.mrf.mxu0
        %v971 = vpop.f32.mrf.mxu0
        %v972 = vadd.f32 0.0, %v971
        %v973 = vpop.f32.mrf.mxu0
        %974 = vmatprep.mubr.bf16.mxu0 %v729
        %975 = vmatmul.mubr.bf16.gmra.mxu0 %v728
        %v976 = vpop.f32.mrf.mxu0
        %v977 = vadd.f32 0.0, %v976
        %v978 = vpop.f32.mrf.mxu0
        %v979 = vpop.f32.mrf.mxu0
        %v980 = vadd.f32 0.0, %v979
        %v981 = vpop.f32.mrf.mxu0
        %982 = vmatprep.mubr.bf16.mxu0 %v731
        %983 = vmatmul.mubr.bf16.gmra.mxu0 %v730
        %v984 = vpop.f32.mrf.mxu0
        %v985 = vadd.f32 0.0, %v984
        %v986 = vpop.f32.mrf.mxu0
        %v987 = vpop.f32.mrf.mxu0
        %v988 = vadd.f32 0.0, %v987
        %v989 = vpop.f32.mrf.mxu0
        %990 = vmatprep.mubr.bf16.mxu0 %v733
        %991 = vmatmul.mubr.bf16.gmra.mxu0 %v732
        %v992 = vpop.f32.mrf.mxu0
        %v993 = vadd.f32 0.0, %v992
        %v994 = vpop.f32.mrf.mxu0
        %v995 = vpop.f32.mrf.mxu0
        %v996 = vadd.f32 0.0, %v995
        %v997 = vpop.f32.mrf.mxu0
        %998 = vmatprep.mubr.bf16.mxu0 %v735
        %999 = vmatmul.mubr.bf16.gmra.mxu0 %v734
        %v1000 = vpop.f32.mrf.mxu0
        %v1001 = vadd.f32 0.0, %v1000
        %v1002 = vpop.f32.mrf.mxu0
        %v1003 = vpop.f32.mrf.mxu0
        %v1004 = vadd.f32 0.0, %v1003
        %v1005 = vpop.f32.mrf.mxu0
        %1006 = vmatprep.mubr.bf16.mxu0 %v737
        %1007 = vmatmul.mubr.bf16.gmra.mxu0 %v736
        %v1008 = vpop.f32.mrf.mxu0
        %v1009 = vadd.f32 0.0, %v1008
        %v1010 = vpop.f32.mrf.mxu0
        %v1011 = vpop.f32.mrf.mxu0
        %v1012 = vadd.f32 0.0, %v1011
        %v1013 = vpop.f32.mrf.mxu0
        %1014 = vmatprep.mubr.bf16.mxu0 %v739
        %1015 = vmatmul.mubr.bf16.gmra.mxu0 %v738
        %v1016 = vpop.f32.mrf.mxu0
        %v1017 = vadd.f32 0.0, %v1016
        %v1018 = vpop.f32.mrf.mxu0
        %v1019 = vpop.f32.mrf.mxu0
        %v1020 = vadd.f32 0.0, %v1019
        %v1021 = vpop.f32.mrf.mxu0
        %1022 = vmatprep.mubr.bf16.mxu0 %v741
        %1023 = vmatmul.mubr.bf16.gmra.mxu0 %v740
        %v1024 = vpop.f32.mrf.mxu0
        %v1025 = vadd.f32 0.0, %v1024
        %v1026 = vpop.f32.mrf.mxu0
        %v1027 = vpop.f32.mrf.mxu0
        %v1028 = vadd.f32 0.0, %v1027
        %v1029 = vpop.f32.mrf.mxu0
        %1030 = vdwg.mxu0
        %v1031 = vadd.f32 %v582, %v905
        %v1032 = vadd.f32 %v583, %v908
        %v1033 = vadd.f32 %v584, %v913
        %v1034 = vadd.f32 %v585, %v916
        %v1035 = vadd.f32 %v586, %v921
        %v1036 = vadd.f32 %v587, %v924
        %v1037 = vadd.f32 %v588, %v929
        %v1038 = vadd.f32 %v589, %v932
        %v1039 = vadd.f32 %v590, %v937
        %v1040 = vadd.f32 %v591, %v940
        %v1041 = vadd.f32 %v592, %v945
        %v1042 = vadd.f32 %v593, %v948
        %v1043 = vadd.f32 %v594, %v953
        %v1044 = vadd.f32 %v595, %v956
        %v1045 = vadd.f32 %v596, %v961
        %v1046 = vadd.f32 %v597, %v964
        %v1047 = vadd.f32 %v598, %v969
        %v1048 = vadd.f32 %v599, %v972
        %v1049 = vadd.f32 %v600, %v977
        %v1050 = vadd.f32 %v601, %v980
        %v1051 = vadd.f32 %v602, %v985
        %v1052 = vadd.f32 %v603, %v988
        %v1053 = vadd.f32 %v604, %v993
        %v1054 = vadd.f32 %v605, %v996
        %v1055 = vadd.f32 %v606, %v1001
        %v1056 = vadd.f32 %v607, %v1004
        %v1057 = vadd.f32 %v608, %v1009
        %v1058 = vadd.f32 %v609, %v1012
        %v1059 = vadd.f32 %v610, %v1017
        %v1060 = vadd.f32 %v611, %v1020
        %v1061 = vadd.f32 %v612, %v1025
        %v1062 = vadd.f32 %v613, %v1028
        %1063 = vst [vmem:[#allocation2] sm:$0xff] %v1031
        %1064 = vst [vmem:[#allocation2 + $0x8] sm:$0xff] %v1032
        %1065 = vst [vmem:[#allocation2 + $0x10] sm:$0xff] %v1033
        %1066 = vst [vmem:[#allocation2 + $0x18] sm:$0xff] %v1034
        %1067 = vst [vmem:[#allocation2 + $0x20] sm:$0xff] %v1035
        %1068 = vst [vmem:[#allocation2 + $0x28] sm:$0xff] %v1036
        %1069 = vst [vmem:[#allocation2 + $0x30] sm:$0xff] %v1037
        %1070 = vst [vmem:[#allocation2 + $0x38] sm:$0xff] %v1038
        %1071 = vst [vmem:[#allocation2 + $0x40] sm:$0xff] %v1039
        %1072 = vst [vmem:[#allocation2 + $0x48] sm:$0xff] %v1040
        %1073 = vst [vmem:[#allocation2 + $0x50] sm:$0xff] %v1041
        %1074 = vst [vmem:[#allocation2 + $0x58] sm:$0xff] %v1042
        %1075 = vst [vmem:[#allocation2 + $0x60] sm:$0xff] %v1043
        %1076 = vst [vmem:[#allocation2 + $0x68] sm:$0xff] %v1044
        %1077 = vst [vmem:[#allocation2 + $0x70] sm:$0xff] %v1045
        %1078 = vst [vmem:[#allocation2 + $0x78] sm:$0xff] %v1046
        %1079 = vst [vmem:[#allocation2 + $0x80] sm:$0xff] %v1047
        %1080 = vst [vmem:[#allocation2 + $0x88] sm:$0xff] %v1048
        %1081 = vst [vmem:[#allocation2 + $0x90] sm:$0xff] %v1049
        %1082 = vst [vmem:[#allocation2 + $0x98] sm:$0xff] %v1050
        %1083 = vst [vmem:[#allocation2 + $0xa0] sm:$0xff] %v1051
        %1084 = vst [vmem:[#allocation2 + $0xa8] sm:$0xff] %v1052
        %1085 = vst [vmem:[#allocation2 + $0xb0] sm:$0xff] %v1053
        %1086 = vst [vmem:[#allocation2 + $0xb8] sm:$0xff] %v1054
        %1087 = vst [vmem:[#allocation2 + $0xc0] sm:$0xff] %v1055
        %1088 = vst [vmem:[#allocation2 + $0xc8] sm:$0xff] %v1056
        %1089 = vst [vmem:[#allocation2 + $0xd0] sm:$0xff] %v1057
        %1090 = vst [vmem:[#allocation2 + $0xd8] sm:$0xff] %v1058
        %1091 = vst [vmem:[#allocation2 + $0xe0] sm:$0xff] %v1059
        %1092 = vst [vmem:[#allocation2 + $0xe8] sm:$0xff] %v1060
        %1093 = vst [vmem:[#allocation2 + $0xf0] sm:$0xff] %v1061
        %1094 = vst [vmem:[#allocation2 + $0xf8] sm:$0xff] %v1062
        %p1095 = scmp.eq.s32.totalorder %s22, 1
        // Predicated region
        $region87: #{graphsage_forward.3} parent=77 // pred_check
          %p1096 = pneg %p1095
        $region88: #{graphsage_forward.3} parent=77 // pred_check_branch
          %1098 = sbr.rel (%p1096) target = $region90
        $region89: #{graphsage_forward.3} parent=77 // pred_region
          %v1099 = vld [vmem:[#allocation2] sm:$0xff]
          %v1100 = vld [vmem:[#allocation2 + $0x8] sm:$0xff]
          %v1101 = vld [vmem:[#allocation2 + $0x10] sm:$0xff]
          %v1102 = vld [vmem:[#allocation2 + $0x18] sm:$0xff]
          %v1103 = vld [vmem:[#allocation2 + $0x20] sm:$0xff]
          %v1104 = vld [vmem:[#allocation2 + $0x28] sm:$0xff]
          %v1105 = vld [vmem:[#allocation2 + $0x30] sm:$0xff]
          %v1106 = vld [vmem:[#allocation2 + $0x38] sm:$0xff]
          %v1107 = vld [vmem:[#allocation2 + $0x40] sm:$0xff]
          %v1108 = vld [vmem:[#allocation2 + $0x48] sm:$0xff]
          %v1109 = vld [vmem:[#allocation2 + $0x50] sm:$0xff]
          %v1110 = vld [vmem:[#allocation2 + $0x58] sm:$0xff]
          %v1111 = vld [vmem:[#allocation2 + $0x60] sm:$0xff]
          %v1112 = vld [vmem:[#allocation2 + $0x68] sm:$0xff]
          %v1113 = vld [vmem:[#allocation2 + $0x70] sm:$0xff]
          %v1114 = vld [vmem:[#allocation2 + $0x78] sm:$0xff]
          %v1115 = vld [vmem:[#allocation2 + $0x80] sm:$0xff]
          %v1116 = vld [vmem:[#allocation2 + $0x88] sm:$0xff]
          %v1117 = vld [vmem:[#allocation2 + $0x90] sm:$0xff]
          %v1118 = vld [vmem:[#allocation2 + $0x98] sm:$0xff]
          %v1119 = vld [vmem:[#allocation2 + $0xa0] sm:$0xff]
          %v1120 = vld [vmem:[#allocation2 + $0xa8] sm:$0xff]
          %v1121 = vld [vmem:[#allocation2 + $0xb0] sm:$0xff]
          %v1122 = vld [vmem:[#allocation2 + $0xb8] sm:$0xff]
          %v1123 = vld [vmem:[#allocation2 + $0xc0] sm:$0xff]
          %v1124 = vld [vmem:[#allocation2 + $0xc8] sm:$0xff]
          %v1125 = vld [vmem:[#allocation2 + $0xd0] sm:$0xff]
          %v1126 = vld [vmem:[#allocation2 + $0xd8] sm:$0xff]
          %v1127 = vld [vmem:[#allocation2 + $0xe0] sm:$0xff]
          %v1128 = vld [vmem:[#allocation2 + $0xe8] sm:$0xff]
          %v1129 = vld [vmem:[#allocation2 + $0xf0] sm:$0xff]
          %v1130 = vld [vmem:[#allocation2 + $0xf8] sm:$0xff]
          %v1131 = vld [vmem:[%s460] sm:$0xff]
          %v1132 = vld [vmem:[%s460 + $0x8] sm:$0xff]
          %v1133 = vld [vmem:[%s460 + $0x10] sm:$0xff]
          %v1134 = vld [vmem:[%s460 + $0x18] sm:$0xff]
          %v1135 = vld [vmem:[%s460 + $0x20] sm:$0xff]
          %v1136 = vld [vmem:[%s460 + $0x28] sm:$0xff]
          %v1137 = vld [vmem:[%s460 + $0x30] sm:$0xff]
          %v1138 = vld [vmem:[%s460 + $0x38] sm:$0xff]
          %v1139 = vld [vmem:[%s460 + $0x40] sm:$0xff]
          %v1140 = vld [vmem:[%s460 + $0x48] sm:$0xff]
          %v1141 = vld [vmem:[%s460 + $0x50] sm:$0xff]
          %v1142 = vld [vmem:[%s460 + $0x58] sm:$0xff]
          %v1143 = vld [vmem:[%s460 + $0x60] sm:$0xff]
          %v1144 = vld [vmem:[%s460 + $0x68] sm:$0xff]
          %v1145 = vld [vmem:[%s460 + $0x70] sm:$0xff]
          %v1146 = vld [vmem:[%s460 + $0x78] sm:$0xff]
          %v1147 = vld [vmem:[%s460 + $0x80] sm:$0xff]
          %v1148 = vld [vmem:[%s460 + $0x88] sm:$0xff]
          %v1149 = vld [vmem:[%s460 + $0x90] sm:$0xff]
          %v1150 = vld [vmem:[%s460 + $0x98] sm:$0xff]
          %v1151 = vld [vmem:[%s460 + $0xa0] sm:$0xff]
          %v1152 = vld [vmem:[%s460 + $0xa8] sm:$0xff]
          %v1153 = vld [vmem:[%s460 + $0xb0] sm:$0xff]
          %v1154 = vld [vmem:[%s460 + $0xb8] sm:$0xff]
          %v1155 = vld [vmem:[%s460 + $0xc0] sm:$0xff]
          %v1156 = vld [vmem:[%s460 + $0xc8] sm:$0xff]
          %v1157 = vld [vmem:[%s460 + $0xd0] sm:$0xff]
          %v1158 = vld [vmem:[%s460 + $0xd8] sm:$0xff]
          %v1159 = vld [vmem:[%s460 + $0xe0] sm:$0xff]
          %v1160 = vld [vmem:[%s460 + $0xe8] sm:$0xff]
          %v1161 = vld [vmem:[%s460 + $0xf0] sm:$0xff]
          %v1162 = vld [vmem:[%s460 + $0xf8] sm:$0xff]
          %1164 = vset.pattern.permute.xlu0 0
          %1165 = vperm.xlu0 %1164, %v1131
          %v1166 = vpop.permute.xlu0 %1165
          %1169 = vset.pattern.permute.xlu0 0
          %1170 = vperm.xlu0 %1169, %v1132
          %v1171 = vpop.permute.xlu0 %1170
          %1174 = vset.pattern.permute.xlu0 0
          %1175 = vperm.xlu0 %1174, %v1133
          %v1176 = vpop.permute.xlu0 %1175
          %1179 = vset.pattern.permute.xlu0 0
          %1180 = vperm.xlu0 %1179, %v1134
          %v1181 = vpop.permute.xlu0 %1180
          %1184 = vset.pattern.permute.xlu0 0
          %1185 = vperm.xlu0 %1184, %v1135
          %v1186 = vpop.permute.xlu0 %1185
          %1189 = vset.pattern.permute.xlu0 0
          %1190 = vperm.xlu0 %1189, %v1136
          %v1191 = vpop.permute.xlu0 %1190
          %1194 = vset.pattern.permute.xlu0 0
          %1195 = vperm.xlu0 %1194, %v1137
          %v1196 = vpop.permute.xlu0 %1195
          %1199 = vset.pattern.permute.xlu0 0
          %1200 = vperm.xlu0 %1199, %v1138
          %v1201 = vpop.permute.xlu0 %1200
          %1204 = vset.pattern.permute.xlu0 0
          %1205 = vperm.xlu0 %1204, %v1139
          %v1206 = vpop.permute.xlu0 %1205
          %1209 = vset.pattern.permute.xlu0 0
          %1210 = vperm.xlu0 %1209, %v1140
          %v1211 = vpop.permute.xlu0 %1210
          %1214 = vset.pattern.permute.xlu0 0
          %1215 = vperm.xlu0 %1214, %v1141
          %v1216 = vpop.permute.xlu0 %1215
          %1219 = vset.pattern.permute.xlu0 0
          %1220 = vperm.xlu0 %1219, %v1142
          %v1221 = vpop.permute.xlu0 %1220
          %1224 = vset.pattern.permute.xlu0 0
          %1225 = vperm.xlu0 %1224, %v1143
          %v1226 = vpop.permute.xlu0 %1225
          %1229 = vset.pattern.permute.xlu0 0
          %1230 = vperm.xlu0 %1229, %v1144
          %v1231 = vpop.permute.xlu0 %1230
          %1234 = vset.pattern.permute.xlu0 0
          %1235 = vperm.xlu0 %1234, %v1145
          %v1236 = vpop.permute.xlu0 %1235
          %1239 = vset.pattern.permute.xlu0 0
          %1240 = vperm.xlu0 %1239, %v1146
          %v1241 = vpop.permute.xlu0 %1240
          %1244 = vset.pattern.permute.xlu0 0
          %1245 = vperm.xlu0 %1244, %v1147
          %v1246 = vpop.permute.xlu0 %1245
          %1249 = vset.pattern.permute.xlu0 0
          %1250 = vperm.xlu0 %1249, %v1148
          %v1251 = vpop.permute.xlu0 %1250
          %1254 = vset.pattern.permute.xlu0 0
          %1255 = vperm.xlu0 %1254, %v1149
          %v1256 = vpop.permute.xlu0 %1255
          %1259 = vset.pattern.permute.xlu0 0
          %1260 = vperm.xlu0 %1259, %v1150
          %v1261 = vpop.permute.xlu0 %1260
          %1264 = vset.pattern.permute.xlu0 0
          %1265 = vperm.xlu0 %1264, %v1151
          %v1266 = vpop.permute.xlu0 %1265
          %1269 = vset.pattern.permute.xlu0 0
          %1270 = vperm.xlu0 %1269, %v1152
          %v1271 = vpop.permute.xlu0 %1270
          %1274 = vset.pattern.permute.xlu0 0
          %1275 = vperm.xlu0 %1274, %v1153
          %v1276 = vpop.permute.xlu0 %1275
          %1279 = vset.pattern.permute.xlu0 0
          %1280 = vperm.xlu0 %1279, %v1154
          %v1281 = vpop.permute.xlu0 %1280
          %1284 = vset.pattern.permute.xlu0 0
          %1285 = vperm.xlu0 %1284, %v1155
          %v1286 = vpop.permute.xlu0 %1285
          %1289 = vset.pattern.permute.xlu0 0
          %1290 = vperm.xlu0 %1289, %v1156
          %v1291 = vpop.permute.xlu0 %1290
          %1294 = vset.pattern.permute.xlu0 0
          %1295 = vperm.xlu0 %1294, %v1157
          %v1296 = vpop.permute.xlu0 %1295
          %1299 = vset.pattern.permute.xlu0 0
          %1300 = vperm.xlu0 %1299, %v1158
          %v1301 = vpop.permute.xlu0 %1300
          %1304 = vset.pattern.permute.xlu0 0
          %1305 = vperm.xlu0 %1304, %v1159
          %v1306 = vpop.permute.xlu0 %1305
          %1309 = vset.pattern.permute.xlu0 0
          %1310 = vperm.xlu0 %1309, %v1160
          %v1311 = vpop.permute.xlu0 %1310
          %1314 = vset.pattern.permute.xlu0 0
          %1315 = vperm.xlu0 %1314, %v1161
          %v1316 = vpop.permute.xlu0 %1315
          %1319 = vset.pattern.permute.xlu0 0
          %1320 = vperm.xlu0 %1319, %v1162
          %v1321 = vpop.permute.xlu0 %1320
          %v1323 = vmul.f32 %v1099, %v1166
          %v1324 = vmul.f32 %v1100, %v1171
          %v1325 = vmul.f32 %v1101, %v1176
          %v1326 = vmul.f32 %v1102, %v1181
          %v1327 = vmul.f32 %v1103, %v1186
          %v1328 = vmul.f32 %v1104, %v1191
          %v1329 = vmul.f32 %v1105, %v1196
          %v1330 = vmul.f32 %v1106, %v1201
          %v1331 = vmul.f32 %v1107, %v1206
          %v1332 = vmul.f32 %v1108, %v1211
          %v1333 = vmul.f32 %v1109, %v1216
          %v1334 = vmul.f32 %v1110, %v1221
          %v1335 = vmul.f32 %v1111, %v1226
          %v1336 = vmul.f32 %v1112, %v1231
          %v1337 = vmul.f32 %v1113, %v1236
          %v1338 = vmul.f32 %v1114, %v1241
          %v1339 = vmul.f32 %v1115, %v1246
          %v1340 = vmul.f32 %v1116, %v1251
          %v1341 = vmul.f32 %v1117, %v1256
          %v1342 = vmul.f32 %v1118, %v1261
          %v1343 = vmul.f32 %v1119, %v1266
          %v1344 = vmul.f32 %v1120, %v1271
          %v1345 = vmul.f32 %v1121, %v1276
          %v1346 = vmul.f32 %v1122, %v1281
          %v1347 = vmul.f32 %v1123, %v1286
          %v1348 = vmul.f32 %v1124, %v1291
          %v1349 = vmul.f32 %v1125, %v1296
          %v1350 = vmul.f32 %v1126, %v1301
          %v1351 = vmul.f32 %v1127, %v1306
          %v1352 = vmul.f32 %v1128, %v1311
          %v1353 = vmul.f32 %v1129, %v1316
          %v1354 = vmul.f32 %v1130, %v1321
          %v1355 = vld [vmem:[%s468] sm:$0xf]
          %v1356 = vld [vmem:[%s468 + $0x4] sm:$0xf]
          %v1357 = vld [vmem:[%s468 + $0x8] sm:$0xf]
          %v1358 = vld [vmem:[%s468 + $0xc] sm:$0xf]
          %v1359 = vld [vmem:[%s468 + $0x10] sm:$0xf]
          %v1360 = vld [vmem:[%s468 + $0x14] sm:$0xf]
          %v1361 = vld [vmem:[%s468 + $0x18] sm:$0xf]
          %v1362 = vld [vmem:[%s468 + $0x1c] sm:$0xf]
          %v1363 = vld [vmem:[%s468 + $0x20] sm:$0xf]
          %v1364 = vld [vmem:[%s468 + $0x24] sm:$0xf]
          %v1365 = vld [vmem:[%s468 + $0x28] sm:$0xf]
          %v1366 = vld [vmem:[%s468 + $0x2c] sm:$0xf]
          %v1367 = vld [vmem:[%s468 + $0x30] sm:$0xf]
          %v1368 = vld [vmem:[%s468 + $0x34] sm:$0xf]
          %v1369 = vld [vmem:[%s468 + $0x38] sm:$0xf]
          %v1370 = vld [vmem:[%s468 + $0x3c] sm:$0xf]
          %v1371 = vld [vmem:[%s468 + $0x40] sm:$0xf]
          %v1372 = vld [vmem:[%s468 + $0x44] sm:$0xf]
          %v1373 = vld [vmem:[%s468 + $0x48] sm:$0xf]
          %v1374 = vld [vmem:[%s468 + $0x4c] sm:$0xf]
          %v1375 = vld [vmem:[%s468 + $0x50] sm:$0xf]
          %v1376 = vld [vmem:[%s468 + $0x54] sm:$0xf]
          %v1377 = vld [vmem:[%s468 + $0x58] sm:$0xf]
          %v1378 = vld [vmem:[%s468 + $0x5c] sm:$0xf]
          %v1379 = vld [vmem:[%s468 + $0x60] sm:$0xf]
          %v1380 = vld [vmem:[%s468 + $0x64] sm:$0xf]
          %v1381 = vld [vmem:[%s468 + $0x68] sm:$0xf]
          %v1382 = vld [vmem:[%s468 + $0x6c] sm:$0xf]
          %v1383 = vld [vmem:[%s468 + $0x70] sm:$0xf]
          %v1384 = vld [vmem:[%s468 + $0x74] sm:$0xf]
          %v1385 = vld [vmem:[%s468 + $0x78] sm:$0xf]
          %v1386 = vld [vmem:[%s468 + $0x7c] sm:$0xf]
          %v1387 = vld [vmem:[%s4] sm:$0xf]
          %v1388 = vld [vmem:[%s4 + $0x4] sm:$0xf]
          %v1389 = vld [vmem:[%s4 + $0x8] sm:$0xf]
          %v1390 = vld [vmem:[%s4 + $0xc] sm:$0xf]
          %v1391 = vld [vmem:[%s4 + $0x10] sm:$0xf]
          %v1392 = vld [vmem:[%s4 + $0x14] sm:$0xf]
          %v1393 = vld [vmem:[%s4 + $0x18] sm:$0xf]
          %v1394 = vld [vmem:[%s4 + $0x1c] sm:$0xf]
          %v1395 = vld [vmem:[%s4 + $0x20] sm:$0xf]
          %v1396 = vld [vmem:[%s4 + $0x24] sm:$0xf]
          %v1397 = vld [vmem:[%s4 + $0x28] sm:$0xf]
          %v1398 = vld [vmem:[%s4 + $0x2c] sm:$0xf]
          %v1399 = vld [vmem:[%s4 + $0x30] sm:$0xf]
          %v1400 = vld [vmem:[%s4 + $0x34] sm:$0xf]
          %v1401 = vld [vmem:[%s4 + $0x38] sm:$0xf]
          %v1402 = vld [vmem:[%s4 + $0x3c] sm:$0xf]
          %v1435 = vunpack.c.l.b16 %v1355
          %v1436 = vunpack.c.l.b16 %v1356
          %v1437 = vunpack.c.l.b16 %v1357
          %v1438 = vunpack.c.l.b16 %v1358
          %v1439 = vunpack.c.l.b16 %v1359
          %v1440 = vunpack.c.l.b16 %v1360
          %v1441 = vunpack.c.l.b16 %v1361
          %v1442 = vunpack.c.l.b16 %v1362
          %v1443 = vunpack.c.l.b16 %v1363
          %v1444 = vunpack.c.l.b16 %v1364
          %v1445 = vunpack.c.l.b16 %v1365
          %v1446 = vunpack.c.l.b16 %v1366
          %v1447 = vunpack.c.l.b16 %v1367
          %v1448 = vunpack.c.l.b16 %v1368
          %v1449 = vunpack.c.l.b16 %v1369
          %v1450 = vunpack.c.l.b16 %v1370
          %v1451 = vunpack.c.l.b16 %v1371
          %v1452 = vunpack.c.l.b16 %v1372
          %v1453 = vunpack.c.l.b16 %v1373
          %v1454 = vunpack.c.l.b16 %v1374
          %v1455 = vunpack.c.l.b16 %v1375
          %v1456 = vunpack.c.l.b16 %v1376
          %v1457 = vunpack.c.l.b16 %v1377
          %v1458 = vunpack.c.l.b16 %v1378
          %v1459 = vunpack.c.l.b16 %v1379
          %v1460 = vunpack.c.l.b16 %v1380
          %v1461 = vunpack.c.l.b16 %v1381
          %v1462 = vunpack.c.l.b16 %v1382
          %v1463 = vunpack.c.l.b16 %v1383
          %v1464 = vunpack.c.l.b16 %v1384
          %v1465 = vunpack.c.l.b16 %v1385
          %v1466 = vunpack.c.l.b16 %v1386
          %v1467 = vpack.c.b16 %v1436, %v1435
          %v1468 = vpack.c.b16 %v1438, %v1437
          %v1469 = vpack.c.b16 %v1440, %v1439
          %v1470 = vpack.c.b16 %v1442, %v1441
          %v1471 = vpack.c.b16 %v1444, %v1443
          %v1472 = vpack.c.b16 %v1446, %v1445
          %v1473 = vpack.c.b16 %v1448, %v1447
          %v1474 = vpack.c.b16 %v1450, %v1449
          %v1475 = vpack.c.b16 %v1452, %v1451
          %v1476 = vpack.c.b16 %v1454, %v1453
          %v1477 = vpack.c.b16 %v1456, %v1455
          %v1478 = vpack.c.b16 %v1458, %v1457
          %v1479 = vpack.c.b16 %v1460, %v1459
          %v1480 = vpack.c.b16 %v1462, %v1461
          %v1481 = vpack.c.b16 %v1464, %v1463
          %v1482 = vpack.c.b16 %v1466, %v1465
          %v1515 = vunpack.c.l.b16 %v1387
          %v1516 = vunpack.c.l.b16 %v1388
          %v1517 = vunpack.c.l.b16 %v1389
          %v1518 = vunpack.c.l.b16 %v1390
          %v1519 = vunpack.c.l.b16 %v1391
          %v1520 = vunpack.c.l.b16 %v1392
          %v1521 = vunpack.c.l.b16 %v1393
          %v1522 = vunpack.c.l.b16 %v1394
          %v1523 = vunpack.c.l.b16 %v1395
          %v1524 = vunpack.c.l.b16 %v1396
          %v1525 = vunpack.c.l.b16 %v1397
          %v1526 = vunpack.c.l.b16 %v1398
          %v1527 = vunpack.c.l.b16 %v1399
          %v1528 = vunpack.c.l.b16 %v1400
          %v1529 = vunpack.c.l.b16 %v1401
          %v1530 = vunpack.c.l.b16 %v1402
          %v1531 = vpack.c.b16 %v1516, %v1515
          %v1532 = vpack.c.b16 %v1518, %v1517
          %v1533 = vpack.c.b16 %v1520, %v1519
          %v1534 = vpack.c.b16 %v1522, %v1521
          %v1535 = vpack.c.b16 %v1524, %v1523
          %v1536 = vpack.c.b16 %v1526, %v1525
          %v1537 = vpack.c.b16 %v1528, %v1527
          %v1538 = vpack.c.b16 %v1530, %v1529
          %1547 = vmatprep.subr.bf16.mxu0 0
          %1548 = vmatpush1.bf16.msra.mxu0 %v1538
          %1549 = vmatprep.subr.bf16.mxu0 0
          %1550 = vmatpush1.bf16.msra.mxu0 %v1537
          %1551 = vmatprep.subr.bf16.mxu0 0
          %1552 = vmatpush1.bf16.msra.mxu0 %v1536
          %1553 = vmatprep.subr.bf16.mxu0 0
          %1554 = vmatpush1.bf16.msra.mxu0 %v1535
          %1555 = vmatprep.subr.bf16.mxu0 0
          %1556 = vmatpush1.bf16.msra.mxu0 %v1534
          %1557 = vmatprep.subr.bf16.mxu0 0
          %1558 = vmatpush1.bf16.msra.mxu0 %v1533
          %1559 = vmatprep.subr.bf16.mxu0 0
          %1560 = vmatpush1.bf16.msra.mxu0 %v1532
          %1561 = vmatprep.subr.bf16.mxu0 0
          %1562 = vmatpush1.bf16.msra.mxu0 %v1531
          %1563 = vmatprep.subr.bf16.mxu0 0
          %1564 = vmatpush2.bf16.msra.mxu0 0
          %1565 = vmatprep.subr.bf16.mxu0 0
          %1566 = vmatpush2.bf16.msra.mxu0 0
          %1567 = vmatprep.subr.bf16.mxu0 0
          %1568 = vmatpush2.bf16.msra.mxu0 0
          %1569 = vmatprep.subr.bf16.mxu0 0
          %1570 = vmatpush2.bf16.msra.mxu0 0
          %1571 = vmatprep.subr.bf16.mxu0 0
          %1572 = vmatpush2.bf16.msra.mxu0 0
          %1573 = vmatprep.subr.bf16.mxu0 0
          %1574 = vmatpush2.bf16.msra.mxu0 0
          %1575 = vmatprep.subr.bf16.mxu0 0
          %1576 = vmatpush2.bf16.msra.mxu0 0
          %1577 = vmatprep.subr.bf16.mxu0 0
          %1578 = vmatpush2.bf16.msra.mxu0 0
          %1579 = vmatprep.mubr.bf16.mxu0 0
          %1580 = vmatmul.mubr.bf16.gmra.mxu0 %v1467
          %v1581 = vpop.f32.mrf.mxu0
          %v1582 = vadd.f32 %v1323, %v1581
          %v1583 = vpop.f32.mrf.mxu0
          %v1584 = vpop.f32.mrf.mxu0
          %v1585 = vadd.f32 %v1324, %v1584
          %v1586 = vpop.f32.mrf.mxu0
          %1587 = vmatprep.mubr.bf16.mxu0 0
          %1588 = vmatmul.mubr.bf16.gmra.mxu0 %v1468
          %v1589 = vpop.f32.mrf.mxu0
          %v1590 = vadd.f32 %v1325, %v1589
          %v1591 = vpop.f32.mrf.mxu0
          %v1592 = vpop.f32.mrf.mxu0
          %v1593 = vadd.f32 %v1326, %v1592
          %v1594 = vpop.f32.mrf.mxu0
          %1595 = vmatprep.mubr.bf16.mxu0 0
          %1596 = vmatmul.mubr.bf16.gmra.mxu0 %v1469
          %v1597 = vpop.f32.mrf.mxu0
          %v1598 = vadd.f32 %v1327, %v1597
          %v1599 = vpop.f32.mrf.mxu0
          %v1600 = vpop.f32.mrf.mxu0
          %v1601 = vadd.f32 %v1328, %v1600
          %v1602 = vpop.f32.mrf.mxu0
          %1603 = vmatprep.mubr.bf16.mxu0 0
          %1604 = vmatmul.mubr.bf16.gmra.mxu0 %v1470
          %v1605 = vpop.f32.mrf.mxu0
          %v1606 = vadd.f32 %v1329, %v1605
          %v1607 = vpop.f32.mrf.mxu0
          %v1608 = vpop.f32.mrf.mxu0
          %v1609 = vadd.f32 %v1330, %v1608
          %v1610 = vpop.f32.mrf.mxu0
          %1611 = vmatprep.mubr.bf16.mxu0 0
          %1612 = vmatmul.mubr.bf16.gmra.mxu0 %v1471
          %v1613 = vpop.f32.mrf.mxu0
          %v1614 = vadd.f32 %v1331, %v1613
          %v1615 = vpop.f32.mrf.mxu0
          %v1616 = vpop.f32.mrf.mxu0
          %v1617 = vadd.f32 %v1332, %v1616
          %v1618 = vpop.f32.mrf.mxu0
          %1619 = vmatprep.mubr.bf16.mxu0 0
          %1620 = vmatmul.mubr.bf16.gmra.mxu0 %v1472
          %v1621 = vpop.f32.mrf.mxu0
          %v1622 = vadd.f32 %v1333, %v1621
          %v1623 = vpop.f32.mrf.mxu0
          %v1624 = vpop.f32.mrf.mxu0
          %v1625 = vadd.f32 %v1334, %v1624
          %v1626 = vpop.f32.mrf.mxu0
          %1627 = vmatprep.mubr.bf16.mxu0 0
          %1628 = vmatmul.mubr.bf16.gmra.mxu0 %v1473
          %v1629 = vpop.f32.mrf.mxu0
          %v1630 = vadd.f32 %v1335, %v1629
          %v1631 = vpop.f32.mrf.mxu0
          %v1632 = vpop.f32.mrf.mxu0
          %v1633 = vadd.f32 %v1336, %v1632
          %v1634 = vpop.f32.mrf.mxu0
          %1635 = vmatprep.mubr.bf16.mxu0 0
          %1636 = vmatmul.mubr.bf16.gmra.mxu0 %v1474
          %v1637 = vpop.f32.mrf.mxu0
          %v1638 = vadd.f32 %v1337, %v1637
          %v1639 = vpop.f32.mrf.mxu0
          %v1640 = vpop.f32.mrf.mxu0
          %v1641 = vadd.f32 %v1338, %v1640
          %v1642 = vpop.f32.mrf.mxu0
          %1643 = vmatprep.mubr.bf16.mxu0 0
          %1644 = vmatmul.mubr.bf16.gmra.mxu0 %v1475
          %v1645 = vpop.f32.mrf.mxu0
          %v1646 = vadd.f32 %v1339, %v1645
          %v1647 = vpop.f32.mrf.mxu0
          %v1648 = vpop.f32.mrf.mxu0
          %v1649 = vadd.f32 %v1340, %v1648
          %v1650 = vpop.f32.mrf.mxu0
          %1651 = vmatprep.mubr.bf16.mxu0 0
          %1652 = vmatmul.mubr.bf16.gmra.mxu0 %v1476
          %v1653 = vpop.f32.mrf.mxu0
          %v1654 = vadd.f32 %v1341, %v1653
          %v1655 = vpop.f32.mrf.mxu0
          %v1656 = vpop.f32.mrf.mxu0
          %v1657 = vadd.f32 %v1342, %v1656
          %v1658 = vpop.f32.mrf.mxu0
          %1659 = vmatprep.mubr.bf16.mxu0 0
          %1660 = vmatmul.mubr.bf16.gmra.mxu0 %v1477
          %v1661 = vpop.f32.mrf.mxu0
          %v1662 = vadd.f32 %v1343, %v1661
          %v1663 = vpop.f32.mrf.mxu0
          %v1664 = vpop.f32.mrf.mxu0
          %v1665 = vadd.f32 %v1344, %v1664
          %v1666 = vpop.f32.mrf.mxu0
          %1667 = vmatprep.mubr.bf16.mxu0 0
          %1668 = vmatmul.mubr.bf16.gmra.mxu0 %v1478
          %v1669 = vpop.f32.mrf.mxu0
          %v1670 = vadd.f32 %v1345, %v1669
          %v1671 = vpop.f32.mrf.mxu0
          %v1672 = vpop.f32.mrf.mxu0
          %v1673 = vadd.f32 %v1346, %v1672
          %v1674 = vpop.f32.mrf.mxu0
          %1675 = vmatprep.mubr.bf16.mxu0 0
          %1676 = vmatmul.mubr.bf16.gmra.mxu0 %v1479
          %v1677 = vpop.f32.mrf.mxu0
          %v1678 = vadd.f32 %v1347, %v1677
          %v1679 = vpop.f32.mrf.mxu0
          %v1680 = vpop.f32.mrf.mxu0
          %v1681 = vadd.f32 %v1348, %v1680
          %v1682 = vpop.f32.mrf.mxu0
          %1683 = vmatprep.mubr.bf16.mxu0 0
          %1684 = vmatmul.mubr.bf16.gmra.mxu0 %v1480
          %v1685 = vpop.f32.mrf.mxu0
          %v1686 = vadd.f32 %v1349, %v1685
          %v1687 = vpop.f32.mrf.mxu0
          %v1688 = vpop.f32.mrf.mxu0
          %v1689 = vadd.f32 %v1350, %v1688
          %v1690 = vpop.f32.mrf.mxu0
          %1691 = vmatprep.mubr.bf16.mxu0 0
          %1692 = vmatmul.mubr.bf16.gmra.mxu0 %v1481
          %v1693 = vpop.f32.mrf.mxu0
          %v1694 = vadd.f32 %v1351, %v1693
          %v1695 = vpop.f32.mrf.mxu0
          %v1696 = vpop.f32.mrf.mxu0
          %v1697 = vadd.f32 %v1352, %v1696
          %v1698 = vpop.f32.mrf.mxu0
          %1699 = vmatprep.mubr.bf16.mxu0 0
          %1700 = vmatmul.mubr.bf16.gmra.mxu0 %v1482
          %v1701 = vpop.f32.mrf.mxu0
          %v1702 = vadd.f32 %v1353, %v1701
          %v1703 = vpop.f32.mrf.mxu0
          %v1704 = vpop.f32.mrf.mxu0
          %v1705 = vadd.f32 %v1354, %v1704
          %v1706 = vpop.f32.mrf.mxu0
          %1707 = vdwg.mxu0
          %v1708 = vld [vmem:[%s5] sm:$0x1]
          %v1710 = vlaneseq
          %v1711 = vshrl.u32 %v1710, 7
          %v1712 = vsub.s32 0, %v1711
          %v1713 = vrot.slane %v1708, %v1712
          %v1715 = vadd.f32 %v1582, %v1713
          %v1716 = vadd.f32 %v1585, %v1713
          %v1717 = vadd.f32 %v1590, %v1713
          %v1718 = vadd.f32 %v1593, %v1713
          %v1719 = vadd.f32 %v1598, %v1713
          %v1720 = vadd.f32 %v1601, %v1713
          %v1721 = vadd.f32 %v1606, %v1713
          %v1722 = vadd.f32 %v1609, %v1713
          %v1723 = vadd.f32 %v1614, %v1713
          %v1724 = vadd.f32 %v1617, %v1713
          %v1725 = vadd.f32 %v1622, %v1713
          %v1726 = vadd.f32 %v1625, %v1713
          %v1727 = vadd.f32 %v1630, %v1713
          %v1728 = vadd.f32 %v1633, %v1713
          %v1729 = vadd.f32 %v1638, %v1713
          %v1730 = vadd.f32 %v1641, %v1713
          %v1731 = vadd.f32 %v1646, %v1713
          %v1732 = vadd.f32 %v1649, %v1713
          %v1733 = vadd.f32 %v1654, %v1713
          %v1734 = vadd.f32 %v1657, %v1713
          %v1735 = vadd.f32 %v1662, %v1713
          %v1736 = vadd.f32 %v1665, %v1713
          %v1737 = vadd.f32 %v1670, %v1713
          %v1738 = vadd.f32 %v1673, %v1713
          %v1739 = vadd.f32 %v1678, %v1713
          %v1740 = vadd.f32 %v1681, %v1713
          %v1741 = vadd.f32 %v1686, %v1713
          %v1742 = vadd.f32 %v1689, %v1713
          %v1743 = vadd.f32 %v1694, %v1713
          %v1744 = vadd.f32 %v1697, %v1713
          %v1745 = vadd.f32 %v1702, %v1713
          %v1746 = vadd.f32 %v1705, %v1713
          %v1747 = vmax.f32 %v1715, 0.0
          %v1748 = vmax.f32 %v1716, 0.0
          %v1749 = vmax.f32 %v1717, 0.0
          %v1750 = vmax.f32 %v1718, 0.0
          %v1751 = vmax.f32 %v1719, 0.0
          %v1752 = vmax.f32 %v1720, 0.0
          %v1753 = vmax.f32 %v1721, 0.0
          %v1754 = vmax.f32 %v1722, 0.0
          %v1755 = vmax.f32 %v1723, 0.0
          %v1756 = vmax.f32 %v1724, 0.0
          %v1757 = vmax.f32 %v1725, 0.0
          %v1758 = vmax.f32 %v1726, 0.0
          %v1759 = vmax.f32 %v1727, 0.0
          %v1760 = vmax.f32 %v1728, 0.0
          %v1761 = vmax.f32 %v1729, 0.0
          %v1762 = vmax.f32 %v1730, 0.0
          %v1763 = vmax.f32 %v1731, 0.0
          %v1764 = vmax.f32 %v1732, 0.0
          %v1765 = vmax.f32 %v1733, 0.0
          %v1766 = vmax.f32 %v1734, 0.0
          %v1767 = vmax.f32 %v1735, 0.0
          %v1768 = vmax.f32 %v1736, 0.0
          %v1769 = vmax.f32 %v1737, 0.0
          %v1770 = vmax.f32 %v1738, 0.0
          %v1771 = vmax.f32 %v1739, 0.0
          %v1772 = vmax.f32 %v1740, 0.0
          %v1773 = vmax.f32 %v1741, 0.0
          %v1774 = vmax.f32 %v1742, 0.0
          %v1775 = vmax.f32 %v1743, 0.0
          %v1776 = vmax.f32 %v1744, 0.0
          %v1777 = vmax.f32 %v1745, 0.0
          %v1778 = vmax.f32 %v1746, 0.0
          %v1779 = vpack.c.bf16 %v1748, %v1747
          %v1780 = vpack.c.bf16 %v1750, %v1749
          %v1781 = vpack.c.bf16 %v1752, %v1751
          %v1782 = vpack.c.bf16 %v1754, %v1753
          %v1783 = vpack.c.bf16 %v1756, %v1755
          %v1784 = vpack.c.bf16 %v1758, %v1757
          %v1785 = vpack.c.bf16 %v1760, %v1759
          %v1786 = vpack.c.bf16 %v1762, %v1761
          %v1787 = vpack.c.bf16 %v1764, %v1763
          %v1788 = vpack.c.bf16 %v1766, %v1765
          %v1789 = vpack.c.bf16 %v1768, %v1767
          %v1790 = vpack.c.bf16 %v1770, %v1769
          %v1791 = vpack.c.bf16 %v1772, %v1771
          %v1792 = vpack.c.bf16 %v1774, %v1773
          %v1793 = vpack.c.bf16 %v1776, %v1775
          %v1794 = vpack.c.bf16 %v1778, %v1777
          %v1811 = vunpack.c.l.b16 %v1779
          %v1812 = vunpack.c.h.b16 %v1779
          %v1813 = vunpack.c.l.b16 %v1780
          %v1814 = vunpack.c.h.b16 %v1780
          %v1815 = vunpack.c.l.b16 %v1781
          %v1816 = vunpack.c.h.b16 %v1781
          %v1817 = vunpack.c.l.b16 %v1782
          %v1818 = vunpack.c.h.b16 %v1782
          %v1819 = vunpack.c.l.b16 %v1783
          %v1820 = vunpack.c.h.b16 %v1783
          %v1821 = vunpack.c.l.b16 %v1784
          %v1822 = vunpack.c.h.b16 %v1784
          %v1823 = vunpack.c.l.b16 %v1785
          %v1824 = vunpack.c.h.b16 %v1785
          %v1825 = vunpack.c.l.b16 %v1786
          %v1826 = vunpack.c.h.b16 %v1786
          %v1827 = vunpack.c.l.b16 %v1787
          %v1828 = vunpack.c.h.b16 %v1787
          %v1829 = vunpack.c.l.b16 %v1788
          %v1830 = vunpack.c.h.b16 %v1788
          %v1831 = vunpack.c.l.b16 %v1789
          %v1832 = vunpack.c.h.b16 %v1789
          %v1833 = vunpack.c.l.b16 %v1790
          %v1834 = vunpack.c.h.b16 %v1790
          %v1835 = vunpack.c.l.b16 %v1791
          %v1836 = vunpack.c.h.b16 %v1791
          %v1837 = vunpack.c.l.b16 %v1792
          %v1838 = vunpack.c.h.b16 %v1792
          %v1839 = vunpack.c.l.b16 %v1793
          %v1840 = vunpack.c.h.b16 %v1793
          %v1841 = vunpack.c.l.b16 %v1794
          %v1842 = vunpack.c.h.b16 %v1794
          %v1843 = vpack.c.b16 %v1811, %v1811
          %v1844 = vpack.c.b16 %v1812, %v1812
          %v1845 = vpack.c.b16 %v1813, %v1813
          %v1846 = vpack.c.b16 %v1814, %v1814
          %v1847 = vpack.c.b16 %v1815, %v1815
          %v1848 = vpack.c.b16 %v1816, %v1816
          %v1849 = vpack.c.b16 %v1817, %v1817
          %v1850 = vpack.c.b16 %v1818, %v1818
          %v1851 = vpack.c.b16 %v1819, %v1819
          %v1852 = vpack.c.b16 %v1820, %v1820
          %v1853 = vpack.c.b16 %v1821, %v1821
          %v1854 = vpack.c.b16 %v1822, %v1822
          %v1855 = vpack.c.b16 %v1823, %v1823
          %v1856 = vpack.c.b16 %v1824, %v1824
          %v1857 = vpack.c.b16 %v1825, %v1825
          %v1858 = vpack.c.b16 %v1826, %v1826
          %v1859 = vpack.c.b16 %v1827, %v1827
          %v1860 = vpack.c.b16 %v1828, %v1828
          %v1861 = vpack.c.b16 %v1829, %v1829
          %v1862 = vpack.c.b16 %v1830, %v1830
          %v1863 = vpack.c.b16 %v1831, %v1831
          %v1864 = vpack.c.b16 %v1832, %v1832
          %v1865 = vpack.c.b16 %v1833, %v1833
          %v1866 = vpack.c.b16 %v1834, %v1834
          %v1867 = vpack.c.b16 %v1835, %v1835
          %v1868 = vpack.c.b16 %v1836, %v1836
          %v1869 = vpack.c.b16 %v1837, %v1837
          %v1870 = vpack.c.b16 %v1838, %v1838
          %v1871 = vpack.c.b16 %v1839, %v1839
          %v1872 = vpack.c.b16 %v1840, %v1840
          %v1873 = vpack.c.b16 %v1841, %v1841
          %v1874 = vpack.c.b16 %v1842, %v1842
          %1907 = vst [vmem:[%s474] sm:$0xf] %v1843
          %1908 = vst [vmem:[%s474 + $0x4] sm:$0xf] %v1844
          %1909 = vst [vmem:[%s474 + $0x8] sm:$0xf] %v1845
          %1910 = vst [vmem:[%s474 + $0xc] sm:$0xf] %v1846
          %1911 = vst [vmem:[%s474 + $0x10] sm:$0xf] %v1847
          %1912 = vst [vmem:[%s474 + $0x14] sm:$0xf] %v1848
          %1913 = vst [vmem:[%s474 + $0x18] sm:$0xf] %v1849
          %1914 = vst [vmem:[%s474 + $0x1c] sm:$0xf] %v1850
          %1915 = vst [vmem:[%s474 + $0x20] sm:$0xf] %v1851
          %1916 = vst [vmem:[%s474 + $0x24] sm:$0xf] %v1852
          %1917 = vst [vmem:[%s474 + $0x28] sm:$0xf] %v1853
          %1918 = vst [vmem:[%s474 + $0x2c] sm:$0xf] %v1854
          %1919 = vst [vmem:[%s474 + $0x30] sm:$0xf] %v1855
          %1920 = vst [vmem:[%s474 + $0x34] sm:$0xf] %v1856
          %1921 = vst [vmem:[%s474 + $0x38] sm:$0xf] %v1857
          %1922 = vst [vmem:[%s474 + $0x3c] sm:$0xf] %v1858
          %1923 = vst [vmem:[%s474 + $0x40] sm:$0xf] %v1859
          %1924 = vst [vmem:[%s474 + $0x44] sm:$0xf] %v1860
          %1925 = vst [vmem:[%s474 + $0x48] sm:$0xf] %v1861
          %1926 = vst [vmem:[%s474 + $0x4c] sm:$0xf] %v1862
          %1927 = vst [vmem:[%s474 + $0x50] sm:$0xf] %v1863
          %1928 = vst [vmem:[%s474 + $0x54] sm:$0xf] %v1864
          %1929 = vst [vmem:[%s474 + $0x58] sm:$0xf] %v1865
          %1930 = vst [vmem:[%s474 + $0x5c] sm:$0xf] %v1866
          %1931 = vst [vmem:[%s474 + $0x60] sm:$0xf] %v1867
          %1932 = vst [vmem:[%s474 + $0x64] sm:$0xf] %v1868
          %1933 = vst [vmem:[%s474 + $0x68] sm:$0xf] %v1869
          %1934 = vst [vmem:[%s474 + $0x6c] sm:$0xf] %v1870
          %1935 = vst [vmem:[%s474 + $0x70] sm:$0xf] %v1871
          %1936 = vst [vmem:[%s474 + $0x74] sm:$0xf] %v1872
          %1937 = vst [vmem:[%s474 + $0x78] sm:$0xf] %v1873
          %1938 = vst [vmem:[%s474 + $0x7c] sm:$0xf] %v1874
        $region90: #{graphsage_forward.3} parent=77 // pred_fallthru
          _
        %s1939 = smul.u32 32, %s21
        %p1940 = scmp.lt.s32.totalorder %s1939, 63
        %s1941 = scalar_select %p1940, %s1939, 63
        %s1942 = smul.addr %s1941, 4
        %s1943 = scalar_lea.vmem %s6, %s1942
        // Predicated region
        $region91: #{graphsage_forward.3} parent=77 // pred_check
          %p1944 = pneg %p190
        $region92: #{graphsage_forward.3} parent=77 // pred_check_branch
          %1946 = sbr.rel (%p1944) target = $region94
        $region93: #{graphsage_forward.3} parent=77 // pred_region
          %s1947 = smul.u32 32, %s21
        $region94: #{graphsage_forward.3} parent=77 // pred_fallthru
          _
      $region78: #{graphsage_forward.3} parent=5 // pred_fallthru
        _
      %p1948 = scmp.le.s32.totalorder 2, %s12
      // Predicated region
      $region95: #{graphsage_forward.3} parent=5 // pred_check
        %p1949 = pneg %p1948
      $region96: #{graphsage_forward.3} parent=5 // pred_check_branch
        %1951 = sbr.rel (%p1949) target = $region98
      $region97: #{graphsage_forward.3} parent=5 // pred_region
        %s1952 = ssub.s32 %s12, 2
        // Predicated region
        $region99: #{graphsage_forward.3} parent=97 // pred_check
          %p1953 = pneg %p196
        $region100: #{graphsage_forward.3} parent=97 // pred_check_branch
          %1955 = sbr.rel (%p1953) target = $region102
        $region101: #{graphsage_forward.3} parent=97 // pred_region
          %s1956 = smul.u32 32, %s23
          %p1957 = scmp.lt.s32.totalorder %s1956, 63
          %s1958 = scalar_select %p1957, %s1956, 63
          %s1959 = smul.addr %s1958, 4
          %s1960 = scalar_lea.vmem %s6, %s1959
        $region102: #{graphsage_forward.3} parent=97 // pred_fallthru
          _
      $region98: #{graphsage_forward.3} parent=5 // pred_fallthru
        _
    $region6: #{graphsage_forward.3} parent=1 // loop_footer
      %s16 = sadd.s32 1, %s12
    $region7: #{graphsage_forward.3} parent=1 // loop_footer_branch
      %11 = sbr.rel target = $region3
    $region8: #{graphsage_forward.3} parent=1 // loop_exit
      _

</llo_original>
